<compile_context>
chip_gen: v7x
topology: tpu7x:2x2x1
jax: 0.10.0
libtpu: 0.0.40
codegen_flags: <defaults>
</compile_context>

<pallas_src>
import jax
import jax.numpy as jnp
from jax.experimental import pallas as pl
from jax.experimental.pallas import tpu as pltpu


def lstm_gen_kernel(
    x_ref,        # (TT, Bt, E)   time-major block of embeddings
    zb_ref,       # (Bt, 4Hp)     z @ Wz + bias   (time-invariant)
    wx_ref,       # (E, 4Hp)      packed input->gate weights  [i|f|o|g]
    wh_ref,       # (Hp, 4Hp)     packed hidden->gate weights [i|f|o|g]
    wout_ref,     # (Hp, Vt)      output projection tile (vocab padded to 128 lanes)
    bout_ref,     # (1, Vt)
    out_ref,      # (TT, Bt, Vt)  time-major logits for this (time, batch, vocab) block
    h_scr,        # VMEM (Bt, Hp)       recurrent hidden state (persists across time blocks)
    c_scr,        # VMEM (Bt, Hp)       recurrent cell state
    xp_scr,       # VMEM (TT, Bt, 4Hp)  per-step gate pre-activations from x (+z, +b)
    hall_scr,     # VMEM (TT, Bt, Hp)   hidden states of this time block
):
    tb = pl.program_id(1)   # time-block index   (sequential)
    vb = pl.program_id(2)   # vocab-tile index   (innermost)
    TT, Bt, E = x_ref.shape
    Hp = h_scr.shape[1]

    # The recurrence only needs to run once per (batch-block, time-block); vocab tiles
    # reuse hall_scr.
    @pl.when(vb == 0)
    def _recurrence():
        @pl.when(tb == 0)
        def _init():
            h_scr[...] = jnp.zeros_like(h_scr)
            c_scr[...] = jnp.zeros_like(c_scr)

        # ---- block-level fused input projection (lane-dense, one MXU pass) ----
        xp = jnp.dot(x_ref[...].reshape(TT * Bt, E), wx_ref[...],
                     preferred_element_type=jnp.float32)            # (TT*Bt, 4Hp)
        xp_scr[...] = xp.reshape(TT, Bt, 4 * Hp) + zb_ref[...]      # + z-proj + bias

        # ---- sequential recurrence over the TT timesteps of this block ----
        # Hp is a multiple of 128, so every slice below is lane-tile aligned.
        def step(s, carry):
            h_prev, c_prev = carry
            gates = xp_scr[s] + jnp.dot(h_prev, wh_ref[...],
                                        preferred_element_type=jnp.float32)  # (Bt, 4Hp)
            ifo = jax.nn.sigmoid(gates[:, : 3 * Hp])   # sigmoid gates (i, f, o) at once
            g = jnp.tanh(gates[:, 3 * Hp:])            # candidate gate
            i_g = ifo[:, :Hp]
            f_g = ifo[:, Hp: 2 * Hp]
            o_g = ifo[:, 2 * Hp:]
            c_new = f_g * c_prev + i_g * g
            h_new = o_g * jnp.tanh(c_new)
            hall_scr[s] = h_new
            return h_new, c_new

        h_fin, c_fin = jax.lax.fori_loop(
            0, TT, step, (h_scr[...], c_scr[...]), unroll=min(TT, 8))
        h_scr[...] = h_fin
        c_scr[...] = c_fin

    # ---- block-level fused output projection (time-major, lane-dense store) ----
    Vt = wout_ref.shape[1]
    logits = jnp.dot(hall_scr[...].reshape(TT * Bt, Hp), wout_ref[...],
                     preferred_element_type=jnp.float32) + bout_ref[...]
    out_ref[...] = logits.reshape(TT, Bt, Vt).astype(out_ref.dtype)


def _pad_gate_cols(w, H, Hp):
    """Repack a packed-gate array (..., 4H) [i|f|o|g] into (..., 4Hp), zero-padding
    each gate block from H to Hp columns."""
    if Hp == H:
        return w
    pad_width = [(0, 0)] * (w.ndim - 1) + [(0, Hp - H)]
    parts = [jnp.pad(w[..., k * H:(k + 1) * H], pad_width) for k in range(4)]
    return jnp.concatenate(parts, axis=-1)


def generator_forward(x_emb, z, params, *, block_t=16, block_b=8, block_v=2048):
    """x_emb: (B, T, E) float32 embeddings; z: (B, Z) float32 latent.
    Returns logits (B, T, V), matching Generator.forward (n_class=None path)."""
    B, T, E = x_emb.shape
    H = params["wh"].shape[0]
    V = params["bout"].shape[-1]

    # ---- pad hidden size to a lane tile so all in-kernel gate slices are aligned ----
    Hp = ((H + 127) // 128) * 128
    wx = _pad_gate_cols(params["wx"], H, Hp)                           # (E, 4Hp)
    wz = _pad_gate_cols(params["wz"], H, Hp)                           # (Z, 4Hp)
    b = _pad_gate_cols(params["b"], H, Hp)                             # (1, 4Hp)
    wh = _pad_gate_cols(jnp.pad(params["wh"], ((0, Hp - H), (0, 0))), H, Hp)  # (Hp, 4Hp)
    wout = jnp.pad(params["wout"], ((0, Hp - H), (0, 0)))              # (Hp, V)
    bout = params["bout"]                                              # (1, V)

    # Hoist the time-invariant latent contribution (+ combined bias) out of the
    # recurrence: replaces torch.cat([x, z], dim=2) with a per-batch bias.
    zb = jnp.dot(z, wz) + b                                            # (B, 4Hp)

    # ---- vocab padding + tiling (lane-dense stores; bounded VMEM on v7x) ----
    Vp = ((V + 127) // 128) * 128
    Vt = min(Vp, max(128, (block_v // 128) * 128))
    Vp = ((Vp + Vt - 1) // Vt) * Vt
    if Vp != V:
        wout = jnp.pad(wout, ((0, 0), (0, Vp - V)))
        bout = jnp.pad(bout, ((0, 0), (0, Vp - V)))
    nvb = Vp // Vt

    # ---- batch padding + tiling (full sublane occupancy; parallel axis for v7x) ----
    Bp = ((B + 7) // 8) * 8
    Bt = min(Bp, max(8, (block_b // 8) * 8))
    Bp = ((Bp + Bt - 1) // Bt) * Bt
    nbb = Bp // Bt

    # ---- time blocking ----
    if T >= 8:
        TT = max(8, (min(block_t, T) // 8) * 8)
    else:
        TT = T
    Tp = pl.cdiv(T, TT) * TT
    nblk = Tp // TT

    # Single wrapper transpose to time-major; all per-block transposes are gone.
    x_tm = jnp.transpose(x_emb, (1, 0, 2))                             # (T, B, E)
    if (Tp, Bp) != (T, B):
        x_tm = jnp.pad(x_tm, ((0, Tp - T), (0, Bp - B), (0, 0)))
    if Bp != B:
        zb = jnp.pad(zb, ((0, Bp - B), (0, 0)))

    grid_spec = pltpu.PrefetchScalarGridSpec(
        num_scalar_prefetch=0,
        grid=(nbb, nblk, nvb),
        in_specs=[
            pl.BlockSpec((TT, Bt, E), lambda bb, tb, vb: (tb, bb, 0)),     # x (time-major)
            pl.BlockSpec((Bt, 4 * Hp), lambda bb, tb, vb: (bb, 0)),        # z proj + bias
            pl.BlockSpec((E, 4 * Hp), lambda bb, tb, vb: (0, 0)),          # Wx packed
            pl.BlockSpec((Hp, 4 * Hp), lambda bb, tb, vb: (0, 0)),         # Wh packed
            pl.BlockSpec((Hp, Vt), lambda bb, tb, vb: (0, vb)),            # Wout tile
            pl.BlockSpec((1, Vt), lambda bb, tb, vb: (0, vb)),             # bout tile
        ],
        out_specs=pl.BlockSpec((TT, Bt, Vt), lambda bb, tb, vb: (tb, bb, vb)),
        scratch_shapes=[
            pltpu.VMEM((Bt, Hp), jnp.float32),           # h state
            pltpu.VMEM((Bt, Hp), jnp.float32),           # c state
            pltpu.VMEM((TT, Bt, 4 * Hp), jnp.float32),   # per-step gate pre-acts
            pltpu.VMEM((TT, Bt, Hp), jnp.float32),       # block hidden states
        ],
    )

    out_tm = pl.pallas_call(
        lstm_gen_kernel,
        out_shape=jax.ShapeDtypeStruct((Tp, Bp, Vp), jnp.float32),
        grid_spec=grid_spec,
        compiler_params=pltpu.CompilerParams(
            # batch blocks are independent (megacore on v7x); time & vocab are sequential
            dimension_semantics=("parallel", "arbitrary", "arbitrary"),
        ),
    )(x_tm, zb, wx, wh, wout, bout)

    # Single transpose + crop in the wrapper (kernel output is time-major).
    return jnp.transpose(out_tm[:T, :B, :V], (1, 0, 2))


def make_params(key, emb, z_size, hidden, vocab):
    """Packed-weight init mimicking PyTorch's U(-1/sqrt(H), 1/sqrt(H)).
    Gate packing order along the 4H axis is [i, f, o, g]."""
    bound = 1.0 / jnp.sqrt(jnp.float32(hidden))
    names_shapes = [
        ("wx", (emb, 4 * hidden)),      # input->gates (embedding part)
        ("wz", (z_size, 4 * hidden)),   # input->gates (latent part)
        ("wh", (hidden, 4 * hidden)),   # hidden->gates
        ("b", (1, 4 * hidden)),         # combined b_ih + b_hh
        ("wout", (hidden, vocab)),      # nn.Linear weight (H, V)
        ("bout", (1, vocab)),           # nn.Linear bias
    ]
    params = {}
    keys = jax.random.split(key, len(names_shapes))
    for (name, shape), k in zip(names_shapes, keys):
        params[name] = jax.random.uniform(
            k, shape, dtype=jnp.float32, minval=-bound, maxval=bound)
    return params


def reference_forward(x_emb, z, params):
    """Pure-JAX reference (lax.scan LSTM + Linear) with the same packed params."""
    B, T, E = x_emb.shape
    H = params["wh"].shape[0]
    wx, wz, wh, b = params["wx"], params["wz"], params["wh"], params["b"]
    zb = z @ wz + b                                   # (B, 4H)

    def step(carry, xt):
        h, c = carry
        gates = xt @ wx + zb + h @ wh                 # (B, 4H), order [i,f,o,g]
        i = jax.nn.sigmoid(gates[:, :H])
        f = jax.nn.sigmoid(gates[:, H:2 * H])
        o = jax.nn.sigmoid(gates[:, 2 * H:3 * H])
        g = jnp.tanh(gates[:, 3 * H:])
        c_new = f * c + i * g
        h_new = o * jnp.tanh(c_new)
        return (h_new, c_new), h_new

    h0 = jnp.zeros((B, H), jnp.float32)
    c0 = jnp.zeros((B, H), jnp.float32)
    _, hs = jax.lax.scan(step, (h0, c0), jnp.transpose(x_emb, (1, 0, 2)))
    hs = jnp.transpose(hs, (1, 0, 2))                 # (B, T, H)
    return hs @ params["wout"] + params["bout"]


if __name__ == "__main__":
    # Small shapes consistent with Generator(vocab_size=64, z_size=32,
    # embedding_size=32, generator_hidden_size=32, n_class=None, generator_layers=1)
    B, T = 2, 8
    E, Z, H, V = 32, 32, 32, 64

    key = jax.random.PRNGKey(0)
    k_x, k_z, k_p = jax.random.split(key, 3)
    x_emb = jax.random.normal(k_x, (B, T, E), dtype=jnp.float32)
    z = jax.random.normal(k_z, (B, Z), dtype=jnp.float32)
    params = make_params(k_p, E, Z, H, V)

    # TODO(synk): n_class/y conditioning branch not exercised (forward called with
    # y=None, n_class=None); it would just extend the hoisted zb term with y @ Wy.

    out = jax.block_until_ready(generator_forward(x_emb, z, params))
    ref = jax.block_until_ready(reference_forward(x_emb, z, params))

    assert out.shape == (B, T, V)
    assert jnp.allclose(out, ref, atol=1e-4, rtol=1e-4), "mismatch vs pure-JAX LSTM reference"

    print("KERNEL_OK")
</pallas_src>

<mosaic_0001>
module attributes {stable_mosaic.version = 11 : i64} {
  func.func @lstm_gen_kernel(%arg0: i32, %arg1: i32, %arg2: i32, %arg3: memref<8x8x32xf32, #tpu.memory_space<vmem>>, %arg4: memref<8x512xf32, #tpu.memory_space<vmem>>, %arg5: memref<32x512xf32, #tpu.memory_space<vmem>>, %arg6: memref<128x512xf32, #tpu.memory_space<vmem>>, %arg7: memref<128x128xf32, #tpu.memory_space<vmem>>, %arg8: memref<1x128xf32, #tpu.memory_space<vmem>>, %arg9: memref<8x8x128xf32, #tpu.memory_space<vmem>>, %arg10: memref<8x128xf32, #tpu.memory_space<vmem>>, %arg11: memref<8x128xf32, #tpu.memory_space<vmem>>, %arg12: memref<8x8x512xf32, #tpu.memory_space<vmem>>, %arg13: memref<8x8x128xf32, #tpu.memory_space<vmem>>) attributes {dimension_semantics = [#tpu.dimension_semantics<parallel>, #tpu.dimension_semantics<arbitrary>, #tpu.dimension_semantics<arbitrary>], iteration_bounds = array<i64: 1, 1, 1>, scalar_prefetch = 0 : i64, scratch_operands = 4 : i64, tpu.core_type = #tpu.core_type<tc>, window_params = [{transform_indices = @transform_0, window_bounds = array<i64: 8, 8, 32>}, {transform_indices = @transform_1, window_bounds = array<i64: 8, 512>}, {pipeline_mode = #tpu.pipeline_mode<synchronous>, transform_indices = @transform_2, window_bounds = array<i64: 32, 512>}, {pipeline_mode = #tpu.pipeline_mode<synchronous>, transform_indices = @transform_3, window_bounds = array<i64: 128, 512>}, {transform_indices = @transform_4, window_bounds = array<i64: 128, 128>}, {transform_indices = @transform_5, window_bounds = array<i64: 1, 128>}, {transform_indices = @transform_6, window_bounds = array<i64: 8, 8, 128>}]} {
    %c0_i32 = arith.constant 0 : i32
    %0 = arith.cmpi eq, %arg2, %c0_i32 : i32
    %1 = arith.extui %0 : i1 to i32
    %c0_i32_0 = arith.constant 0 : i32
    %2 = arith.cmpi ne, %1, %c0_i32_0 : i32
    scf.if %2 {
      %c0_i32_10 = arith.constant 0 : i32
      %12 = arith.cmpi eq, %arg1, %c0_i32_10 : i32
      %13 = arith.extui %12 : i1 to i32
      %c0_i32_11 = arith.constant 0 : i32
      %14 = arith.cmpi ne, %13, %c0_i32_11 : i32
      scf.if %14 {
        %cst_96 = arith.constant 0.000000e+00 : f32
        %237 = vector.broadcast %cst_96 : f32 to vector<8x128xf32>
        %c0_97 = arith.constant 0 : index
        %c0_98 = arith.constant 0 : index
        %238 = vector.load %arg10[%c0_97, %c0_98] : memref<8x128xf32, #tpu.memory_space<vmem>>, vector<8x128xf32>
        tpu.vector_store %arg10[%c0_97, %c0_98], %237 {strides = array<i32>} : memref<8x128xf32, #tpu.memory_space<vmem>>, vector<8x128xf32>,
        %cst_99 = arith.constant 0.000000e+00 : f32
        %239 = vector.broadcast %cst_99 : f32 to vector<8x128xf32>
        %c0_100 = arith.constant 0 : index
        %c0_101 = arith.constant 0 : index
        %240 = vector.load %arg11[%c0_100, %c0_101] : memref<8x128xf32, #tpu.memory_space<vmem>>, vector<8x128xf32>
        tpu.vector_store %arg11[%c0_100, %c0_101], %239 {strides = array<i32>} : memref<8x128xf32, #tpu.memory_space<vmem>>, vector<8x128xf32>,
      } else {
      }
      %c0_12 = arith.constant 0 : index
      %c0_13 = arith.constant 0 : index
      %c0_14 = arith.constant 0 : index
      %15 = vector.load %arg3[%c0_12, %c0_13, %c0_14] : memref<8x8x32xf32, #tpu.memory_space<vmem>>, vector<8x8x32xf32>
      %16 = vector.shape_cast %15 : vector<8x8x32xf32> to vector<64x32xf32>
      %c0_15 = arith.constant 0 : index
      %c0_16 = arith.constant 0 : index
      %17 = vector.load %arg5[%c0_15, %c0_16] : memref<32x512xf32, #tpu.memory_space<vmem>>, vector<32x512xf32>
      %cst_17 = arith.constant dense<0.000000e+00> : vector<64x512xf32>
      %18 = tpu.matmul %16, %17, %cst_17 {dimension_numbers = #tpu.dot_dimension_numbers<[1], [0], [0], [1], [0, 0, 1, 1], [], []>} : vector<64x32xf32>, vector<32x512xf32>, vector<64x512xf32> -> vector<64x512xf32>
      %19 = vector.shape_cast %18 : vector<64x512xf32> to vector<8x8x512xf32>
      %c0_18 = arith.constant 0 : index
      %c0_19 = arith.constant 0 : index
      %20 = vector.load %arg4[%c0_18, %c0_19] : memref<8x512xf32, #tpu.memory_space<vmem>>, vector<8x512xf32>
      %21 = vector.shape_cast %20 : vector<8x512xf32> to vector<1x8x512xf32>
      %22 = vector.broadcast %21 : vector<1x8x512xf32> to vector<8x8x512xf32>
      %23 = arith.addf %19, %22 : vector<8x8x512xf32>
      %c0_20 = arith.constant 0 : index
      %c0_21 = arith.constant 0 : index
      %c0_22 = arith.constant 0 : index
      %24 = vector.load %arg12[%c0_20, %c0_21, %c0_22] : memref<8x8x512xf32, #tpu.memory_space<vmem>>, vector<8x8x512xf32>
      tpu.vector_store %arg12[%c0_20, %c0_21, %c0_22], %23 {strides = array<i32>} : memref<8x8x512xf32, #tpu.memory_space<vmem>>, vector<8x8x512xf32>,
      %c0_23 = arith.constant 0 : index
      %c0_24 = arith.constant 0 : index
      %25 = vector.load %arg10[%c0_23, %c0_24] : memref<8x128xf32, #tpu.memory_space<vmem>>, vector<8x128xf32>
      %c0_25 = arith.constant 0 : index
      %c0_26 = arith.constant 0 : index
      %26 = vector.load %arg11[%c0_25, %c0_26] : memref<8x128xf32, #tpu.memory_space<vmem>>, vector<8x128xf32>
      %c0_i32_27 = arith.constant 0 : i32
      %27 = arith.index_cast %c0_i32_27 : i32 to index
      %c0_28 = arith.constant 0 : index
      %c0_29 = arith.constant 0 : index
      %28 = vector.load %arg12[%27, %c0_28, %c0_29] : memref<8x8x512xf32, #tpu.memory_space<vmem>>, vector<1x8x512xf32>
      %29 = vector.shape_cast %28 : vector<1x8x512xf32> to vector<8x512xf32>
      %c0_30 = arith.constant 0 : index
      %c0_31 = arith.constant 0 : index
      %30 = vector.load %arg6[%c0_30, %c0_31] : memref<128x512xf32, #tpu.memory_space<vmem>>, vector<128x512xf32>
      %cst_32 = arith.constant dense<0.000000e+00> : vector<8x512xf32>
      %31 = tpu.matmul %25, %30, %cst_32 {dimension_numbers = #tpu.dot_dimension_numbers<[1], [0], [0], [1], [0, 0, 1, 1], [], []>} : vector<8x128xf32>, vector<128x512xf32>, vector<8x512xf32> -> vector<8x512xf32>
      %32 = arith.addf %29, %31 : vector<8x512xf32>
      %33 = vector.extract_strided_slice %32 {offsets = [0, 0], sizes = [8, 384], strides = [1, 1]} : vector<8x512xf32> to vector<8x384xf32>
      %34 = arith.negf %33 : vector<8x384xf32>
      %35 = math.exp %34 : vector<8x384xf32>
      %cst_33 = arith.constant 1.000000e+00 : f32
      %36 = vector.broadcast %cst_33 : f32 to vector<8x384xf32>
      %37 = arith.addf %36, %35 : vector<8x384xf32>
      %38 = arith.divf %36, %37 : vector<8x384xf32>
      %39 = vector.extract_strided_slice %32 {offsets = [0, 384], sizes = [8, 128], strides = [1, 1]} : vector<8x512xf32> to vector<8x128xf32>
      %40 = math.tanh %39 : vector<8x128xf32>
      %41 = vector.extract_strided_slice %38 {offsets = [0, 0], sizes = [8, 128], strides = [1, 1]} : vector<8x384xf32> to vector<8x128xf32>
      %42 = vector.extract_strided_slice %38 {offsets = [0, 128], sizes = [8, 128], strides = [1, 1]} : vector<8x384xf32> to vector<8x128xf32>
      %43 = vector.extract_strided_slice %38 {offsets = [0, 256], sizes = [8, 128], strides = [1, 1]} : vector<8x384xf32> to vector<8x128xf32>
      %44 = arith.mulf %42, %26 : vector<8x128xf32>
      %45 = arith.mulf %41, %40 : vector<8x128xf32>
      %46 = arith.addf %44, %45 : vector<8x128xf32>
      %47 = math.tanh %46 : vector<8x128xf32>
      %48 = arith.mulf %43, %47 : vector<8x128xf32>
      %49 = arith.index_cast %c0_i32_27 : i32 to index
      %c0_34 = arith.constant 0 : index
      %c0_35 = arith.constant 0 : index
      %50 = vector.load %arg13[%49, %c0_34, %c0_35] : memref<8x8x128xf32, #tpu.memory_space<vmem>>, vector<1x8x128xf32>
      %51 = vector.shape_cast %50 : vector<1x8x128xf32> to vector<8x128xf32>
      %52 = vector.shape_cast %48 : vector<8x128xf32> to vector<1x8x128xf32>
      tpu.vector_store %arg13[%49, %c0_34, %c0_35], %52 {strides = array<i32>} : memref<8x8x128xf32, #tpu.memory_space<vmem>>, vector<1x8x128xf32>,
      %c1_i32 = arith.constant 1 : i32
      %53 = arith.index_cast %c1_i32 : i32 to index
      %c0_36 = arith.constant 0 : index
      %c0_37 = arith.constant 0 : index
      %54 = vector.load %arg12[%53, %c0_36, %c0_37] : memref<8x8x512xf32, #tpu.memory_space<vmem>>, vector<1x8x512xf32>
      %55 = vector.shape_cast %54 : vector<1x8x512xf32> to vector<8x512xf32>
      %c0_38 = arith.constant 0 : index
      %c0_39 = arith.constant 0 : index
      %56 = vector.load %arg6[%c0_38, %c0_39] : memref<128x512xf32, #tpu.memory_space<vmem>>, vector<128x512xf32>
      %cst_40 = arith.constant dense<0.000000e+00> : vector<8x512xf32>
      %57 = tpu.matmul %48, %56, %cst_40 {dimension_numbers = #tpu.dot_dimension_numbers<[1], [0], [0], [1], [0, 0, 1, 1], [], []>} : vector<8x128xf32>, vector<128x512xf32>, vector<8x512xf32> -> vector<8x512xf32>
      %58 = arith.addf %55, %57 : vector<8x512xf32>
      %59 = vector.extract_strided_slice %58 {offsets = [0, 0], sizes = [8, 384], strides = [1, 1]} : vector<8x512xf32> to vector<8x384xf32>
      %60 = arith.negf %59 : vector<8x384xf32>
      %61 = math.exp %60 : vector<8x384xf32>
      %cst_41 = arith.constant 1.000000e+00 : f32
      %62 = vector.broadcast %cst_41 : f32 to vector<8x384xf32>
      %63 = arith.addf %62, %61 : vector<8x384xf32>
      %64 = arith.divf %62, %63 : vector<8x384xf32>
      %65 = vector.extract_strided_slice %58 {offsets = [0, 384], sizes = [8, 128], strides = [1, 1]} : vector<8x512xf32> to vector<8x128xf32>
      %66 = math.tanh %65 : vector<8x128xf32>
      %67 = vector.extract_strided_slice %64 {offsets = [0, 0], sizes = [8, 128], strides = [1, 1]} : vector<8x384xf32> to vector<8x128xf32>
      %68 = vector.extract_strided_slice %64 {offsets = [0, 128], sizes = [8, 128], strides = [1, 1]} : vector<8x384xf32> to vector<8x128xf32>
      %69 = vector.extract_strided_slice %64 {offsets = [0, 256], sizes = [8, 128], strides = [1, 1]} : vector<8x384xf32> to vector<8x128xf32>
      %70 = arith.mulf %68, %46 : vector<8x128xf32>
      %71 = arith.mulf %67, %66 : vector<8x128xf32>
      %72 = arith.addf %70, %71 : vector<8x128xf32>
      %73 = math.tanh %72 : vector<8x128xf32>
      %74 = arith.mulf %69, %73 : vector<8x128xf32>
      %75 = arith.index_cast %c1_i32 : i32 to index
      %c0_42 = arith.constant 0 : index
      %c0_43 = arith.constant 0 : index
      %76 = vector.load %arg13[%75, %c0_42, %c0_43] : memref<8x8x128xf32, #tpu.memory_space<vmem>>, vector<1x8x128xf32>
      %77 = vector.shape_cast %76 : vector<1x8x128xf32> to vector<8x128xf32>
      %78 = vector.shape_cast %74 : vector<8x128xf32> to vector<1x8x128xf32>
      tpu.vector_store %arg13[%75, %c0_42, %c0_43], %78 {strides = array<i32>} : memref<8x8x128xf32, #tpu.memory_space<vmem>>, vector<1x8x128xf32>,
      %c2_i32 = arith.constant 2 : i32
      %79 = arith.index_cast %c2_i32 : i32 to index
      %c0_44 = arith.constant 0 : index
      %c0_45 = arith.constant 0 : index
      %80 = vector.load %arg12[%79, %c0_44, %c0_45] : memref<8x8x512xf32, #tpu.memory_space<vmem>>, vector<1x8x512xf32>
      %81 = vector.shape_cast %80 : vector<1x8x512xf32> to vector<8x512xf32>
      %c0_46 = arith.constant 0 : index
      %c0_47 = arith.constant 0 : index
      %82 = vector.load %arg6[%c0_46, %c0_47] : memref<128x512xf32, #tpu.memory_space<vmem>>, vector<128x512xf32>
      %cst_48 = arith.constant dense<0.000000e+00> : vector<8x512xf32>
      %83 = tpu.matmul %74, %82, %cst_48 {dimension_numbers = #tpu.dot_dimension_numbers<[1], [0], [0], [1], [0, 0, 1, 1], [], []>} : vector<8x128xf32>, vector<128x512xf32>, vector<8x512xf32> -> vector<8x512xf32>
      %84 = arith.addf %81, %83 : vector<8x512xf32>
      %85 = vector.extract_strided_slice %84 {offsets = [0, 0], sizes = [8, 384], strides = [1, 1]} : vector<8x512xf32> to vector<8x384xf32>
      %86 = arith.negf %85 : vector<8x384xf32>
      %87 = math.exp %86 : vector<8x384xf32>
      %cst_49 = arith.constant 1.000000e+00 : f32
      %88 = vector.broadcast %cst_49 : f32 to vector<8x384xf32>
      %89 = arith.addf %88, %87 : vector<8x384xf32>
      %90 = arith.divf %88, %89 : vector<8x384xf32>
      %91 = vector.extract_strided_slice %84 {offsets = [0, 384], sizes = [8, 128], strides = [1, 1]} : vector<8x512xf32> to vector<8x128xf32>
      %92 = math.tanh %91 : vector<8x128xf32>
      %93 = vector.extract_strided_slice %90 {offsets = [0, 0], sizes = [8, 128], strides = [1, 1]} : vector<8x384xf32> to vector<8x128xf32>
      %94 = vector.extract_strided_slice %90 {offsets = [0, 128], sizes = [8, 128], strides = [1, 1]} : vector<8x384xf32> to vector<8x128xf32>
      %95 = vector.extract_strided_slice %90 {offsets = [0, 256], sizes = [8, 128], strides = [1, 1]} : vector<8x384xf32> to vector<8x128xf32>
      %96 = arith.mulf %94, %72 : vector<8x128xf32>
      %97 = arith.mulf %93, %92 : vector<8x128xf32>
      %98 = arith.addf %96, %97 : vector<8x128xf32>
      %99 = math.tanh %98 : vector<8x128xf32>
      %100 = arith.mulf %95, %99 : vector<8x128xf32>
      %101 = arith.index_cast %c2_i32 : i32 to index
      %c0_50 = arith.constant 0 : index
      %c0_51 = arith.constant 0 : index
      %102 = vector.load %arg13[%101, %c0_50, %c0_51] : memref<8x8x128xf32, #tpu.memory_space<vmem>>, vector<1x8x128xf32>
      %103 = vector.shape_cast %102 : vector<1x8x128xf32> to vector<8x128xf32>
      %104 = vector.shape_cast %100 : vector<8x128xf32> to vector<1x8x128xf32>
      tpu.vector_store %arg13[%101, %c0_50, %c0_51], %104 {strides = array<i32>} : memref<8x8x128xf32, #tpu.memory_space<vmem>>, vector<1x8x128xf32>,
      %c3_i32 = arith.constant 3 : i32
      %105 = arith.index_cast %c3_i32 : i32 to index
      %c0_52 = arith.constant 0 : index
      %c0_53 = arith.constant 0 : index
      %106 = vector.load %arg12[%105, %c0_52, %c0_53] : memref<8x8x512xf32, #tpu.memory_space<vmem>>, vector<1x8x512xf32>
      %107 = vector.shape_cast %106 : vector<1x8x512xf32> to vector<8x512xf32>
      %c0_54 = arith.constant 0 : index
      %c0_55 = arith.constant 0 : index
      %108 = vector.load %arg6[%c0_54, %c0_55] : memref<128x512xf32, #tpu.memory_space<vmem>>, vector<128x512xf32>
      %cst_56 = arith.constant dense<0.000000e+00> : vector<8x512xf32>
      %109 = tpu.matmul %100, %108, %cst_56 {dimension_numbers = #tpu.dot_dimension_numbers<[1], [0], [0], [1], [0, 0, 1, 1], [], []>} : vector<8x128xf32>, vector<128x512xf32>, vector<8x512xf32> -> vector<8x512xf32>
      %110 = arith.addf %107, %109 : vector<8x512xf32>
      %111 = vector.extract_strided_slice %110 {offsets = [0, 0], sizes = [8, 384], strides = [1, 1]} : vector<8x512xf32> to vector<8x384xf32>
      %112 = arith.negf %111 : vector<8x384xf32>
      %113 = math.exp %112 : vector<8x384xf32>
      %cst_57 = arith.constant 1.000000e+00 : f32
      %114 = vector.broadcast %cst_57 : f32 to vector<8x384xf32>
      %115 = arith.addf %114, %113 : vector<8x384xf32>
      %116 = arith.divf %114, %115 : vector<8x384xf32>
      %117 = vector.extract_strided_slice %110 {offsets = [0, 384], sizes = [8, 128], strides = [1, 1]} : vector<8x512xf32> to vector<8x128xf32>
      %118 = math.tanh %117 : vector<8x128xf32>
      %119 = vector.extract_strided_slice %116 {offsets = [0, 0], sizes = [8, 128], strides = [1, 1]} : vector<8x384xf32> to vector<8x128xf32>
      %120 = vector.extract_strided_slice %116 {offsets = [0, 128], sizes = [8, 128], strides = [1, 1]} : vector<8x384xf32> to vector<8x128xf32>
      %121 = vector.extract_strided_slice %116 {offsets = [0, 256], sizes = [8, 128], strides = [1, 1]} : vector<8x384xf32> to vector<8x128xf32>
      %122 = arith.mulf %120, %98 : vector<8x128xf32>
      %123 = arith.mulf %119, %118 : vector<8x128xf32>
      %124 = arith.addf %122, %123 : vector<8x128xf32>
      %125 = math.tanh %124 : vector<8x128xf32>
      %126 = arith.mulf %121, %125 : vector<8x128xf32>
      %127 = arith.index_cast %c3_i32 : i32 to index
      %c0_58 = arith.constant 0 : index
      %c0_59 = arith.constant 0 : index
      %128 = vector.load %arg13[%127, %c0_58, %c0_59] : memref<8x8x128xf32, #tpu.memory_space<vmem>>, vector<1x8x128xf32>
      %129 = vector.shape_cast %128 : vector<1x8x128xf32> to vector<8x128xf32>
      %130 = vector.shape_cast %126 : vector<8x128xf32> to vector<1x8x128xf32>
      tpu.vector_store %arg13[%127, %c0_58, %c0_59], %130 {strides = array<i32>} : memref<8x8x128xf32, #tpu.memory_space<vmem>>, vector<1x8x128xf32>,
      %c4_i32 = arith.constant 4 : i32
      %131 = arith.index_cast %c4_i32 : i32 to index
      %c0_60 = arith.constant 0 : index
      %c0_61 = arith.constant 0 : index
      %132 = vector.load %arg12[%131, %c0_60, %c0_61] : memref<8x8x512xf32, #tpu.memory_space<vmem>>, vector<1x8x512xf32>
      %133 = vector.shape_cast %132 : vector<1x8x512xf32> to vector<8x512xf32>
      %c0_62 = arith.constant 0 : index
      %c0_63 = arith.constant 0 : index
      %134 = vector.load %arg6[%c0_62, %c0_63] : memref<128x512xf32, #tpu.memory_space<vmem>>, vector<128x512xf32>
      %cst_64 = arith.constant dense<0.000000e+00> : vector<8x512xf32>
      %135 = tpu.matmul %126, %134, %cst_64 {dimension_numbers = #tpu.dot_dimension_numbers<[1], [0], [0], [1], [0, 0, 1, 1], [], []>} : vector<8x128xf32>, vector<128x512xf32>, vector<8x512xf32> -> vector<8x512xf32>
      %136 = arith.addf %133, %135 : vector<8x512xf32>
      %137 = vector.extract_strided_slice %136 {offsets = [0, 0], sizes = [8, 384], strides = [1, 1]} : vector<8x512xf32> to vector<8x384xf32>
      %138 = arith.negf %137 : vector<8x384xf32>
      %139 = math.exp %138 : vector<8x384xf32>
      %cst_65 = arith.constant 1.000000e+00 : f32
      %140 = vector.broadcast %cst_65 : f32 to vector<8x384xf32>
      %141 = arith.addf %140, %139 : vector<8x384xf32>
      %142 = arith.divf %140, %141 : vector<8x384xf32>
      %143 = vector.extract_strided_slice %136 {offsets = [0, 384], sizes = [8, 128], strides = [1, 1]} : vector<8x512xf32> to vector<8x128xf32>
      %144 = math.tanh %143 : vector<8x128xf32>
      %145 = vector.extract_strided_slice %142 {offsets = [0, 0], sizes = [8, 128], strides = [1, 1]} : vector<8x384xf32> to vector<8x128xf32>
      %146 = vector.extract_strided_slice %142 {offsets = [0, 128], sizes = [8, 128], strides = [1, 1]} : vector<8x384xf32> to vector<8x128xf32>
      %147 = vector.extract_strided_slice %142 {offsets = [0, 256], sizes = [8, 128], strides = [1, 1]} : vector<8x384xf32> to vector<8x128xf32>
      %148 = arith.mulf %146, %124 : vector<8x128xf32>
      %149 = arith.mulf %145, %144 : vector<8x128xf32>
      %150 = arith.addf %148, %149 : vector<8x128xf32>
      %151 = math.tanh %150 : vector<8x128xf32>
      %152 = arith.mulf %147, %151 : vector<8x128xf32>
      %153 = arith.index_cast %c4_i32 : i32 to index
      %c0_66 = arith.constant 0 : index
      %c0_67 = arith.constant 0 : index
      %154 = vector.load %arg13[%153, %c0_66, %c0_67] : memref<8x8x128xf32, #tpu.memory_space<vmem>>, vector<1x8x128xf32>
      %155 = vector.shape_cast %154 : vector<1x8x128xf32> to vector<8x128xf32>
      %156 = vector.shape_cast %152 : vector<8x128xf32> to vector<1x8x128xf32>
      tpu.vector_store %arg13[%153, %c0_66, %c0_67], %156 {strides = array<i32>} : memref<8x8x128xf32, #tpu.memory_space<vmem>>, vector<1x8x128xf32>,
      %c5_i32 = arith.constant 5 : i32
      %157 = arith.index_cast %c5_i32 : i32 to index
      %c0_68 = arith.constant 0 : index
      %c0_69 = arith.constant 0 : index
      %158 = vector.load %arg12[%157, %c0_68, %c0_69] : memref<8x8x512xf32, #tpu.memory_space<vmem>>, vector<1x8x512xf32>
      %159 = vector.shape_cast %158 : vector<1x8x512xf32> to vector<8x512xf32>
      %c0_70 = arith.constant 0 : index
      %c0_71 = arith.constant 0 : index
      %160 = vector.load %arg6[%c0_70, %c0_71] : memref<128x512xf32, #tpu.memory_space<vmem>>, vector<128x512xf32>
      %cst_72 = arith.constant dense<0.000000e+00> : vector<8x512xf32>
      %161 = tpu.matmul %152, %160, %cst_72 {dimension_numbers = #tpu.dot_dimension_numbers<[1], [0], [0], [1], [0, 0, 1, 1], [], []>} : vector<8x128xf32>, vector<128x512xf32>, vector<8x512xf32> -> vector<8x512xf32>
      %162 = arith.addf %159, %161 : vector<8x512xf32>
      %163 = vector.extract_strided_slice %162 {offsets = [0, 0], sizes = [8, 384], strides = [1, 1]} : vector<8x512xf32> to vector<8x384xf32>
      %164 = arith.negf %163 : vector<8x384xf32>
      %165 = math.exp %164 : vector<8x384xf32>
      %cst_73 = arith.constant 1.000000e+00 : f32
      %166 = vector.broadcast %cst_73 : f32 to vector<8x384xf32>
      %167 = arith.addf %166, %165 : vector<8x384xf32>
      %168 = arith.divf %166, %167 : vector<8x384xf32>
      %169 = vector.extract_strided_slice %162 {offsets = [0, 384], sizes = [8, 128], strides = [1, 1]} : vector<8x512xf32> to vector<8x128xf32>
      %170 = math.tanh %169 : vector<8x128xf32>
      %171 = vector.extract_strided_slice %168 {offsets = [0, 0], sizes = [8, 128], strides = [1, 1]} : vector<8x384xf32> to vector<8x128xf32>
      %172 = vector.extract_strided_slice %168 {offsets = [0, 128], sizes = [8, 128], strides = [1, 1]} : vector<8x384xf32> to vector<8x128xf32>
      %173 = vector.extract_strided_slice %168 {offsets = [0, 256], sizes = [8, 128], strides = [1, 1]} : vector<8x384xf32> to vector<8x128xf32>
      %174 = arith.mulf %172, %150 : vector<8x128xf32>
      %175 = arith.mulf %171, %170 : vector<8x128xf32>
      %176 = arith.addf %174, %175 : vector<8x128xf32>
      %177 = math.tanh %176 : vector<8x128xf32>
      %178 = arith.mulf %173, %177 : vector<8x128xf32>
      %179 = arith.index_cast %c5_i32 : i32 to index
      %c0_74 = arith.constant 0 : index
      %c0_75 = arith.constant 0 : index
      %180 = vector.load %arg13[%179, %c0_74, %c0_75] : memref<8x8x128xf32, #tpu.memory_space<vmem>>, vector<1x8x128xf32>
      %181 = vector.shape_cast %180 : vector<1x8x128xf32> to vector<8x128xf32>
      %182 = vector.shape_cast %178 : vector<8x128xf32> to vector<1x8x128xf32>
      tpu.vector_store %arg13[%179, %c0_74, %c0_75], %182 {strides = array<i32>} : memref<8x8x128xf32, #tpu.memory_space<vmem>>, vector<1x8x128xf32>,
      %c6_i32 = arith.constant 6 : i32
      %183 = arith.index_cast %c6_i32 : i32 to index
      %c0_76 = arith.constant 0 : index
      %c0_77 = arith.constant 0 : index
      %184 = vector.load %arg12[%183, %c0_76, %c0_77] : memref<8x8x512xf32, #tpu.memory_space<vmem>>, vector<1x8x512xf32>
      %185 = vector.shape_cast %184 : vector<1x8x512xf32> to vector<8x512xf32>
      %c0_78 = arith.constant 0 : index
      %c0_79 = arith.constant 0 : index
      %186 = vector.load %arg6[%c0_78, %c0_79] : memref<128x512xf32, #tpu.memory_space<vmem>>, vector<128x512xf32>
      %cst_80 = arith.constant dense<0.000000e+00> : vector<8x512xf32>
      %187 = tpu.matmul %178, %186, %cst_80 {dimension_numbers = #tpu.dot_dimension_numbers<[1], [0], [0], [1], [0, 0, 1, 1], [], []>} : vector<8x128xf32>, vector<128x512xf32>, vector<8x512xf32> -> vector<8x512xf32>
      %188 = arith.addf %185, %187 : vector<8x512xf32>
      %189 = vector.extract_strided_slice %188 {offsets = [0, 0], sizes = [8, 384], strides = [1, 1]} : vector<8x512xf32> to vector<8x384xf32>
      %190 = arith.negf %189 : vector<8x384xf32>
      %191 = math.exp %190 : vector<8x384xf32>
      %cst_81 = arith.constant 1.000000e+00 : f32
      %192 = vector.broadcast %cst_81 : f32 to vector<8x384xf32>
      %193 = arith.addf %192, %191 : vector<8x384xf32>
      %194 = arith.divf %192, %193 : vector<8x384xf32>
      %195 = vector.extract_strided_slice %188 {offsets = [0, 384], sizes = [8, 128], strides = [1, 1]} : vector<8x512xf32> to vector<8x128xf32>
      %196 = math.tanh %195 : vector<8x128xf32>
      %197 = vector.extract_strided_slice %194 {offsets = [0, 0], sizes = [8, 128], strides = [1, 1]} : vector<8x384xf32> to vector<8x128xf32>
      %198 = vector.extract_strided_slice %194 {offsets = [0, 128], sizes = [8, 128], strides = [1, 1]} : vector<8x384xf32> to vector<8x128xf32>
      %199 = vector.extract_strided_slice %194 {offsets = [0, 256], sizes = [8, 128], strides = [1, 1]} : vector<8x384xf32> to vector<8x128xf32>
      %200 = arith.mulf %198, %176 : vector<8x128xf32>
      %201 = arith.mulf %197, %196 : vector<8x128xf32>
      %202 = arith.addf %200, %201 : vector<8x128xf32>
      %203 = math.tanh %202 : vector<8x128xf32>
      %204 = arith.mulf %199, %203 : vector<8x128xf32>
      %205 = arith.index_cast %c6_i32 : i32 to index
      %c0_82 = arith.constant 0 : index
      %c0_83 = arith.constant 0 : index
      %206 = vector.load %arg13[%205, %c0_82, %c0_83] : memref<8x8x128xf32, #tpu.memory_space<vmem>>, vector<1x8x128xf32>
      %207 = vector.shape_cast %206 : vector<1x8x128xf32> to vector<8x128xf32>
      %208 = vector.shape_cast %204 : vector<8x128xf32> to vector<1x8x128xf32>
      tpu.vector_store %arg13[%205, %c0_82, %c0_83], %208 {strides = array<i32>} : memref<8x8x128xf32, #tpu.memory_space<vmem>>, vector<1x8x128xf32>,
      %c7_i32 = arith.constant 7 : i32
      %209 = arith.index_cast %c7_i32 : i32 to index
      %c0_84 = arith.constant 0 : index
      %c0_85 = arith.constant 0 : index
      %210 = vector.load %arg12[%209, %c0_84, %c0_85] : memref<8x8x512xf32, #tpu.memory_space<vmem>>, vector<1x8x512xf32>
      %211 = vector.shape_cast %210 : vector<1x8x512xf32> to vector<8x512xf32>
      %c0_86 = arith.constant 0 : index
      %c0_87 = arith.constant 0 : index
      %212 = vector.load %arg6[%c0_86, %c0_87] : memref<128x512xf32, #tpu.memory_space<vmem>>, vector<128x512xf32>
      %cst_88 = arith.constant dense<0.000000e+00> : vector<8x512xf32>
      %213 = tpu.matmul %204, %212, %cst_88 {dimension_numbers = #tpu.dot_dimension_numbers<[1], [0], [0], [1], [0, 0, 1, 1], [], []>} : vector<8x128xf32>, vector<128x512xf32>, vector<8x512xf32> -> vector<8x512xf32>
      %214 = arith.addf %211, %213 : vector<8x512xf32>
      %215 = vector.extract_strided_slice %214 {offsets = [0, 0], sizes = [8, 384], strides = [1, 1]} : vector<8x512xf32> to vector<8x384xf32>
      %216 = arith.negf %215 : vector<8x384xf32>
      %217 = math.exp %216 : vector<8x384xf32>
      %cst_89 = arith.constant 1.000000e+00 : f32
      %218 = vector.broadcast %cst_89 : f32 to vector<8x384xf32>
      %219 = arith.addf %218, %217 : vector<8x384xf32>
      %220 = arith.divf %218, %219 : vector<8x384xf32>
      %221 = vector.extract_strided_slice %214 {offsets = [0, 384], sizes = [8, 128], strides = [1, 1]} : vector<8x512xf32> to vector<8x128xf32>
      %222 = math.tanh %221 : vector<8x128xf32>
      %223 = vector.extract_strided_slice %220 {offsets = [0, 0], sizes = [8, 128], strides = [1, 1]} : vector<8x384xf32> to vector<8x128xf32>
      %224 = vector.extract_strided_slice %220 {offsets = [0, 128], sizes = [8, 128], strides = [1, 1]} : vector<8x384xf32> to vector<8x128xf32>
      %225 = vector.extract_strided_slice %220 {offsets = [0, 256], sizes = [8, 128], strides = [1, 1]} : vector<8x384xf32> to vector<8x128xf32>
      %226 = arith.mulf %224, %202 : vector<8x128xf32>
      %227 = arith.mulf %223, %222 : vector<8x128xf32>
      %228 = arith.addf %226, %227 : vector<8x128xf32>
      %229 = math.tanh %228 : vector<8x128xf32>
      %230 = arith.mulf %225, %229 : vector<8x128xf32>
      %231 = arith.index_cast %c7_i32 : i32 to index
      %c0_90 = arith.constant 0 : index
      %c0_91 = arith.constant 0 : index
      %232 = vector.load %arg13[%231, %c0_90, %c0_91] : memref<8x8x128xf32, #tpu.memory_space<vmem>>, vector<1x8x128xf32>
      %233 = vector.shape_cast %232 : vector<1x8x128xf32> to vector<8x128xf32>
      %234 = vector.shape_cast %230 : vector<8x128xf32> to vector<1x8x128xf32>
      tpu.vector_store %arg13[%231, %c0_90, %c0_91], %234 {strides = array<i32>} : memref<8x8x128xf32, #tpu.memory_space<vmem>>, vector<1x8x128xf32>,
      %c8_i32 = arith.constant 8 : i32
      %c0_92 = arith.constant 0 : index
      %c0_93 = arith.constant 0 : index
      %235 = vector.load %arg10[%c0_92, %c0_93] : memref<8x128xf32, #tpu.memory_space<vmem>>, vector<8x128xf32>
      tpu.vector_store %arg10[%c0_92, %c0_93], %230 {strides = array<i32>} : memref<8x128xf32, #tpu.memory_space<vmem>>, vector<8x128xf32>,
      %c0_94 = arith.constant 0 : index
      %c0_95 = arith.constant 0 : index
      %236 = vector.load %arg11[%c0_94, %c0_95] : memref<8x128xf32, #tpu.memory_space<vmem>>, vector<8x128xf32>
      tpu.vector_store %arg11[%c0_94, %c0_95], %228 {strides = array<i32>} : memref<8x128xf32, #tpu.memory_space<vmem>>, vector<8x128xf32>,
    } else {
    }
    %c0 = arith.constant 0 : index
    %c0_1 = arith.constant 0 : index
    %c0_2 = arith.constant 0 : index
    %3 = vector.load %arg13[%c0, %c0_1, %c0_2] : memref<8x8x128xf32, #tpu.memory_space<vmem>>, vector<8x8x128xf32>
    %4 = vector.shape_cast %3 : vector<8x8x128xf32> to vector<64x128xf32>
    %c0_3 = arith.constant 0 : index
    %c0_4 = arith.constant 0 : index
    %5 = vector.load %arg7[%c0_3, %c0_4] : memref<128x128xf32, #tpu.memory_space<vmem>>, vector<128x128xf32>
    %cst = arith.constant dense<0.000000e+00> : vector<64x128xf32>
    %6 = tpu.matmul %4, %5, %cst {dimension_numbers = #tpu.dot_dimension_numbers<[1], [0], [0], [1], [0, 0, 1, 1], [], []>} : vector<64x128xf32>, vector<128x128xf32>, vector<64x128xf32> -> vector<64x128xf32>
    %c0_5 = arith.constant 0 : index
    %c0_6 = arith.constant 0 : index
    %7 = vector.load %arg8[%c0_5, %c0_6] : memref<1x128xf32, #tpu.memory_space<vmem>>, vector<1x128xf32>
    %8 = vector.broadcast %7 : vector<1x128xf32> to vector<64x128xf32>
    %9 = arith.addf %6, %8 : vector<64x128xf32>
    %10 = vector.shape_cast %9 : vector<64x128xf32> to vector<8x8x128xf32>
    %c0_7 = arith.constant 0 : index
    %c0_8 = arith.constant 0 : index
    %c0_9 = arith.constant 0 : index
    %11 = vector.load %arg9[%c0_7, %c0_8, %c0_9] : memref<8x8x128xf32, #tpu.memory_space<vmem>>, vector<8x8x128xf32>
    tpu.vector_store %arg9[%c0_7, %c0_8, %c0_9], %10 {strides = array<i32>} : memref<8x8x128xf32, #tpu.memory_space<vmem>>, vector<8x8x128xf32>,
    return
  }
  func.func @transform_0(%arg0: i32, %arg1: i32, %arg2: i32) -> (i32, i32, i32) {
    %c0_i32 = arith.constant 0 : i32
    %c0_i32_0 = arith.constant 0 : i32
    return %arg1, %arg0, %c0_i32 : i32, i32, i32
  }
  func.func @transform_1(%arg0: i32, %arg1: i32, %arg2: i32) -> (i32, i32) {
    %c0_i32 = arith.constant 0 : i32
    %c0_i32_0 = arith.constant 0 : i32
    return %arg0, %c0_i32 : i32, i32
  }
  func.func @transform_2(%arg0: i32, %arg1: i32, %arg2: i32) -> (i32, i32) {
    %c0_i32 = arith.constant 0 : i32
    %c0_i32_0 = arith.constant 0 : i32
    %c0_i32_1 = arith.constant 0 : i32
    return %c0_i32, %c0_i32_0 : i32, i32
  }
  func.func @transform_3(%arg0: i32, %arg1: i32, %arg2: i32) -> (i32, i32) {
    %c0_i32 = arith.constant 0 : i32
    %c0_i32_0 = arith.constant 0 : i32
    %c0_i32_1 = arith.constant 0 : i32
    return %c0_i32, %c0_i32_0 : i32, i32
  }
  func.func @transform_4(%arg0: i32, %arg1: i32, %arg2: i32) -> (i32, i32) {
    %c0_i32 = arith.constant 0 : i32
    %c0_i32_0 = arith.constant 0 : i32
    return %c0_i32, %arg2 : i32, i32
  }
  func.func @transform_5(%arg0: i32, %arg1: i32, %arg2: i32) -> (i32, i32) {
    %c0_i32 = arith.constant 0 : i32
    %c0_i32_0 = arith.constant 0 : i32
    return %c0_i32, %arg2 : i32, i32
  }
  func.func @transform_6(%arg0: i32, %arg1: i32, %arg2: i32) -> (i32, i32, i32) {
    %c0_i32 = arith.constant 0 : i32
    return %arg1, %arg0, %arg2 : i32, i32, i32
  }
}

</mosaic_0001>

<llo_original>
// kernel: tpu_custom_call.1
$region0: #{tpu_custom_call.1}
  #allocation0 [shape = 'u32[]', space=smem, size = 0x4, offset = 0x4, fixed_abs, tag = 'smem constant byte address 0x4 - core index']
  #allocation1 [shape = 'u32[144,128]{1,0:T(1,128)}', space=vmem, size = 0x12000, scoped, tag = 'internal scratch']
  #allocation2 [shape = 'f32[8,128]{1,0:T(8,128)}', space=vmem, size = 0x1000, scoped, tag = 'scratch operand']
  #allocation3 [shape = 'f32[8,128]{1,0:T(8,128)}', space=vmem, size = 0x1000, scoped, tag = 'scratch operand']
  #allocation4 [shape = 'f32[8,8,512]{2,1,0:T(8,128)}', space=vmem, size = 0x20000, scoped, tag = 'scratch operand']
  #allocation5 [shape = 'f32[8,8,128]{2,1,0:T(8,128)}', space=vmem, size = 0x8000, scoped, tag = 'scratch operand']
  %s0 = inlined_call_operand.hbm [shape: f32[8,8,32], index: 0, kind: input, shape index: {}]
  %s1 = inlined_call_operand.hbm [shape: f32[8,512], index: 1, kind: input, shape index: {}]
  %s2 = inlined_call_operand.hbm [shape: f32[32,512], index: 2, kind: input, shape index: {}]
  %s3 = inlined_call_operand.hbm [shape: f32[128,512], index: 3, kind: input, shape index: {}]
  %s4 = inlined_call_operand.hbm [shape: f32[128,128], index: 4, kind: input, shape index: {}]
  %s5 = inlined_call_operand.vmem [shape: f32[1,128], index: 5, kind: input, shape index: {}]
  %s6 = inlined_call_operand.hbm [shape: f32[8,8,128], index: 6, kind: output, shape index: {}]
  %s7 = sld [smem:[#allocation0]]
  $region62: #{tpu_custom_call.1} parent=0
    _
  %s9 = ssub.s32 1, %s7
  %s10 = scalar_select 0, %s9, %s7
  $region1: #{tpu_custom_call.1} parent=0
    #allocation6 [shape = 'u8[32768]{0}', space=vmem, size = 0x8000, scoped, tag = 'input window, operand 0, single buffered']
    #allocation7 [shape = 's32[1]{0}', space=sflag, size = 0x4, scoped, tag = 'scoped memory for tpu_custom_call.1']
    #allocation8 [shape = 's32[1]{0}', space=sflag, size = 0x4, scoped, tag = 'scoped memory for tpu_custom_call.1']
    #allocation9 [shape = 'u8[16384]{0}', space=vmem, size = 0x4000, scoped, tag = 'input window, operand 1, single buffered']
    #allocation10 [shape = 's32[1]{0}', space=sflag, size = 0x4, scoped, tag = 'scoped memory for tpu_custom_call.1']
    #allocation11 [shape = 'u8[65536]{0}', space=vmem, size = 0x10000, scoped, tag = 'input window, operand 2, single buffered']
    #allocation12 [shape = 'u8[262144]{0}', space=vmem, size = 0x40000, scoped, tag = 'input window, operand 3, single buffered']
    #allocation13 [shape = 's32[1]{0}', space=sflag, size = 0x4, scoped, tag = 'scoped memory for tpu_custom_call.1']
    #allocation14 [shape = 'u8[65536]{0}', space=vmem, size = 0x10000, scoped, tag = 'input window, operand 4, single buffered']
    #allocation15 [shape = 'u8[32768]{0}', space=vmem, size = 0x8000, scoped, tag = 'output window, operand 0, single buffered']
    %11 = vsyncpa [#allocation7], 0
    %12 = vsyncpa [#allocation10], 0
    %13 = vsyncpa [#allocation13], 0
    %14 = vsyncpa [#allocation8], 0
    // Predicated region
    $region2: #{tpu_custom_call.1} parent=1 // pred_check
      _
    $region3: #{tpu_custom_call.1} parent=1 // pred_check_branch
      %16 = sbr.rel (0) target = $region5
    $region4: #{tpu_custom_call.1} parent=1 // pred_region
      %s18 = ssub.s32 1024, 1024
      %19 = vsyncadd [#allocation7], %s18
      %s20 = sshll.u32 [#allocation6], 4
      %s21 = int_to_ptr.vmem [resolvable:$true] %s20
      %26 = dma.hbm_to_vmem [thread:$0]  %s0, 1024, %s21, [#allocation7], 128, 128, 8
    $region5: #{tpu_custom_call.1} parent=1 // pred_fallthru
      _
    // Predicated region
    $region6: #{tpu_custom_call.1} parent=1 // pred_check
      _
    $region7: #{tpu_custom_call.1} parent=1 // pred_check_branch
      %28 = sbr.rel (0) target = $region9
    $region8: #{tpu_custom_call.1} parent=1 // pred_region
      %s30 = ssub.s32 512, 512
      %31 = vsyncadd [#allocation10], %s30
      %s33 = sshll.u32 [#allocation9], 4
      %s34 = int_to_ptr.vmem [resolvable:$true] %s33
      %36 = dma.hbm_to_vmem [thread:$0]  %s1, 512, %s34, [#allocation10]
    $region9: #{tpu_custom_call.1} parent=1 // pred_fallthru
      _
    // Predicated region
    $region10: #{tpu_custom_call.1} parent=1 // pred_check
      _
    $region11: #{tpu_custom_call.1} parent=1 // pred_check_branch
      %38 = sbr.rel (0) target = $region13
    $region12: #{tpu_custom_call.1} parent=1 // pred_region
      %s40 = ssub.s32 2048, 2048
      %41 = vsyncadd [#allocation10], %s40
      %s42 = sshll.u32 [#allocation11], 4
      %s43 = int_to_ptr.vmem [resolvable:$true] %s42
      %48 = dma.hbm_to_vmem [thread:$0]  %s2, 2048, %s43, [#allocation10], 512, 512, 32
    $region13: #{tpu_custom_call.1} parent=1 // pred_fallthru
      _
    // Predicated region
    $region14: #{tpu_custom_call.1} parent=1 // pred_check
      _
    $region15: #{tpu_custom_call.1} parent=1 // pred_check_branch
      %50 = sbr.rel (0) target = $region17
    $region16: #{tpu_custom_call.1} parent=1 // pred_region
      %s52 = ssub.s32 8192, 8192
      %53 = vsyncadd [#allocation13], %s52
      %s54 = sshll.u32 [#allocation12], 4
      %s55 = int_to_ptr.vmem [resolvable:$true] %s54
      %60 = dma.hbm_to_vmem [thread:$0]  %s3, 8192, %s55, [#allocation13], 512, 512, 32
    $region17: #{tpu_custom_call.1} parent=1 // pred_fallthru
      _
    // Predicated region
    $region18: #{tpu_custom_call.1} parent=1 // pred_check
      _
    $region19: #{tpu_custom_call.1} parent=1 // pred_check_branch
      %62 = sbr.rel (0) target = $region21
    $region20: #{tpu_custom_call.1} parent=1 // pred_region
      %s64 = ssub.s32 2048, 2048
      %65 = vsyncadd [#allocation13], %s64
      %s66 = sshll.u32 [#allocation14], 4
      %s67 = int_to_ptr.vmem [resolvable:$true] %s66
      %72 = dma.hbm_to_vmem [thread:$0]  %s4, 2048, %s67, [#allocation13], 128, 128, 8
    $region21: #{tpu_custom_call.1} parent=1 // pred_fallthru
      _
    // Predicated region
    $region22: #{tpu_custom_call.1} parent=1 // pred_check
      _
    $region23: #{tpu_custom_call.1} parent=1 // pred_check_branch
      %74 = sbr.rel (0) target = $region25
    $region24: #{tpu_custom_call.1} parent=1 // pred_region
      _
    $region25: #{tpu_custom_call.1} parent=1 // pred_fallthru
      _
    // Predicated region
    $region26: #{tpu_custom_call.1} parent=1 // pred_check
      _
    $region27: #{tpu_custom_call.1} parent=1 // pred_check_branch
      %76 = sbr.rel (0) target = $region29
    $region28: #{tpu_custom_call.1} parent=1 // pred_region
      %77 = dma.done [#allocation7], 1024
    $region29: #{tpu_custom_call.1} parent=1 // pred_fallthru
      _
    // Predicated region
    $region30: #{tpu_custom_call.1} parent=1 // pred_check
      _
    $region31: #{tpu_custom_call.1} parent=1 // pred_check_branch
      %79 = sbr.rel (0) target = $region33
    $region32: #{tpu_custom_call.1} parent=1 // pred_region
      %80 = dma.done [#allocation10], 512
    $region33: #{tpu_custom_call.1} parent=1 // pred_fallthru
      _
    // Predicated region
    $region34: #{tpu_custom_call.1} parent=1 // pred_check
      _
    $region35: #{tpu_custom_call.1} parent=1 // pred_check_branch
      %82 = sbr.rel (0) target = $region37
    $region36: #{tpu_custom_call.1} parent=1 // pred_region
      %83 = dma.done [#allocation10], 2048
    $region37: #{tpu_custom_call.1} parent=1 // pred_fallthru
      _
    // Predicated region
    $region38: #{tpu_custom_call.1} parent=1 // pred_check
      _
    $region39: #{tpu_custom_call.1} parent=1 // pred_check_branch
      %85 = sbr.rel (0) target = $region41
    $region40: #{tpu_custom_call.1} parent=1 // pred_region
      %86 = dma.done [#allocation13], 8192
    $region41: #{tpu_custom_call.1} parent=1 // pred_fallthru
      _
    // Predicated region
    $region42: #{tpu_custom_call.1} parent=1 // pred_check
      _
    $region43: #{tpu_custom_call.1} parent=1 // pred_check_branch
      %88 = sbr.rel (0) target = $region45
    $region44: #{tpu_custom_call.1} parent=1 // pred_region
      %89 = dma.done [#allocation13], 2048
    $region45: #{tpu_custom_call.1} parent=1 // pred_fallthru
      _
    %p90 = scmp.eq.s32.totalorder 0, 0
    // Predicated region
    $region46: #{tpu_custom_call.1} parent=1 // pred_check
      %p91 = pneg %p90
    $region47: #{tpu_custom_call.1} parent=1 // pred_check_branch
      %93 = sbr.rel (%p91) target = $region49
    $region48: #{tpu_custom_call.1} parent=1 // pred_region
      %p94 = scmp.eq.s32.totalorder 0, 0
      // Predicated region
      $region50: #{tpu_custom_call.1} parent=48 // pred_check
        %p95 = pneg %p94
      $region51: #{tpu_custom_call.1} parent=48 // pred_check_branch
        %97 = sbr.rel (%p95) target = $region53
      $region52: #{tpu_custom_call.1} parent=48 // pred_region
        %98 = vst [vmem:[#allocation2] sm:$0xff] 0.0
        %99 = vst [vmem:[#allocation3] sm:$0xff] 0.0
      $region53: #{tpu_custom_call.1} parent=48 // pred_fallthru
        _
      %v100 = vld [vmem:[#allocation6] sm:$0xff]
      %v101 = vld [vmem:[#allocation6 + $0x8] sm:$0xff]
      %v102 = vld [vmem:[#allocation6 + $0x10] sm:$0xff]
      %v103 = vld [vmem:[#allocation6 + $0x18] sm:$0xff]
      %v104 = vld [vmem:[#allocation6 + $0x20] sm:$0xff]
      %v105 = vld [vmem:[#allocation6 + $0x28] sm:$0xff]
      %v106 = vld [vmem:[#allocation6 + $0x30] sm:$0xff]
      %v107 = vld [vmem:[#allocation6 + $0x38] sm:$0xff]
      %v108 = vld [vmem:[#allocation11] sm:$0xff]
      %v109 = vld [vmem:[#allocation11 + $0x8] sm:$0xff]
      %v110 = vld [vmem:[#allocation11 + $0x10] sm:$0xff]
      %v111 = vld [vmem:[#allocation11 + $0x18] sm:$0xff]
      %v112 = vld [vmem:[#allocation11 + $0x20] sm:$0xff]
      %v113 = vld [vmem:[#allocation11 + $0x28] sm:$0xff]
      %v114 = vld [vmem:[#allocation11 + $0x30] sm:$0xff]
      %v115 = vld [vmem:[#allocation11 + $0x38] sm:$0xff]
      %v116 = vld [vmem:[#allocation11 + $0x40] sm:$0xff]
      %v117 = vld [vmem:[#allocation11 + $0x48] sm:$0xff]
      %v118 = vld [vmem:[#allocation11 + $0x50] sm:$0xff]
      %v119 = vld [vmem:[#allocation11 + $0x58] sm:$0xff]
      %v120 = vld [vmem:[#allocation11 + $0x60] sm:$0xff]
      %v121 = vld [vmem:[#allocation11 + $0x68] sm:$0xff]
      %v122 = vld [vmem:[#allocation11 + $0x70] sm:$0xff]
      %v123 = vld [vmem:[#allocation11 + $0x78] sm:$0xff]
      %vm124 = vcmask 261120
      %v126 = vsel %vm124, %v100, 0
      %v129 = vsel %vm124, %v101, 0
      %v132 = vsel %vm124, %v102, 0
      %v135 = vsel %vm124, %v103, 0
      %v138 = vsel %vm124, %v104, 0
      %v141 = vsel %vm124, %v105, 0
      %v144 = vsel %vm124, %v106, 0
      %v147 = vsel %vm124, %v107, 0
      %149 = vmatprep.subr.mxu0 %v109
      %150 = vmatpush1.msra.mxu0 %v108
      %151 = vmatprep.subr.mxu0 %v113
      %152 = vmatpush1.msra.mxu0 %v112
      %153 = vmatprep.subr.mxu0 %v117
      %154 = vmatpush1.msra.mxu0 %v116
      %155 = vmatprep.subr.mxu0 %v121
      %156 = vmatpush1.msra.mxu0 %v120
      %157 = vmatprep.subr.mxu0 0.0
      %158 = vmatpush1.msra.mxu0 0.0
      %159 = vmatprep.subr.mxu0 0.0
      %160 = vmatpush1.msra.mxu0 0.0
      %161 = vmatprep.subr.mxu0 0.0
      %162 = vmatpush1.msra.mxu0 0.0
      %163 = vmatprep.subr.mxu0 0.0
      %164 = vmatpush1.msra.mxu0 0.0
      %165 = vmatprep.subr.mxu0 0.0
      %166 = vmatpush1.msra.mxu0 0.0
      %167 = vmatprep.subr.mxu0 0.0
      %168 = vmatpush1.msra.mxu0 0.0
      %169 = vmatprep.subr.mxu0 0.0
      %170 = vmatpush1.msra.mxu0 0.0
      %171 = vmatprep.subr.mxu0 0.0
      %172 = vmatpush1.msra.mxu0 0.0
      %173 = vmatprep.subr.mxu0 0.0
      %174 = vmatpush1.msra.mxu0 0.0
      %175 = vmatprep.subr.mxu0 0.0
      %176 = vmatpush1.msra.mxu0 0.0
      %177 = vmatprep.subr.mxu0 0.0
      %178 = vmatpush1.msra.mxu0 0.0
      %179 = vmatprep.subr.mxu0 0.0
      %180 = vmatpush1.msra.mxu0 0.0
      %181 = vmatprep.subr.mxu0 0.0
      %182 = vmatpush1.msra.mxu0 0.0
      %183 = vmatprep.subr.mxu0 0.0
      %184 = vmatpush1.msra.mxu0 0.0
      %185 = vmatprep.subr.mxu0 0.0
      %186 = vmatpush1.msra.mxu0 0.0
      %187 = vmatprep.subr.mxu0 0.0
      %188 = vmatpush1.msra.mxu0 0.0
      %189 = vmatprep.subr.mxu0 0.0
      %190 = vmatpush1.msra.mxu0 0.0
      %191 = vmatprep.subr.mxu0 0.0
      %192 = vmatpush1.msra.mxu0 0.0
      %193 = vmatprep.subr.mxu0 0.0
      %194 = vmatpush1.msra.mxu0 0.0
      %195 = vmatprep.subr.mxu0 0.0
      %196 = vmatpush1.msra.mxu0 0.0
      %197 = vmatprep.subr.mxu0 0.0
      %198 = vmatpush1.msra.mxu0 0.0
      %199 = vmatprep.subr.mxu0 0.0
      %200 = vmatpush1.msra.mxu0 0.0
      %201 = vmatprep.subr.mxu0 0.0
      %202 = vmatpush1.msra.mxu0 0.0
      %203 = vmatprep.subr.mxu0 0.0
      %204 = vmatpush1.msra.mxu0 0.0
      %205 = vmatprep.subr.mxu0 0.0
      %206 = vmatpush1.msra.mxu0 0.0
      %207 = vmatprep.subr.mxu0 0.0
      %208 = vmatpush1.msra.mxu0 0.0
      %209 = vmatprep.subr.mxu0 0.0
      %210 = vmatpush1.msra.mxu0 0.0
      %211 = vmatprep.subr.mxu0 0.0
      %212 = vmatpush1.msra.mxu0 0.0
      %213 = vmatprep.mubr.f32.mxu0 0.0
      %214 = vmatmul.mubr.f32.gmra.mrb[0].mxu0 %v126
      %v215 = vpop.f32.mrb[0].mxu0
      %v216 = vadd.f32 0.0, %v215
      %v217 = vpop.f32.mrb[0].mxu0
      %v218 = vadd.f32 0.0, %v217
      %219 = vmatprep.mubr.f32.mxu0 0.0
      %220 = vmatmul.mubr.f32.gmra.mrb[0].mxu0 %v129
      %v221 = vpop.f32.mrb[0].mxu0
      %v222 = vadd.f32 0.0, %v221
      %v223 = vpop.f32.mrb[0].mxu0
      %v224 = vadd.f32 0.0, %v223
      %225 = vmatprep.mubr.f32.mxu0 0.0
      %226 = vmatmul.mubr.f32.gmra.mrb[0].mxu0 %v132
      %v227 = vpop.f32.mrb[0].mxu0
      %v228 = vadd.f32 0.0, %v227
      %v229 = vpop.f32.mrb[0].mxu0
      %v230 = vadd.f32 0.0, %v229
      %231 = vmatprep.mubr.f32.mxu0 0.0
      %232 = vmatmul.mubr.f32.gmra.mrb[0].mxu0 %v135
      %v233 = vpop.f32.mrb[0].mxu0
      %v234 = vadd.f32 0.0, %v233
      %v235 = vpop.f32.mrb[0].mxu0
      %v236 = vadd.f32 0.0, %v235
      %237 = vmatprep.mubr.f32.mxu0 0.0
      %238 = vmatmul.mubr.f32.gmra.mrb[0].mxu0 %v138
      %v239 = vpop.f32.mrb[0].mxu0
      %v240 = vadd.f32 0.0, %v239
      %v241 = vpop.f32.mrb[0].mxu0
      %v242 = vadd.f32 0.0, %v241
      %243 = vmatprep.mubr.f32.mxu0 0.0
      %244 = vmatmul.mubr.f32.gmra.mrb[0].mxu0 %v141
      %v245 = vpop.f32.mrb[0].mxu0
      %v246 = vadd.f32 0.0, %v245
      %v247 = vpop.f32.mrb[0].mxu0
      %v248 = vadd.f32 0.0, %v247
      %249 = vmatprep.mubr.f32.mxu0 0.0
      %250 = vmatmul.mubr.f32.gmra.mrb[0].mxu0 %v144
      %v251 = vpop.f32.mrb[0].mxu0
      %v252 = vadd.f32 0.0, %v251
      %v253 = vpop.f32.mrb[0].mxu0
      %v254 = vadd.f32 0.0, %v253
      %255 = vmatprep.mubr.f32.mxu0 0.0
      %256 = vmatmul.mubr.f32.gmra.mrb[0].mxu0 %v147
      %v257 = vpop.f32.mrb[0].mxu0
      %v258 = vadd.f32 0.0, %v257
      %v259 = vpop.f32.mrb[0].mxu0
      %v260 = vadd.f32 0.0, %v259
      %261 = vdwg.mxu0
      %262 = vmatprep.subr.mxu0 %v111
      %263 = vmatpush1.msra.mxu0 %v110
      %264 = vmatprep.subr.mxu0 %v115
      %265 = vmatpush1.msra.mxu0 %v114
      %266 = vmatprep.subr.mxu0 %v119
      %267 = vmatpush1.msra.mxu0 %v118
      %268 = vmatprep.subr.mxu0 %v123
      %269 = vmatpush1.msra.mxu0 %v122
      %270 = vmatprep.subr.mxu0 0.0
      %271 = vmatpush1.msra.mxu0 0.0
      %272 = vmatprep.subr.mxu0 0.0
      %273 = vmatpush1.msra.mxu0 0.0
      %274 = vmatprep.subr.mxu0 0.0
      %275 = vmatpush1.msra.mxu0 0.0
      %276 = vmatprep.subr.mxu0 0.0
      %277 = vmatpush1.msra.mxu0 0.0
      %278 = vmatprep.subr.mxu0 0.0
      %279 = vmatpush1.msra.mxu0 0.0
      %280 = vmatprep.subr.mxu0 0.0
      %281 = vmatpush1.msra.mxu0 0.0
      %282 = vmatprep.subr.mxu0 0.0
      %283 = vmatpush1.msra.mxu0 0.0
      %284 = vmatprep.subr.mxu0 0.0
      %285 = vmatpush1.msra.mxu0 0.0
      %286 = vmatprep.subr.mxu0 0.0
      %287 = vmatpush1.msra.mxu0 0.0
      %288 = vmatprep.subr.mxu0 0.0
      %289 = vmatpush1.msra.mxu0 0.0
      %290 = vmatprep.subr.mxu0 0.0
      %291 = vmatpush1.msra.mxu0 0.0
      %292 = vmatprep.subr.mxu0 0.0
      %293 = vmatpush1.msra.mxu0 0.0
      %294 = vmatprep.subr.mxu0 0.0
      %295 = vmatpush1.msra.mxu0 0.0
      %296 = vmatprep.subr.mxu0 0.0
      %297 = vmatpush1.msra.mxu0 0.0
      %298 = vmatprep.subr.mxu0 0.0
      %299 = vmatpush1.msra.mxu0 0.0
      %300 = vmatprep.subr.mxu0 0.0
      %301 = vmatpush1.msra.mxu0 0.0
      %302 = vmatprep.subr.mxu0 0.0
      %303 = vmatpush1.msra.mxu0 0.0
      %304 = vmatprep.subr.mxu0 0.0
      %305 = vmatpush1.msra.mxu0 0.0
      %306 = vmatprep.subr.mxu0 0.0
      %307 = vmatpush1.msra.mxu0 0.0
      %308 = vmatprep.subr.mxu0 0.0
      %309 = vmatpush1.msra.mxu0 0.0
      %310 = vmatprep.subr.mxu0 0.0
      %311 = vmatpush1.msra.mxu0 0.0
      %312 = vmatprep.subr.mxu0 0.0
      %313 = vmatpush1.msra.mxu0 0.0
      %314 = vmatprep.subr.mxu0 0.0
      %315 = vmatpush1.msra.mxu0 0.0
      %316 = vmatprep.subr.mxu0 0.0
      %317 = vmatpush1.msra.mxu0 0.0
      %318 = vmatprep.subr.mxu0 0.0
      %319 = vmatpush1.msra.mxu0 0.0
      %320 = vmatprep.subr.mxu0 0.0
      %321 = vmatpush1.msra.mxu0 0.0
      %322 = vmatprep.subr.mxu0 0.0
      %323 = vmatpush1.msra.mxu0 0.0
      %324 = vmatprep.subr.mxu0 0.0
      %325 = vmatpush1.msra.mxu0 0.0
      %326 = vmatprep.mubr.f32.mxu0 0.0
      %327 = vmatmul.mubr.f32.gmra.mrb[0].mxu0 %v126
      %v328 = vpop.f32.mrb[0].mxu0
      %v329 = vadd.f32 0.0, %v328
      %v330 = vpop.f32.mrb[0].mxu0
      %v331 = vadd.f32 0.0, %v330
      %332 = vmatprep.mubr.f32.mxu0 0.0
      %333 = vmatmul.mubr.f32.gmra.mrb[0].mxu0 %v129
      %v334 = vpop.f32.mrb[0].mxu0
      %v335 = vadd.f32 0.0, %v334
      %v336 = vpop.f32.mrb[0].mxu0
      %v337 = vadd.f32 0.0, %v336
      %338 = vmatprep.mubr.f32.mxu0 0.0
      %339 = vmatmul.mubr.f32.gmra.mrb[0].mxu0 %v132
      %v340 = vpop.f32.mrb[0].mxu0
      %v341 = vadd.f32 0.0, %v340
      %v342 = vpop.f32.mrb[0].mxu0
      %v343 = vadd.f32 0.0, %v342
      %344 = vmatprep.mubr.f32.mxu0 0.0
      %345 = vmatmul.mubr.f32.gmra.mrb[0].mxu0 %v135
      %v346 = vpop.f32.mrb[0].mxu0
      %v347 = vadd.f32 0.0, %v346
      %v348 = vpop.f32.mrb[0].mxu0
      %v349 = vadd.f32 0.0, %v348
      %350 = vmatprep.mubr.f32.mxu0 0.0
      %351 = vmatmul.mubr.f32.gmra.mrb[0].mxu0 %v138
      %v352 = vpop.f32.mrb[0].mxu0
      %v353 = vadd.f32 0.0, %v352
      %v354 = vpop.f32.mrb[0].mxu0
      %v355 = vadd.f32 0.0, %v354
      %356 = vmatprep.mubr.f32.mxu0 0.0
      %357 = vmatmul.mubr.f32.gmra.mrb[0].mxu0 %v141
      %v358 = vpop.f32.mrb[0].mxu0
      %v359 = vadd.f32 0.0, %v358
      %v360 = vpop.f32.mrb[0].mxu0
      %v361 = vadd.f32 0.0, %v360
      %362 = vmatprep.mubr.f32.mxu0 0.0
      %363 = vmatmul.mubr.f32.gmra.mrb[0].mxu0 %v144
      %v364 = vpop.f32.mrb[0].mxu0
      %v365 = vadd.f32 0.0, %v364
      %v366 = vpop.f32.mrb[0].mxu0
      %v367 = vadd.f32 0.0, %v366
      %368 = vmatprep.mubr.f32.mxu0 0.0
      %369 = vmatmul.mubr.f32.gmra.mrb[0].mxu0 %v147
      %v370 = vpop.f32.mrb[0].mxu0
      %v371 = vadd.f32 0.0, %v370
      %v372 = vpop.f32.mrb[0].mxu0
      %v373 = vadd.f32 0.0, %v372
      %374 = vdwg.mxu0
      %v375 = vld [vmem:[#allocation9] sm:$0xff]
      %v376 = vld [vmem:[#allocation9 + $0x8] sm:$0xff]
      %v377 = vld [vmem:[#allocation9 + $0x10] sm:$0xff]
      %v378 = vld [vmem:[#allocation9 + $0x18] sm:$0xff]
      %v379 = vadd.f32 %v216, %v375
      %v380 = vadd.f32 %v218, %v376
      %v381 = vadd.f32 %v329, %v377
      %v382 = vadd.f32 %v331, %v378
      %v383 = vadd.f32 %v222, %v375
      %v384 = vadd.f32 %v224, %v376
      %v385 = vadd.f32 %v335, %v377
      %v386 = vadd.f32 %v337, %v378
      %v387 = vadd.f32 %v228, %v375
      %v388 = vadd.f32 %v230, %v376
      %v389 = vadd.f32 %v341, %v377
      %v390 = vadd.f32 %v343, %v378
      %v391 = vadd.f32 %v234, %v375
      %v392 = vadd.f32 %v236, %v376
      %v393 = vadd.f32 %v347, %v377
      %v394 = vadd.f32 %v349, %v378
      %v395 = vadd.f32 %v240, %v375
      %v396 = vadd.f32 %v242, %v376
      %v397 = vadd.f32 %v353, %v377
      %v398 = vadd.f32 %v355, %v378
      %v399 = vadd.f32 %v246, %v375
      %v400 = vadd.f32 %v248, %v376
      %v401 = vadd.f32 %v359, %v377
      %v402 = vadd.f32 %v361, %v378
      %v403 = vadd.f32 %v252, %v375
      %v404 = vadd.f32 %v254, %v376
      %v405 = vadd.f32 %v365, %v377
      %v406 = vadd.f32 %v367, %v378
      %v407 = vadd.f32 %v258, %v375
      %v408 = vadd.f32 %v260, %v376
      %v409 = vadd.f32 %v371, %v377
      %v410 = vadd.f32 %v373, %v378
      %411 = vst [vmem:[#allocation4] sm:$0xff] %v379
      %412 = vst [vmem:[#allocation4 + $0x8] sm:$0xff] %v380
      %413 = vst [vmem:[#allocation4 + $0x10] sm:$0xff] %v381
      %414 = vst [vmem:[#allocation4 + $0x18] sm:$0xff] %v382
      %415 = vst [vmem:[#allocation4 + $0x20] sm:$0xff] %v383
      %416 = vst [vmem:[#allocation4 + $0x28] sm:$0xff] %v384
      %417 = vst [vmem:[#allocation4 + $0x30] sm:$0xff] %v385
      %418 = vst [vmem:[#allocation4 + $0x38] sm:$0xff] %v386
      %419 = vst [vmem:[#allocation4 + $0x40] sm:$0xff] %v387
      %420 = vst [vmem:[#allocation4 + $0x48] sm:$0xff] %v388
      %421 = vst [vmem:[#allocation4 + $0x50] sm:$0xff] %v389
      %422 = vst [vmem:[#allocation4 + $0x58] sm:$0xff] %v390
      %423 = vst [vmem:[#allocation4 + $0x60] sm:$0xff] %v391
      %424 = vst [vmem:[#allocation4 + $0x68] sm:$0xff] %v392
      %425 = vst [vmem:[#allocation4 + $0x70] sm:$0xff] %v393
      %426 = vst [vmem:[#allocation4 + $0x78] sm:$0xff] %v394
      %427 = vst [vmem:[#allocation4 + $0x80] sm:$0xff] %v395
      %428 = vst [vmem:[#allocation4 + $0x88] sm:$0xff] %v396
      %429 = vst [vmem:[#allocation4 + $0x90] sm:$0xff] %v397
      %430 = vst [vmem:[#allocation4 + $0x98] sm:$0xff] %v398
      %431 = vst [vmem:[#allocation4 + $0xa0] sm:$0xff] %v399
      %432 = vst [vmem:[#allocation4 + $0xa8] sm:$0xff] %v400
      %433 = vst [vmem:[#allocation4 + $0xb0] sm:$0xff] %v401
      %434 = vst [vmem:[#allocation4 + $0xb8] sm:$0xff] %v402
      %435 = vst [vmem:[#allocation4 + $0xc0] sm:$0xff] %v403
      %436 = vst [vmem:[#allocation4 + $0xc8] sm:$0xff] %v404
      %437 = vst [vmem:[#allocation4 + $0xd0] sm:$0xff] %v405
      %438 = vst [vmem:[#allocation4 + $0xd8] sm:$0xff] %v406
      %439 = vst [vmem:[#allocation4 + $0xe0] sm:$0xff] %v407
      %440 = vst [vmem:[#allocation4 + $0xe8] sm:$0xff] %v408
      %441 = vst [vmem:[#allocation4 + $0xf0] sm:$0xff] %v409
      %442 = vst [vmem:[#allocation4 + $0xf8] sm:$0xff] %v410
      %v443 = vld [vmem:[#allocation2] sm:$0xff]
      %v444 = vld [vmem:[#allocation3] sm:$0xff]
      %v445 = vld [vmem:[#allocation4] sm:$0xff]
      %v446 = vld [vmem:[#allocation4 + $0x8] sm:$0xff]
      %v447 = vld [vmem:[#allocation4 + $0x10] sm:$0xff]
      %v448 = vld [vmem:[#allocation4 + $0x18] sm:$0xff]
      %v449 = vld [vmem:[#allocation12] sm:$0xff]
      %v450 = vld [vmem:[#allocation12 + $0x8] sm:$0xff]
      %v451 = vld [vmem:[#allocation12 + $0x10] sm:$0xff]
      %v452 = vld [vmem:[#allocation12 + $0x18] sm:$0xff]
      %v453 = vld [vmem:[#allocation12 + $0x20] sm:$0xff]
      %v454 = vld [vmem:[#allocation12 + $0x28] sm:$0xff]
      %v455 = vld [vmem:[#allocation12 + $0x30] sm:$0xff]
      %v456 = vld [vmem:[#allocation12 + $0x38] sm:$0xff]
      %v457 = vld [vmem:[#allocation12 + $0x40] sm:$0xff]
      %v458 = vld [vmem:[#allocation12 + $0x48] sm:$0xff]
      %v459 = vld [vmem:[#allocation12 + $0x50] sm:$0xff]
      %v460 = vld [vmem:[#allocation12 + $0x58] sm:$0xff]
      %v461 = vld [vmem:[#allocation12 + $0x60] sm:$0xff]
      %v462 = vld [vmem:[#allocation12 + $0x68] sm:$0xff]
      %v463 = vld [vmem:[#allocation12 + $0x70] sm:$0xff]
      %v464 = vld [vmem:[#allocation12 + $0x78] sm:$0xff]
      %v465 = vld [vmem:[#allocation12 + $0x80] sm:$0xff]
      %v466 = vld [vmem:[#allocation12 + $0x88] sm:$0xff]
      %v467 = vld [vmem:[#allocation12 + $0x90] sm:$0xff]
      %v468 = vld [vmem:[#allocation12 + $0x98] sm:$0xff]
      %v469 = vld [vmem:[#allocation12 + $0xa0] sm:$0xff]
      %v470 = vld [vmem:[#allocation12 + $0xa8] sm:$0xff]
      %v471 = vld [vmem:[#allocation12 + $0xb0] sm:$0xff]
      %v472 = vld [vmem:[#allocation12 + $0xb8] sm:$0xff]
      %v473 = vld [vmem:[#allocation12 + $0xc0] sm:$0xff]
      %v474 = vld [vmem:[#allocation12 + $0xc8] sm:$0xff]
      %v475 = vld [vmem:[#allocation12 + $0xd0] sm:$0xff]
      %v476 = vld [vmem:[#allocation12 + $0xd8] sm:$0xff]
      %v477 = vld [vmem:[#allocation12 + $0xe0] sm:$0xff]
      %v478 = vld [vmem:[#allocation12 + $0xe8] sm:$0xff]
      %v479 = vld [vmem:[#allocation12 + $0xf0] sm:$0xff]
      %v480 = vld [vmem:[#allocation12 + $0xf8] sm:$0xff]
      %v481 = vld [vmem:[#allocation12 + $0x100] sm:$0xff]
      %v482 = vld [vmem:[#allocation12 + $0x108] sm:$0xff]
      %v483 = vld [vmem:[#allocation12 + $0x110] sm:$0xff]
      %v484 = vld [vmem:[#allocation12 + $0x118] sm:$0xff]
      %v485 = vld [vmem:[#allocation12 + $0x120] sm:$0xff]
      %v486 = vld [vmem:[#allocation12 + $0x128] sm:$0xff]
      %v487 = vld [vmem:[#allocation12 + $0x130] sm:$0xff]
      %v488 = vld [vmem:[#allocation12 + $0x138] sm:$0xff]
      %v489 = vld [vmem:[#allocation12 + $0x140] sm:$0xff]
      %v490 = vld [vmem:[#allocation12 + $0x148] sm:$0xff]
      %v491 = vld [vmem:[#allocation12 + $0x150] sm:$0xff]
      %v492 = vld [vmem:[#allocation12 + $0x158] sm:$0xff]
      %v493 = vld [vmem:[#allocation12 + $0x160] sm:$0xff]
      %v494 = vld [vmem:[#allocation12 + $0x168] sm:$0xff]
      %v495 = vld [vmem:[#allocation12 + $0x170] sm:$0xff]
      %v496 = vld [vmem:[#allocation12 + $0x178] sm:$0xff]
      %v497 = vld [vmem:[#allocation12 + $0x180] sm:$0xff]
      %v498 = vld [vmem:[#allocation12 + $0x188] sm:$0xff]
      %v499 = vld [vmem:[#allocation12 + $0x190] sm:$0xff]
      %v500 = vld [vmem:[#allocation12 + $0x198] sm:$0xff]
      %v501 = vld [vmem:[#allocation12 + $0x1a0] sm:$0xff]
      %v502 = vld [vmem:[#allocation12 + $0x1a8] sm:$0xff]
      %v503 = vld [vmem:[#allocation12 + $0x1b0] sm:$0xff]
      %v504 = vld [vmem:[#allocation12 + $0x1b8] sm:$0xff]
      %v505 = vld [vmem:[#allocation12 + $0x1c0] sm:$0xff]
      %v506 = vld [vmem:[#allocation12 + $0x1c8] sm:$0xff]
      %v507 = vld [vmem:[#allocation12 + $0x1d0] sm:$0xff]
      %v508 = vld [vmem:[#allocation12 + $0x1d8] sm:$0xff]
      %v509 = vld [vmem:[#allocation12 + $0x1e0] sm:$0xff]
      %v510 = vld [vmem:[#allocation12 + $0x1e8] sm:$0xff]
      %v511 = vld [vmem:[#allocation12 + $0x1f0] sm:$0xff]
      %v512 = vld [vmem:[#allocation12 + $0x1f8] sm:$0xff]
      %513 = vmatprep.subr.mxu0 %v450
      %514 = vmatpush1.msra.mxu0 %v449
      %515 = vmatprep.subr.mxu0 %v454
      %516 = vmatpush1.msra.mxu0 %v453
      %517 = vmatprep.subr.mxu0 %v458
      %518 = vmatpush1.msra.mxu0 %v457
      %519 = vmatprep.subr.mxu0 %v462
      %520 = vmatpush1.msra.mxu0 %v461
      %521 = vmatprep.subr.mxu0 %v466
      %522 = vmatpush1.msra.mxu0 %v465
      %523 = vmatprep.subr.mxu0 %v470
      %524 = vmatpush1.msra.mxu0 %v469
      %525 = vmatprep.subr.mxu0 %v474
      %526 = vmatpush1.msra.mxu0 %v473
      %527 = vmatprep.subr.mxu0 %v478
      %528 = vmatpush1.msra.mxu0 %v477
      %529 = vmatprep.subr.mxu0 %v482
      %530 = vmatpush1.msra.mxu0 %v481
      %531 = vmatprep.subr.mxu0 %v486
      %532 = vmatpush1.msra.mxu0 %v485
      %533 = vmatprep.subr.mxu0 %v490
      %534 = vmatpush1.msra.mxu0 %v489
      %535 = vmatprep.subr.mxu0 %v494
      %536 = vmatpush1.msra.mxu0 %v493
      %537 = vmatprep.subr.mxu0 %v498
      %538 = vmatpush1.msra.mxu0 %v497
      %539 = vmatprep.subr.mxu0 %v502
      %540 = vmatpush1.msra.mxu0 %v501
      %541 = vmatprep.subr.mxu0 %v506
      %542 = vmatpush1.msra.mxu0 %v505
      %543 = vmatprep.subr.mxu0 %v510
      %544 = vmatpush1.msra.mxu0 %v509
      %545 = vmatprep.subr.mxu0 0.0
      %546 = vmatpush1.msra.mxu0 0.0
      %547 = vmatprep.subr.mxu0 0.0
      %548 = vmatpush1.msra.mxu0 0.0
      %549 = vmatprep.subr.mxu0 0.0
      %550 = vmatpush1.msra.mxu0 0.0
      %551 = vmatprep.subr.mxu0 0.0
      %552 = vmatpush1.msra.mxu0 0.0
      %553 = vmatprep.subr.mxu0 0.0
      %554 = vmatpush1.msra.mxu0 0.0
      %555 = vmatprep.subr.mxu0 0.0
      %556 = vmatpush1.msra.mxu0 0.0
      %557 = vmatprep.subr.mxu0 0.0
      %558 = vmatpush1.msra.mxu0 0.0
      %559 = vmatprep.subr.mxu0 0.0
      %560 = vmatpush1.msra.mxu0 0.0
      %561 = vmatprep.subr.mxu0 0.0
      %562 = vmatpush1.msra.mxu0 0.0
      %563 = vmatprep.subr.mxu0 0.0
      %564 = vmatpush1.msra.mxu0 0.0
      %565 = vmatprep.subr.mxu0 0.0
      %566 = vmatpush1.msra.mxu0 0.0
      %567 = vmatprep.subr.mxu0 0.0
      %568 = vmatpush1.msra.mxu0 0.0
      %569 = vmatprep.subr.mxu0 0.0
      %570 = vmatpush1.msra.mxu0 0.0
      %571 = vmatprep.subr.mxu0 0.0
      %572 = vmatpush1.msra.mxu0 0.0
      %573 = vmatprep.subr.mxu0 0.0
      %574 = vmatpush1.msra.mxu0 0.0
      %575 = vmatprep.subr.mxu0 0.0
      %576 = vmatpush1.msra.mxu0 0.0
      %577 = vmatprep.mubr.f32.mxu0 0.0
      %578 = vmatmul.mubr.f32.gmra.mrb[0].mxu0 %v443
      %v579 = vpop.f32.mrb[0].mxu0
      %v580 = vadd.f32 0.0, %v579
      %v581 = vpop.f32.mrb[0].mxu0
      %v582 = vadd.f32 0.0, %v581
      %583 = vdwg.mxu0
      %584 = vmatprep.subr.mxu0 %v452
      %585 = vmatpush1.msra.mxu0 %v451
      %586 = vmatprep.subr.mxu0 %v456
      %587 = vmatpush1.msra.mxu0 %v455
      %588 = vmatprep.subr.mxu0 %v460
      %589 = vmatpush1.msra.mxu0 %v459
      %590 = vmatprep.subr.mxu0 %v464
      %591 = vmatpush1.msra.mxu0 %v463
      %592 = vmatprep.subr.mxu0 %v468
      %593 = vmatpush1.msra.mxu0 %v467
      %594 = vmatprep.subr.mxu0 %v472
      %595 = vmatpush1.msra.mxu0 %v471
      %596 = vmatprep.subr.mxu0 %v476
      %597 = vmatpush1.msra.mxu0 %v475
      %598 = vmatprep.subr.mxu0 %v480
      %599 = vmatpush1.msra.mxu0 %v479
      %600 = vmatprep.subr.mxu0 %v484
      %601 = vmatpush1.msra.mxu0 %v483
      %602 = vmatprep.subr.mxu0 %v488
      %603 = vmatpush1.msra.mxu0 %v487
      %604 = vmatprep.subr.mxu0 %v492
      %605 = vmatpush1.msra.mxu0 %v491
      %606 = vmatprep.subr.mxu0 %v496
      %607 = vmatpush1.msra.mxu0 %v495
      %608 = vmatprep.subr.mxu0 %v500
      %609 = vmatpush1.msra.mxu0 %v499
      %610 = vmatprep.subr.mxu0 %v504
      %611 = vmatpush1.msra.mxu0 %v503
      %612 = vmatprep.subr.mxu0 %v508
      %613 = vmatpush1.msra.mxu0 %v507
      %614 = vmatprep.subr.mxu0 %v512
      %615 = vmatpush1.msra.mxu0 %v511
      %616 = vmatprep.subr.mxu0 0.0
      %617 = vmatpush1.msra.mxu0 0.0
      %618 = vmatprep.subr.mxu0 0.0
      %619 = vmatpush1.msra.mxu0 0.0
      %620 = vmatprep.subr.mxu0 0.0
      %621 = vmatpush1.msra.mxu0 0.0
      %622 = vmatprep.subr.mxu0 0.0
      %623 = vmatpush1.msra.mxu0 0.0
      %624 = vmatprep.subr.mxu0 0.0
      %625 = vmatpush1.msra.mxu0 0.0
      %626 = vmatprep.subr.mxu0 0.0
      %627 = vmatpush1.msra.mxu0 0.0
      %628 = vmatprep.subr.mxu0 0.0
      %629 = vmatpush1.msra.mxu0 0.0
      %630 = vmatprep.subr.mxu0 0.0
      %631 = vmatpush1.msra.mxu0 0.0
      %632 = vmatprep.subr.mxu0 0.0
      %633 = vmatpush1.msra.mxu0 0.0
      %634 = vmatprep.subr.mxu0 0.0
      %635 = vmatpush1.msra.mxu0 0.0
      %636 = vmatprep.subr.mxu0 0.0
      %637 = vmatpush1.msra.mxu0 0.0
      %638 = vmatprep.subr.mxu0 0.0
      %639 = vmatpush1.msra.mxu0 0.0
      %640 = vmatprep.subr.mxu0 0.0
      %641 = vmatpush1.msra.mxu0 0.0
      %642 = vmatprep.subr.mxu0 0.0
      %643 = vmatpush1.msra.mxu0 0.0
      %644 = vmatprep.subr.mxu0 0.0
      %645 = vmatpush1.msra.mxu0 0.0
      %646 = vmatprep.subr.mxu0 0.0
      %647 = vmatpush1.msra.mxu0 0.0
      %648 = vmatprep.mubr.f32.mxu0 0.0
      %649 = vmatmul.mubr.f32.gmra.mrb[0].mxu0 %v443
      %v650 = vpop.f32.mrb[0].mxu0
      %v651 = vadd.f32 0.0, %v650
      %v652 = vpop.f32.mrb[0].mxu0
      %v653 = vadd.f32 0.0, %v652
      %654 = vdwg.mxu0
      %v655 = vadd.f32 %v445, %v580
      %v656 = vadd.f32 %v446, %v582
      %v657 = vadd.f32 %v447, %v651
      %v658 = vadd.f32 %v448, %v653
      %v659 = vxor.u32 %v655, 2147483648
      %v660 = vxor.u32 %v656, 2147483648
      %v661 = vxor.u32 %v657, 2147483648
      %v662 = vmul.f32 %v659, 1.442695
      %v663 = vpow.pop %v662
      %v664 = vmul.f32 %v660, 1.442695
      %v665 = vpow.pop %v664
      %v666 = vmul.f32 %v661, 1.442695
      %v667 = vpow.pop %v666
      %v668 = vadd.f32 %v663, 1.0
      %v669 = vadd.f32 %v665, 1.0
      %v670 = vadd.f32 %v667, 1.0
      %v671 = vrcp.pop %v668
      %v672 = vmul.f32 1.0, %v671
      %v673 = vrcp.pop %v669
      %v674 = vmul.f32 1.0, %v673
      %v675 = vrcp.pop %v670
      %v676 = vmul.f32 1.0, %v675
      %v677 = vtanh.pop %v658
      %v678 = vmul.f32 %v674, %v444
      %v679 = vmul.f32 %v672, %v677
      %v680 = vadd.f32 %v678, %v679
      %v681 = vtanh.pop %v680
      %v682 = vmul.f32 %v676, %v681
      %683 = vst [vmem:[#allocation5] sm:$0xff] %v682
      %s684 = scalar_lea.vmem [#allocation4], 32
      %v685 = vld [vmem:[%s684] sm:$0xff]
      %v686 = vld [vmem:[%s684 + $0x8] sm:$0xff]
      %v687 = vld [vmem:[%s684 + $0x10] sm:$0xff]
      %v688 = vld [vmem:[%s684 + $0x18] sm:$0xff]
      %v689 = vld [vmem:[#allocation12] sm:$0xff]
      %v690 = vld [vmem:[#allocation12 + $0x8] sm:$0xff]
      %v691 = vld [vmem:[#allocation12 + $0x10] sm:$0xff]
      %v692 = vld [vmem:[#allocation12 + $0x18] sm:$0xff]
      %v693 = vld [vmem:[#allocation12 + $0x20] sm:$0xff]
      %v694 = vld [vmem:[#allocation12 + $0x28] sm:$0xff]
      %v695 = vld [vmem:[#allocation12 + $0x30] sm:$0xff]
      %v696 = vld [vmem:[#allocation12 + $0x38] sm:$0xff]
      %v697 = vld [vmem:[#allocation12 + $0x40] sm:$0xff]
      %v698 = vld [vmem:[#allocation12 + $0x48] sm:$0xff]
      %v699 = vld [vmem:[#allocation12 + $0x50] sm:$0xff]
      %v700 = vld [vmem:[#allocation12 + $0x58] sm:$0xff]
      %v701 = vld [vmem:[#allocation12 + $0x60] sm:$0xff]
      %v702 = vld [vmem:[#allocation12 + $0x68] sm:$0xff]
      %v703 = vld [vmem:[#allocation12 + $0x70] sm:$0xff]
      %v704 = vld [vmem:[#allocation12 + $0x78] sm:$0xff]
      %v705 = vld [vmem:[#allocation12 + $0x80] sm:$0xff]
      %v706 = vld [vmem:[#allocation12 + $0x88] sm:$0xff]
      %v707 = vld [vmem:[#allocation12 + $0x90] sm:$0xff]
      %v708 = vld [vmem:[#allocation12 + $0x98] sm:$0xff]
      %v709 = vld [vmem:[#allocation12 + $0xa0] sm:$0xff]
      %v710 = vld [vmem:[#allocation12 + $0xa8] sm:$0xff]
      %v711 = vld [vmem:[#allocation12 + $0xb0] sm:$0xff]
      %v712 = vld [vmem:[#allocation12 + $0xb8] sm:$0xff]
      %v713 = vld [vmem:[#allocation12 + $0xc0] sm:$0xff]
      %v714 = vld [vmem:[#allocation12 + $0xc8] sm:$0xff]
      %v715 = vld [vmem:[#allocation12 + $0xd0] sm:$0xff]
      %v716 = vld [vmem:[#allocation12 + $0xd8] sm:$0xff]
      %v717 = vld [vmem:[#allocation12 + $0xe0] sm:$0xff]
      %v718 = vld [vmem:[#allocation12 + $0xe8] sm:$0xff]
      %v719 = vld [vmem:[#allocation12 + $0xf0] sm:$0xff]
      %v720 = vld [vmem:[#allocation12 + $0xf8] sm:$0xff]
      %v721 = vld [vmem:[#allocation12 + $0x100] sm:$0xff]
      %v722 = vld [vmem:[#allocation12 + $0x108] sm:$0xff]
      %v723 = vld [vmem:[#allocation12 + $0x110] sm:$0xff]
      %v724 = vld [vmem:[#allocation12 + $0x118] sm:$0xff]
      %v725 = vld [vmem:[#allocation12 + $0x120] sm:$0xff]
      %v726 = vld [vmem:[#allocation12 + $0x128] sm:$0xff]
      %v727 = vld [vmem:[#allocation12 + $0x130] sm:$0xff]
      %v728 = vld [vmem:[#allocation12 + $0x138] sm:$0xff]
      %v729 = vld [vmem:[#allocation12 + $0x140] sm:$0xff]
      %v730 = vld [vmem:[#allocation12 + $0x148] sm:$0xff]
      %v731 = vld [vmem:[#allocation12 + $0x150] sm:$0xff]
      %v732 = vld [vmem:[#allocation12 + $0x158] sm:$0xff]
      %v733 = vld [vmem:[#allocation12 + $0x160] sm:$0xff]
      %v734 = vld [vmem:[#allocation12 + $0x168] sm:$0xff]
      %v735 = vld [vmem:[#allocation12 + $0x170] sm:$0xff]
      %v736 = vld [vmem:[#allocation12 + $0x178] sm:$0xff]
      %v737 = vld [vmem:[#allocation12 + $0x180] sm:$0xff]
      %v738 = vld [vmem:[#allocation12 + $0x188] sm:$0xff]
      %v739 = vld [vmem:[#allocation12 + $0x190] sm:$0xff]
      %v740 = vld [vmem:[#allocation12 + $0x198] sm:$0xff]
      %v741 = vld [vmem:[#allocation12 + $0x1a0] sm:$0xff]
      %v742 = vld [vmem:[#allocation12 + $0x1a8] sm:$0xff]
      %v743 = vld [vmem:[#allocation12 + $0x1b0] sm:$0xff]
      %v744 = vld [vmem:[#allocation12 + $0x1b8] sm:$0xff]
      %v745 = vld [vmem:[#allocation12 + $0x1c0] sm:$0xff]
      %v746 = vld [vmem:[#allocation12 + $0x1c8] sm:$0xff]
      %v747 = vld [vmem:[#allocation12 + $0x1d0] sm:$0xff]
      %v748 = vld [vmem:[#allocation12 + $0x1d8] sm:$0xff]
      %v749 = vld [vmem:[#allocation12 + $0x1e0] sm:$0xff]
      %v750 = vld [vmem:[#allocation12 + $0x1e8] sm:$0xff]
      %v751 = vld [vmem:[#allocation12 + $0x1f0] sm:$0xff]
      %v752 = vld [vmem:[#allocation12 + $0x1f8] sm:$0xff]
      %753 = vmatprep.subr.mxu0 %v690
      %754 = vmatpush1.msra.mxu0 %v689
      %755 = vmatprep.subr.mxu0 %v694
      %756 = vmatpush1.msra.mxu0 %v693
      %757 = vmatprep.subr.mxu0 %v698
      %758 = vmatpush1.msra.mxu0 %v697
      %759 = vmatprep.subr.mxu0 %v702
      %760 = vmatpush1.msra.mxu0 %v701
      %761 = vmatprep.subr.mxu0 %v706
      %762 = vmatpush1.msra.mxu0 %v705
      %763 = vmatprep.subr.mxu0 %v710
      %764 = vmatpush1.msra.mxu0 %v709
      %765 = vmatprep.subr.mxu0 %v714
      %766 = vmatpush1.msra.mxu0 %v713
      %767 = vmatprep.subr.mxu0 %v718
      %768 = vmatpush1.msra.mxu0 %v717
      %769 = vmatprep.subr.mxu0 %v722
      %770 = vmatpush1.msra.mxu0 %v721
      %771 = vmatprep.subr.mxu0 %v726
      %772 = vmatpush1.msra.mxu0 %v725
      %773 = vmatprep.subr.mxu0 %v730
      %774 = vmatpush1.msra.mxu0 %v729
      %775 = vmatprep.subr.mxu0 %v734
      %776 = vmatpush1.msra.mxu0 %v733
      %777 = vmatprep.subr.mxu0 %v738
      %778 = vmatpush1.msra.mxu0 %v737
      %779 = vmatprep.subr.mxu0 %v742
      %780 = vmatpush1.msra.mxu0 %v741
      %781 = vmatprep.subr.mxu0 %v746
      %782 = vmatpush1.msra.mxu0 %v745
      %783 = vmatprep.subr.mxu0 %v750
      %784 = vmatpush1.msra.mxu0 %v749
      %785 = vmatprep.subr.mxu0 0.0
      %786 = vmatpush1.msra.mxu0 0.0
      %787 = vmatprep.subr.mxu0 0.0
      %788 = vmatpush1.msra.mxu0 0.0
      %789 = vmatprep.subr.mxu0 0.0
      %790 = vmatpush1.msra.mxu0 0.0
      %791 = vmatprep.subr.mxu0 0.0
      %792 = vmatpush1.msra.mxu0 0.0
      %793 = vmatprep.subr.mxu0 0.0
      %794 = vmatpush1.msra.mxu0 0.0
      %795 = vmatprep.subr.mxu0 0.0
      %796 = vmatpush1.msra.mxu0 0.0
      %797 = vmatprep.subr.mxu0 0.0
      %798 = vmatpush1.msra.mxu0 0.0
      %799 = vmatprep.subr.mxu0 0.0
      %800 = vmatpush1.msra.mxu0 0.0
      %801 = vmatprep.subr.mxu0 0.0
      %802 = vmatpush1.msra.mxu0 0.0
      %803 = vmatprep.subr.mxu0 0.0
      %804 = vmatpush1.msra.mxu0 0.0
      %805 = vmatprep.subr.mxu0 0.0
      %806 = vmatpush1.msra.mxu0 0.0
      %807 = vmatprep.subr.mxu0 0.0
      %808 = vmatpush1.msra.mxu0 0.0
      %809 = vmatprep.subr.mxu0 0.0
      %810 = vmatpush1.msra.mxu0 0.0
      %811 = vmatprep.subr.mxu0 0.0
      %812 = vmatpush1.msra.mxu0 0.0
      %813 = vmatprep.subr.mxu0 0.0
      %814 = vmatpush1.msra.mxu0 0.0
      %815 = vmatprep.subr.mxu0 0.0
      %816 = vmatpush1.msra.mxu0 0.0
      %817 = vmatprep.mubr.f32.mxu0 0.0
      %818 = vmatmul.mubr.f32.gmra.mrb[0].mxu0 %v682
      %v819 = vpop.f32.mrb[0].mxu0
      %v820 = vadd.f32 0.0, %v819
      %v821 = vpop.f32.mrb[0].mxu0
      %v822 = vadd.f32 0.0, %v821
      %823 = vdwg.mxu0
      %824 = vmatprep.subr.mxu0 %v692
      %825 = vmatpush1.msra.mxu0 %v691
      %826 = vmatprep.subr.mxu0 %v696
      %827 = vmatpush1.msra.mxu0 %v695
      %828 = vmatprep.subr.mxu0 %v700
      %829 = vmatpush1.msra.mxu0 %v699
      %830 = vmatprep.subr.mxu0 %v704
      %831 = vmatpush1.msra.mxu0 %v703
      %832 = vmatprep.subr.mxu0 %v708
      %833 = vmatpush1.msra.mxu0 %v707
      %834 = vmatprep.subr.mxu0 %v712
      %835 = vmatpush1.msra.mxu0 %v711
      %836 = vmatprep.subr.mxu0 %v716
      %837 = vmatpush1.msra.mxu0 %v715
      %838 = vmatprep.subr.mxu0 %v720
      %839 = vmatpush1.msra.mxu0 %v719
      %840 = vmatprep.subr.mxu0 %v724
      %841 = vmatpush1.msra.mxu0 %v723
      %842 = vmatprep.subr.mxu0 %v728
      %843 = vmatpush1.msra.mxu0 %v727
      %844 = vmatprep.subr.mxu0 %v732
      %845 = vmatpush1.msra.mxu0 %v731
      %846 = vmatprep.subr.mxu0 %v736
      %847 = vmatpush1.msra.mxu0 %v735
      %848 = vmatprep.subr.mxu0 %v740
      %849 = vmatpush1.msra.mxu0 %v739
      %850 = vmatprep.subr.mxu0 %v744
      %851 = vmatpush1.msra.mxu0 %v743
      %852 = vmatprep.subr.mxu0 %v748
      %853 = vmatpush1.msra.mxu0 %v747
      %854 = vmatprep.subr.mxu0 %v752
      %855 = vmatpush1.msra.mxu0 %v751
      %856 = vmatprep.subr.mxu0 0.0
      %857 = vmatpush1.msra.mxu0 0.0
      %858 = vmatprep.subr.mxu0 0.0
      %859 = vmatpush1.msra.mxu0 0.0
      %860 = vmatprep.subr.mxu0 0.0
      %861 = vmatpush1.msra.mxu0 0.0
      %862 = vmatprep.subr.mxu0 0.0
      %863 = vmatpush1.msra.mxu0 0.0
      %864 = vmatprep.subr.mxu0 0.0
      %865 = vmatpush1.msra.mxu0 0.0
      %866 = vmatprep.subr.mxu0 0.0
      %867 = vmatpush1.msra.mxu0 0.0
      %868 = vmatprep.subr.mxu0 0.0
      %869 = vmatpush1.msra.mxu0 0.0
      %870 = vmatprep.subr.mxu0 0.0
      %871 = vmatpush1.msra.mxu0 0.0
      %872 = vmatprep.subr.mxu0 0.0
      %873 = vmatpush1.msra.mxu0 0.0
      %874 = vmatprep.subr.mxu0 0.0
      %875 = vmatpush1.msra.mxu0 0.0
      %876 = vmatprep.subr.mxu0 0.0
      %877 = vmatpush1.msra.mxu0 0.0
      %878 = vmatprep.subr.mxu0 0.0
      %879 = vmatpush1.msra.mxu0 0.0
      %880 = vmatprep.subr.mxu0 0.0
      %881 = vmatpush1.msra.mxu0 0.0
      %882 = vmatprep.subr.mxu0 0.0
      %883 = vmatpush1.msra.mxu0 0.0
      %884 = vmatprep.subr.mxu0 0.0
      %885 = vmatpush1.msra.mxu0 0.0
      %886 = vmatprep.subr.mxu0 0.0
      %887 = vmatpush1.msra.mxu0 0.0
      %888 = vmatprep.mubr.f32.mxu0 0.0
      %889 = vmatmul.mubr.f32.gmra.mrb[0].mxu0 %v682
      %v890 = vpop.f32.mrb[0].mxu0
      %v891 = vadd.f32 0.0, %v890
      %v892 = vpop.f32.mrb[0].mxu0
      %v893 = vadd.f32 0.0, %v892
      %894 = vdwg.mxu0
      %v895 = vadd.f32 %v685, %v820
      %v896 = vadd.f32 %v686, %v822
      %v897 = vadd.f32 %v687, %v891
      %v898 = vadd.f32 %v688, %v893
      %v899 = vxor.u32 %v895, 2147483648
      %v900 = vxor.u32 %v896, 2147483648
      %v901 = vxor.u32 %v897, 2147483648
      %v902 = vmul.f32 %v899, 1.442695
      %v903 = vpow.pop %v902
      %v904 = vmul.f32 %v900, 1.442695
      %v905 = vpow.pop %v904
      %v906 = vmul.f32 %v901, 1.442695
      %v907 = vpow.pop %v906
      %v908 = vadd.f32 %v903, 1.0
      %v909 = vadd.f32 %v905, 1.0
      %v910 = vadd.f32 %v907, 1.0
      %v911 = vrcp.pop %v908
      %v912 = vmul.f32 1.0, %v911
      %v913 = vrcp.pop %v909
      %v914 = vmul.f32 1.0, %v913
      %v915 = vrcp.pop %v910
      %v916 = vmul.f32 1.0, %v915
      %v917 = vtanh.pop %v898
      %v918 = vmul.f32 %v914, %v680
      %v919 = vmul.f32 %v912, %v917
      %v920 = vadd.f32 %v918, %v919
      %v921 = vtanh.pop %v920
      %v922 = vmul.f32 %v916, %v921
      %s923 = scalar_lea.vmem [#allocation5], 8
      %924 = vst [vmem:[%s923] sm:$0xff] %v922
      %s925 = scalar_lea.vmem [#allocation4], 64
      %v926 = vld [vmem:[%s925] sm:$0xff]
      %v927 = vld [vmem:[%s925 + $0x8] sm:$0xff]
      %v928 = vld [vmem:[%s925 + $0x10] sm:$0xff]
      %v929 = vld [vmem:[%s925 + $0x18] sm:$0xff]
      %v930 = vld [vmem:[#allocation12] sm:$0xff]
      %v931 = vld [vmem:[#allocation12 + $0x8] sm:$0xff]
      %v932 = vld [vmem:[#allocation12 + $0x10] sm:$0xff]
      %v933 = vld [vmem:[#allocation12 + $0x18] sm:$0xff]
      %v934 = vld [vmem:[#allocation12 + $0x20] sm:$0xff]
      %v935 = vld [vmem:[#allocation12 + $0x28] sm:$0xff]
      %v936 = vld [vmem:[#allocation12 + $0x30] sm:$0xff]
      %v937 = vld [vmem:[#allocation12 + $0x38] sm:$0xff]
      %v938 = vld [vmem:[#allocation12 + $0x40] sm:$0xff]
      %v939 = vld [vmem:[#allocation12 + $0x48] sm:$0xff]
      %v940 = vld [vmem:[#allocation12 + $0x50] sm:$0xff]
      %v941 = vld [vmem:[#allocation12 + $0x58] sm:$0xff]
      %v942 = vld [vmem:[#allocation12 + $0x60] sm:$0xff]
      %v943 = vld [vmem:[#allocation12 + $0x68] sm:$0xff]
      %v944 = vld [vmem:[#allocation12 + $0x70] sm:$0xff]
      %v945 = vld [vmem:[#allocation12 + $0x78] sm:$0xff]
      %v946 = vld [vmem:[#allocation12 + $0x80] sm:$0xff]
      %v947 = vld [vmem:[#allocation12 + $0x88] sm:$0xff]
      %v948 = vld [vmem:[#allocation12 + $0x90] sm:$0xff]
      %v949 = vld [vmem:[#allocation12 + $0x98] sm:$0xff]
      %v950 = vld [vmem:[#allocation12 + $0xa0] sm:$0xff]
      %v951 = vld [vmem:[#allocation12 + $0xa8] sm:$0xff]
      %v952 = vld [vmem:[#allocation12 + $0xb0] sm:$0xff]
      %v953 = vld [vmem:[#allocation12 + $0xb8] sm:$0xff]
      %v954 = vld [vmem:[#allocation12 + $0xc0] sm:$0xff]
      %v955 = vld [vmem:[#allocation12 + $0xc8] sm:$0xff]
      %v956 = vld [vmem:[#allocation12 + $0xd0] sm:$0xff]
      %v957 = vld [vmem:[#allocation12 + $0xd8] sm:$0xff]
      %v958 = vld [vmem:[#allocation12 + $0xe0] sm:$0xff]
      %v959 = vld [vmem:[#allocation12 + $0xe8] sm:$0xff]
      %v960 = vld [vmem:[#allocation12 + $0xf0] sm:$0xff]
      %v961 = vld [vmem:[#allocation12 + $0xf8] sm:$0xff]
      %v962 = vld [vmem:[#allocation12 + $0x100] sm:$0xff]
      %v963 = vld [vmem:[#allocation12 + $0x108] sm:$0xff]
      %v964 = vld [vmem:[#allocation12 + $0x110] sm:$0xff]
      %v965 = vld [vmem:[#allocation12 + $0x118] sm:$0xff]
      %v966 = vld [vmem:[#allocation12 + $0x120] sm:$0xff]
      %v967 = vld [vmem:[#allocation12 + $0x128] sm:$0xff]
      %v968 = vld [vmem:[#allocation12 + $0x130] sm:$0xff]
      %v969 = vld [vmem:[#allocation12 + $0x138] sm:$0xff]
      %v970 = vld [vmem:[#allocation12 + $0x140] sm:$0xff]
      %v971 = vld [vmem:[#allocation12 + $0x148] sm:$0xff]
      %v972 = vld [vmem:[#allocation12 + $0x150] sm:$0xff]
      %v973 = vld [vmem:[#allocation12 + $0x158] sm:$0xff]
      %v974 = vld [vmem:[#allocation12 + $0x160] sm:$0xff]
      %v975 = vld [vmem:[#allocation12 + $0x168] sm:$0xff]
      %v976 = vld [vmem:[#allocation12 + $0x170] sm:$0xff]
      %v977 = vld [vmem:[#allocation12 + $0x178] sm:$0xff]
      %v978 = vld [vmem:[#allocation12 + $0x180] sm:$0xff]
      %v979 = vld [vmem:[#allocation12 + $0x188] sm:$0xff]
      %v980 = vld [vmem:[#allocation12 + $0x190] sm:$0xff]
      %v981 = vld [vmem:[#allocation12 + $0x198] sm:$0xff]
      %v982 = vld [vmem:[#allocation12 + $0x1a0] sm:$0xff]
      %v983 = vld [vmem:[#allocation12 + $0x1a8] sm:$0xff]
      %v984 = vld [vmem:[#allocation12 + $0x1b0] sm:$0xff]
      %v985 = vld [vmem:[#allocation12 + $0x1b8] sm:$0xff]
      %v986 = vld [vmem:[#allocation12 + $0x1c0] sm:$0xff]
      %v987 = vld [vmem:[#allocation12 + $0x1c8] sm:$0xff]
      %v988 = vld [vmem:[#allocation12 + $0x1d0] sm:$0xff]
      %v989 = vld [vmem:[#allocation12 + $0x1d8] sm:$0xff]
      %v990 = vld [vmem:[#allocation12 + $0x1e0] sm:$0xff]
      %v991 = vld [vmem:[#allocation12 + $0x1e8] sm:$0xff]
      %v992 = vld [vmem:[#allocation12 + $0x1f0] sm:$0xff]
      %v993 = vld [vmem:[#allocation12 + $0x1f8] sm:$0xff]
      %994 = vmatprep.subr.mxu0 %v931
      %995 = vmatpush1.msra.mxu0 %v930
      %996 = vmatprep.subr.mxu0 %v935
      %997 = vmatpush1.msra.mxu0 %v934
      %998 = vmatprep.subr.mxu0 %v939
      %999 = vmatpush1.msra.mxu0 %v938
      %1000 = vmatprep.subr.mxu0 %v943
      %1001 = vmatpush1.msra.mxu0 %v942
      %1002 = vmatprep.subr.mxu0 %v947
      %1003 = vmatpush1.msra.mxu0 %v946
      %1004 = vmatprep.subr.mxu0 %v951
      %1005 = vmatpush1.msra.mxu0 %v950
      %1006 = vmatprep.subr.mxu0 %v955
      %1007 = vmatpush1.msra.mxu0 %v954
      %1008 = vmatprep.subr.mxu0 %v959
      %1009 = vmatpush1.msra.mxu0 %v958
      %1010 = vmatprep.subr.mxu0 %v963
      %1011 = vmatpush1.msra.mxu0 %v962
      %1012 = vmatprep.subr.mxu0 %v967
      %1013 = vmatpush1.msra.mxu0 %v966
      %1014 = vmatprep.subr.mxu0 %v971
      %1015 = vmatpush1.msra.mxu0 %v970
      %1016 = vmatprep.subr.mxu0 %v975
      %1017 = vmatpush1.msra.mxu0 %v974
      %1018 = vmatprep.subr.mxu0 %v979
      %1019 = vmatpush1.msra.mxu0 %v978
      %1020 = vmatprep.subr.mxu0 %v983
      %1021 = vmatpush1.msra.mxu0 %v982
      %1022 = vmatprep.subr.mxu0 %v987
      %1023 = vmatpush1.msra.mxu0 %v986
      %1024 = vmatprep.subr.mxu0 %v991
      %1025 = vmatpush1.msra.mxu0 %v990
      %1026 = vmatprep.subr.mxu0 0.0
      %1027 = vmatpush1.msra.mxu0 0.0
      %1028 = vmatprep.subr.mxu0 0.0
      %1029 = vmatpush1.msra.mxu0 0.0
      %1030 = vmatprep.subr.mxu0 0.0
      %1031 = vmatpush1.msra.mxu0 0.0
      %1032 = vmatprep.subr.mxu0 0.0
      %1033 = vmatpush1.msra.mxu0 0.0
      %1034 = vmatprep.subr.mxu0 0.0
      %1035 = vmatpush1.msra.mxu0 0.0
      %1036 = vmatprep.subr.mxu0 0.0
      %1037 = vmatpush1.msra.mxu0 0.0
      %1038 = vmatprep.subr.mxu0 0.0
      %1039 = vmatpush1.msra.mxu0 0.0
      %1040 = vmatprep.subr.mxu0 0.0
      %1041 = vmatpush1.msra.mxu0 0.0
      %1042 = vmatprep.subr.mxu0 0.0
      %1043 = vmatpush1.msra.mxu0 0.0
      %1044 = vmatprep.subr.mxu0 0.0
      %1045 = vmatpush1.msra.mxu0 0.0
      %1046 = vmatprep.subr.mxu0 0.0
      %1047 = vmatpush1.msra.mxu0 0.0
      %1048 = vmatprep.subr.mxu0 0.0
      %1049 = vmatpush1.msra.mxu0 0.0
      %1050 = vmatprep.subr.mxu0 0.0
      %1051 = vmatpush1.msra.mxu0 0.0
      %1052 = vmatprep.subr.mxu0 0.0
      %1053 = vmatpush1.msra.mxu0 0.0
      %1054 = vmatprep.subr.mxu0 0.0
      %1055 = vmatpush1.msra.mxu0 0.0
      %1056 = vmatprep.subr.mxu0 0.0
      %1057 = vmatpush1.msra.mxu0 0.0
      %1058 = vmatprep.mubr.f32.mxu0 0.0
      %1059 = vmatmul.mubr.f32.gmra.mrb[0].mxu0 %v922
      %v1060 = vpop.f32.mrb[0].mxu0
      %v1061 = vadd.f32 0.0, %v1060
      %v1062 = vpop.f32.mrb[0].mxu0
      %v1063 = vadd.f32 0.0, %v1062
      %1064 = vdwg.mxu0
      %1065 = vmatprep.subr.mxu0 %v933
      %1066 = vmatpush1.msra.mxu0 %v932
      %1067 = vmatprep.subr.mxu0 %v937
      %1068 = vmatpush1.msra.mxu0 %v936
      %1069 = vmatprep.subr.mxu0 %v941
      %1070 = vmatpush1.msra.mxu0 %v940
      %1071 = vmatprep.subr.mxu0 %v945
      %1072 = vmatpush1.msra.mxu0 %v944
      %1073 = vmatprep.subr.mxu0 %v949
      %1074 = vmatpush1.msra.mxu0 %v948
      %1075 = vmatprep.subr.mxu0 %v953
      %1076 = vmatpush1.msra.mxu0 %v952
      %1077 = vmatprep.subr.mxu0 %v957
      %1078 = vmatpush1.msra.mxu0 %v956
      %1079 = vmatprep.subr.mxu0 %v961
      %1080 = vmatpush1.msra.mxu0 %v960
      %1081 = vmatprep.subr.mxu0 %v965
      %1082 = vmatpush1.msra.mxu0 %v964
      %1083 = vmatprep.subr.mxu0 %v969
      %1084 = vmatpush1.msra.mxu0 %v968
      %1085 = vmatprep.subr.mxu0 %v973
      %1086 = vmatpush1.msra.mxu0 %v972
      %1087 = vmatprep.subr.mxu0 %v977
      %1088 = vmatpush1.msra.mxu0 %v976
      %1089 = vmatprep.subr.mxu0 %v981
      %1090 = vmatpush1.msra.mxu0 %v980
      %1091 = vmatprep.subr.mxu0 %v985
      %1092 = vmatpush1.msra.mxu0 %v984
      %1093 = vmatprep.subr.mxu0 %v989
      %1094 = vmatpush1.msra.mxu0 %v988
      %1095 = vmatprep.subr.mxu0 %v993
      %1096 = vmatpush1.msra.mxu0 %v992
      %1097 = vmatprep.subr.mxu0 0.0
      %1098 = vmatpush1.msra.mxu0 0.0
      %1099 = vmatprep.subr.mxu0 0.0
      %1100 = vmatpush1.msra.mxu0 0.0
      %1101 = vmatprep.subr.mxu0 0.0
      %1102 = vmatpush1.msra.mxu0 0.0
      %1103 = vmatprep.subr.mxu0 0.0
      %1104 = vmatpush1.msra.mxu0 0.0
      %1105 = vmatprep.subr.mxu0 0.0
      %1106 = vmatpush1.msra.mxu0 0.0
      %1107 = vmatprep.subr.mxu0 0.0
      %1108 = vmatpush1.msra.mxu0 0.0
      %1109 = vmatprep.subr.mxu0 0.0
      %1110 = vmatpush1.msra.mxu0 0.0
      %1111 = vmatprep.subr.mxu0 0.0
      %1112 = vmatpush1.msra.mxu0 0.0
      %1113 = vmatprep.subr.mxu0 0.0
      %1114 = vmatpush1.msra.mxu0 0.0
      %1115 = vmatprep.subr.mxu0 0.0
      %1116 = vmatpush1.msra.mxu0 0.0
      %1117 = vmatprep.subr.mxu0 0.0
      %1118 = vmatpush1.msra.mxu0 0.0
      %1119 = vmatprep.subr.mxu0 0.0
      %1120 = vmatpush1.msra.mxu0 0.0
      %1121 = vmatprep.subr.mxu0 0.0
      %1122 = vmatpush1.msra.mxu0 0.0
      %1123 = vmatprep.subr.mxu0 0.0
      %1124 = vmatpush1.msra.mxu0 0.0
      %1125 = vmatprep.subr.mxu0 0.0
      %1126 = vmatpush1.msra.mxu0 0.0
      %1127 = vmatprep.subr.mxu0 0.0
      %1128 = vmatpush1.msra.mxu0 0.0
      %1129 = vmatprep.mubr.f32.mxu0 0.0
      %1130 = vmatmul.mubr.f32.gmra.mrb[0].mxu0 %v922
      %v1131 = vpop.f32.mrb[0].mxu0
      %v1132 = vadd.f32 0.0, %v1131
      %v1133 = vpop.f32.mrb[0].mxu0
      %v1134 = vadd.f32 0.0, %v1133
      %1135 = vdwg.mxu0
      %v1136 = vadd.f32 %v926, %v1061
      %v1137 = vadd.f32 %v927, %v1063
      %v1138 = vadd.f32 %v928, %v1132
      %v1139 = vadd.f32 %v929, %v1134
      %v1140 = vxor.u32 %v1136, 2147483648
      %v1141 = vxor.u32 %v1137, 2147483648
      %v1142 = vxor.u32 %v1138, 2147483648
      %v1143 = vmul.f32 %v1140, 1.442695
      %v1144 = vpow.pop %v1143
      %v1145 = vmul.f32 %v1141, 1.442695
      %v1146 = vpow.pop %v1145
      %v1147 = vmul.f32 %v1142, 1.442695
      %v1148 = vpow.pop %v1147
      %v1149 = vadd.f32 %v1144, 1.0
      %v1150 = vadd.f32 %v1146, 1.0
      %v1151 = vadd.f32 %v1148, 1.0
      %v1152 = vrcp.pop %v1149
      %v1153 = vmul.f32 1.0, %v1152
      %v1154 = vrcp.pop %v1150
      %v1155 = vmul.f32 1.0, %v1154
      %v1156 = vrcp.pop %v1151
      %v1157 = vmul.f32 1.0, %v1156
      %v1158 = vtanh.pop %v1139
      %v1159 = vmul.f32 %v1155, %v920
      %v1160 = vmul.f32 %v1153, %v1158
      %v1161 = vadd.f32 %v1159, %v1160
      %v1162 = vtanh.pop %v1161
      %v1163 = vmul.f32 %v1157, %v1162
      %s1164 = scalar_lea.vmem [#allocation5], 16
      %1165 = vst [vmem:[%s1164] sm:$0xff] %v1163
      %s1166 = scalar_lea.vmem [#allocation4], 96
      %v1167 = vld [vmem:[%s1166] sm:$0xff]
      %v1168 = vld [vmem:[%s1166 + $0x8] sm:$0xff]
      %v1169 = vld [vmem:[%s1166 + $0x10] sm:$0xff]
      %v1170 = vld [vmem:[%s1166 + $0x18] sm:$0xff]
      %v1171 = vld [vmem:[#allocation12] sm:$0xff]
      %v1172 = vld [vmem:[#allocation12 + $0x8] sm:$0xff]
      %v1173 = vld [vmem:[#allocation12 + $0x10] sm:$0xff]
      %v1174 = vld [vmem:[#allocation12 + $0x18] sm:$0xff]
      %v1175 = vld [vmem:[#allocation12 + $0x20] sm:$0xff]
      %v1176 = vld [vmem:[#allocation12 + $0x28] sm:$0xff]
      %v1177 = vld [vmem:[#allocation12 + $0x30] sm:$0xff]
      %v1178 = vld [vmem:[#allocation12 + $0x38] sm:$0xff]
      %v1179 = vld [vmem:[#allocation12 + $0x40] sm:$0xff]
      %v1180 = vld [vmem:[#allocation12 + $0x48] sm:$0xff]
      %v1181 = vld [vmem:[#allocation12 + $0x50] sm:$0xff]
      %v1182 = vld [vmem:[#allocation12 + $0x58] sm:$0xff]
      %v1183 = vld [vmem:[#allocation12 + $0x60] sm:$0xff]
      %v1184 = vld [vmem:[#allocation12 + $0x68] sm:$0xff]
      %v1185 = vld [vmem:[#allocation12 + $0x70] sm:$0xff]
      %v1186 = vld [vmem:[#allocation12 + $0x78] sm:$0xff]
      %v1187 = vld [vmem:[#allocation12 + $0x80] sm:$0xff]
      %v1188 = vld [vmem:[#allocation12 + $0x88] sm:$0xff]
      %v1189 = vld [vmem:[#allocation12 + $0x90] sm:$0xff]
      %v1190 = vld [vmem:[#allocation12 + $0x98] sm:$0xff]
      %v1191 = vld [vmem:[#allocation12 + $0xa0] sm:$0xff]
      %v1192 = vld [vmem:[#allocation12 + $0xa8] sm:$0xff]
      %v1193 = vld [vmem:[#allocation12 + $0xb0] sm:$0xff]
      %v1194 = vld [vmem:[#allocation12 + $0xb8] sm:$0xff]
      %v1195 = vld [vmem:[#allocation12 + $0xc0] sm:$0xff]
      %v1196 = vld [vmem:[#allocation12 + $0xc8] sm:$0xff]
      %v1197 = vld [vmem:[#allocation12 + $0xd0] sm:$0xff]
      %v1198 = vld [vmem:[#allocation12 + $0xd8] sm:$0xff]
      %v1199 = vld [vmem:[#allocation12 + $0xe0] sm:$0xff]
      %v1200 = vld [vmem:[#allocation12 + $0xe8] sm:$0xff]
      %v1201 = vld [vmem:[#allocation12 + $0xf0] sm:$0xff]
      %v1202 = vld [vmem:[#allocation12 + $0xf8] sm:$0xff]
      %v1203 = vld [vmem:[#allocation12 + $0x100] sm:$0xff]
      %v1204 = vld [vmem:[#allocation12 + $0x108] sm:$0xff]
      %v1205 = vld [vmem:[#allocation12 + $0x110] sm:$0xff]
      %v1206 = vld [vmem:[#allocation12 + $0x118] sm:$0xff]
      %v1207 = vld [vmem:[#allocation12 + $0x120] sm:$0xff]
      %v1208 = vld [vmem:[#allocation12 + $0x128] sm:$0xff]
      %v1209 = vld [vmem:[#allocation12 + $0x130] sm:$0xff]
      %v1210 = vld [vmem:[#allocation12 + $0x138] sm:$0xff]
      %v1211 = vld [vmem:[#allocation12 + $0x140] sm:$0xff]
      %v1212 = vld [vmem:[#allocation12 + $0x148] sm:$0xff]
      %v1213 = vld [vmem:[#allocation12 + $0x150] sm:$0xff]
      %v1214 = vld [vmem:[#allocation12 + $0x158] sm:$0xff]
      %v1215 = vld [vmem:[#allocation12 + $0x160] sm:$0xff]
      %v1216 = vld [vmem:[#allocation12 + $0x168] sm:$0xff]
      %v1217 = vld [vmem:[#allocation12 + $0x170] sm:$0xff]
      %v1218 = vld [vmem:[#allocation12 + $0x178] sm:$0xff]
      %v1219 = vld [vmem:[#allocation12 + $0x180] sm:$0xff]
      %v1220 = vld [vmem:[#allocation12 + $0x188] sm:$0xff]
      %v1221 = vld [vmem:[#allocation12 + $0x190] sm:$0xff]
      %v1222 = vld [vmem:[#allocation12 + $0x198] sm:$0xff]
      %v1223 = vld [vmem:[#allocation12 + $0x1a0] sm:$0xff]
      %v1224 = vld [vmem:[#allocation12 + $0x1a8] sm:$0xff]
      %v1225 = vld [vmem:[#allocation12 + $0x1b0] sm:$0xff]
      %v1226 = vld [vmem:[#allocation12 + $0x1b8] sm:$0xff]
      %v1227 = vld [vmem:[#allocation12 + $0x1c0] sm:$0xff]
      %v1228 = vld [vmem:[#allocation12 + $0x1c8] sm:$0xff]
      %v1229 = vld [vmem:[#allocation12 + $0x1d0] sm:$0xff]
      %v1230 = vld [vmem:[#allocation12 + $0x1d8] sm:$0xff]
      %v1231 = vld [vmem:[#allocation12 + $0x1e0] sm:$0xff]
      %v1232 = vld [vmem:[#allocation12 + $0x1e8] sm:$0xff]
      %v1233 = vld [vmem:[#allocation12 + $0x1f0] sm:$0xff]
      %v1234 = vld [vmem:[#allocation12 + $0x1f8] sm:$0xff]
      %1235 = vmatprep.subr.mxu0 %v1172
      %1236 = vmatpush1.msra.mxu0 %v1171
      %1237 = vmatprep.subr.mxu0 %v1176
      %1238 = vmatpush1.msra.mxu0 %v1175
      %1239 = vmatprep.subr.mxu0 %v1180
      %1240 = vmatpush1.msra.mxu0 %v1179
      %1241 = vmatprep.subr.mxu0 %v1184
      %1242 = vmatpush1.msra.mxu0 %v1183
      %1243 = vmatprep.subr.mxu0 %v1188
      %1244 = vmatpush1.msra.mxu0 %v1187
      %1245 = vmatprep.subr.mxu0 %v1192
      %1246 = vmatpush1.msra.mxu0 %v1191
      %1247 = vmatprep.subr.mxu0 %v1196
      %1248 = vmatpush1.msra.mxu0 %v1195
      %1249 = vmatprep.subr.mxu0 %v1200
      %1250 = vmatpush1.msra.mxu0 %v1199
      %1251 = vmatprep.subr.mxu0 %v1204
      %1252 = vmatpush1.msra.mxu0 %v1203
      %1253 = vmatprep.subr.mxu0 %v1208
      %1254 = vmatpush1.msra.mxu0 %v1207
      %1255 = vmatprep.subr.mxu0 %v1212
      %1256 = vmatpush1.msra.mxu0 %v1211
      %1257 = vmatprep.subr.mxu0 %v1216
      %1258 = vmatpush1.msra.mxu0 %v1215
      %1259 = vmatprep.subr.mxu0 %v1220
      %1260 = vmatpush1.msra.mxu0 %v1219
      %1261 = vmatprep.subr.mxu0 %v1224
      %1262 = vmatpush1.msra.mxu0 %v1223
      %1263 = vmatprep.subr.mxu0 %v1228
      %1264 = vmatpush1.msra.mxu0 %v1227
      %1265 = vmatprep.subr.mxu0 %v1232
      %1266 = vmatpush1.msra.mxu0 %v1231
      %1267 = vmatprep.subr.mxu0 0.0
      %1268 = vmatpush1.msra.mxu0 0.0
      %1269 = vmatprep.subr.mxu0 0.0
      %1270 = vmatpush1.msra.mxu0 0.0
      %1271 = vmatprep.subr.mxu0 0.0
      %1272 = vmatpush1.msra.mxu0 0.0
      %1273 = vmatprep.subr.mxu0 0.0
      %1274 = vmatpush1.msra.mxu0 0.0
      %1275 = vmatprep.subr.mxu0 0.0
      %1276 = vmatpush1.msra.mxu0 0.0
      %1277 = vmatprep.subr.mxu0 0.0
      %1278 = vmatpush1.msra.mxu0 0.0
      %1279 = vmatprep.subr.mxu0 0.0
      %1280 = vmatpush1.msra.mxu0 0.0
      %1281 = vmatprep.subr.mxu0 0.0
      %1282 = vmatpush1.msra.mxu0 0.0
      %1283 = vmatprep.subr.mxu0 0.0
      %1284 = vmatpush1.msra.mxu0 0.0
      %1285 = vmatprep.subr.mxu0 0.0
      %1286 = vmatpush1.msra.mxu0 0.0
      %1287 = vmatprep.subr.mxu0 0.0
      %1288 = vmatpush1.msra.mxu0 0.0
      %1289 = vmatprep.subr.mxu0 0.0
      %1290 = vmatpush1.msra.mxu0 0.0
      %1291 = vmatprep.subr.mxu0 0.0
      %1292 = vmatpush1.msra.mxu0 0.0
      %1293 = vmatprep.subr.mxu0 0.0
      %1294 = vmatpush1.msra.mxu0 0.0
      %1295 = vmatprep.subr.mxu0 0.0
      %1296 = vmatpush1.msra.mxu0 0.0
      %1297 = vmatprep.subr.mxu0 0.0
      %1298 = vmatpush1.msra.mxu0 0.0
      %1299 = vmatprep.mubr.f32.mxu0 0.0
      %1300 = vmatmul.mubr.f32.gmra.mrb[0].mxu0 %v1163
      %v1301 = vpop.f32.mrb[0].mxu0
      %v1302 = vadd.f32 0.0, %v1301
      %v1303 = vpop.f32.mrb[0].mxu0
      %v1304 = vadd.f32 0.0, %v1303
      %1305 = vdwg.mxu0
      %1306 = vmatprep.subr.mxu0 %v1174
      %1307 = vmatpush1.msra.mxu0 %v1173
      %1308 = vmatprep.subr.mxu0 %v1178
      %1309 = vmatpush1.msra.mxu0 %v1177
      %1310 = vmatprep.subr.mxu0 %v1182
      %1311 = vmatpush1.msra.mxu0 %v1181
      %1312 = vmatprep.subr.mxu0 %v1186
      %1313 = vmatpush1.msra.mxu0 %v1185
      %1314 = vmatprep.subr.mxu0 %v1190
      %1315 = vmatpush1.msra.mxu0 %v1189
      %1316 = vmatprep.subr.mxu0 %v1194
      %1317 = vmatpush1.msra.mxu0 %v1193
      %1318 = vmatprep.subr.mxu0 %v1198
      %1319 = vmatpush1.msra.mxu0 %v1197
      %1320 = vmatprep.subr.mxu0 %v1202
      %1321 = vmatpush1.msra.mxu0 %v1201
      %1322 = vmatprep.subr.mxu0 %v1206
      %1323 = vmatpush1.msra.mxu0 %v1205
      %1324 = vmatprep.subr.mxu0 %v1210
      %1325 = vmatpush1.msra.mxu0 %v1209
      %1326 = vmatprep.subr.mxu0 %v1214
      %1327 = vmatpush1.msra.mxu0 %v1213
      %1328 = vmatprep.subr.mxu0 %v1218
      %1329 = vmatpush1.msra.mxu0 %v1217
      %1330 = vmatprep.subr.mxu0 %v1222
      %1331 = vmatpush1.msra.mxu0 %v1221
      %1332 = vmatprep.subr.mxu0 %v1226
      %1333 = vmatpush1.msra.mxu0 %v1225
      %1334 = vmatprep.subr.mxu0 %v1230
      %1335 = vmatpush1.msra.mxu0 %v1229
      %1336 = vmatprep.subr.mxu0 %v1234
      %1337 = vmatpush1.msra.mxu0 %v1233
      %1338 = vmatprep.subr.mxu0 0.0
      %1339 = vmatpush1.msra.mxu0 0.0
      %1340 = vmatprep.subr.mxu0 0.0
      %1341 = vmatpush1.msra.mxu0 0.0
      %1342 = vmatprep.subr.mxu0 0.0
      %1343 = vmatpush1.msra.mxu0 0.0
      %1344 = vmatprep.subr.mxu0 0.0
      %1345 = vmatpush1.msra.mxu0 0.0
      %1346 = vmatprep.subr.mxu0 0.0
      %1347 = vmatpush1.msra.mxu0 0.0
      %1348 = vmatprep.subr.mxu0 0.0
      %1349 = vmatpush1.msra.mxu0 0.0
      %1350 = vmatprep.subr.mxu0 0.0
      %1351 = vmatpush1.msra.mxu0 0.0
      %1352 = vmatprep.subr.mxu0 0.0
      %1353 = vmatpush1.msra.mxu0 0.0
      %1354 = vmatprep.subr.mxu0 0.0
      %1355 = vmatpush1.msra.mxu0 0.0
      %1356 = vmatprep.subr.mxu0 0.0
      %1357 = vmatpush1.msra.mxu0 0.0
      %1358 = vmatprep.subr.mxu0 0.0
      %1359 = vmatpush1.msra.mxu0 0.0
      %1360 = vmatprep.subr.mxu0 0.0
      %1361 = vmatpush1.msra.mxu0 0.0
      %1362 = vmatprep.subr.mxu0 0.0
      %1363 = vmatpush1.msra.mxu0 0.0
      %1364 = vmatprep.subr.mxu0 0.0
      %1365 = vmatpush1.msra.mxu0 0.0
      %1366 = vmatprep.subr.mxu0 0.0
      %1367 = vmatpush1.msra.mxu0 0.0
      %1368 = vmatprep.subr.mxu0 0.0
      %1369 = vmatpush1.msra.mxu0 0.0
      %1370 = vmatprep.mubr.f32.mxu0 0.0
      %1371 = vmatmul.mubr.f32.gmra.mrb[0].mxu0 %v1163
      %v1372 = vpop.f32.mrb[0].mxu0
      %v1373 = vadd.f32 0.0, %v1372
      %v1374 = vpop.f32.mrb[0].mxu0
      %v1375 = vadd.f32 0.0, %v1374
      %1376 = vdwg.mxu0
      %v1377 = vadd.f32 %v1167, %v1302
      %v1378 = vadd.f32 %v1168, %v1304
      %v1379 = vadd.f32 %v1169, %v1373
      %v1380 = vadd.f32 %v1170, %v1375
      %v1381 = vxor.u32 %v1377, 2147483648
      %v1382 = vxor.u32 %v1378, 2147483648
      %v1383 = vxor.u32 %v1379, 2147483648
      %v1384 = vmul.f32 %v1381, 1.442695
      %v1385 = vpow.pop %v1384
      %v1386 = vmul.f32 %v1382, 1.442695
      %v1387 = vpow.pop %v1386
      %v1388 = vmul.f32 %v1383, 1.442695
      %v1389 = vpow.pop %v1388
      %v1390 = vadd.f32 %v1385, 1.0
      %v1391 = vadd.f32 %v1387, 1.0
      %v1392 = vadd.f32 %v1389, 1.0
      %v1393 = vrcp.pop %v1390
      %v1394 = vmul.f32 1.0, %v1393
      %v1395 = vrcp.pop %v1391
      %v1396 = vmul.f32 1.0, %v1395
      %v1397 = vrcp.pop %v1392
      %v1398 = vmul.f32 1.0, %v1397
      %v1399 = vtanh.pop %v1380
      %v1400 = vmul.f32 %v1396, %v1161
      %v1401 = vmul.f32 %v1394, %v1399
      %v1402 = vadd.f32 %v1400, %v1401
      %v1403 = vtanh.pop %v1402
      %v1404 = vmul.f32 %v1398, %v1403
      %s1405 = scalar_lea.vmem [#allocation5], 24
      %1406 = vst [vmem:[%s1405] sm:$0xff] %v1404
      %s1407 = scalar_lea.vmem [#allocation4], 128
      %v1408 = vld [vmem:[%s1407] sm:$0xff]
      %v1409 = vld [vmem:[%s1407 + $0x8] sm:$0xff]
      %v1410 = vld [vmem:[%s1407 + $0x10] sm:$0xff]
      %v1411 = vld [vmem:[%s1407 + $0x18] sm:$0xff]
      %v1412 = vld [vmem:[#allocation12] sm:$0xff]
      %v1413 = vld [vmem:[#allocation12 + $0x8] sm:$0xff]
      %v1414 = vld [vmem:[#allocation12 + $0x10] sm:$0xff]
      %v1415 = vld [vmem:[#allocation12 + $0x18] sm:$0xff]
      %v1416 = vld [vmem:[#allocation12 + $0x20] sm:$0xff]
      %v1417 = vld [vmem:[#allocation12 + $0x28] sm:$0xff]
      %v1418 = vld [vmem:[#allocation12 + $0x30] sm:$0xff]
      %v1419 = vld [vmem:[#allocation12 + $0x38] sm:$0xff]
      %v1420 = vld [vmem:[#allocation12 + $0x40] sm:$0xff]
      %v1421 = vld [vmem:[#allocation12 + $0x48] sm:$0xff]
      %v1422 = vld [vmem:[#allocation12 + $0x50] sm:$0xff]
      %v1423 = vld [vmem:[#allocation12 + $0x58] sm:$0xff]
      %v1424 = vld [vmem:[#allocation12 + $0x60] sm:$0xff]
      %v1425 = vld [vmem:[#allocation12 + $0x68] sm:$0xff]
      %v1426 = vld [vmem:[#allocation12 + $0x70] sm:$0xff]
      %v1427 = vld [vmem:[#allocation12 + $0x78] sm:$0xff]
      %v1428 = vld [vmem:[#allocation12 + $0x80] sm:$0xff]
      %v1429 = vld [vmem:[#allocation12 + $0x88] sm:$0xff]
      %v1430 = vld [vmem:[#allocation12 + $0x90] sm:$0xff]
      %v1431 = vld [vmem:[#allocation12 + $0x98] sm:$0xff]
      %v1432 = vld [vmem:[#allocation12 + $0xa0] sm:$0xff]
      %v1433 = vld [vmem:[#allocation12 + $0xa8] sm:$0xff]
      %v1434 = vld [vmem:[#allocation12 + $0xb0] sm:$0xff]
      %v1435 = vld [vmem:[#allocation12 + $0xb8] sm:$0xff]
      %v1436 = vld [vmem:[#allocation12 + $0xc0] sm:$0xff]
      %v1437 = vld [vmem:[#allocation12 + $0xc8] sm:$0xff]
      %v1438 = vld [vmem:[#allocation12 + $0xd0] sm:$0xff]
      %v1439 = vld [vmem:[#allocation12 + $0xd8] sm:$0xff]
      %v1440 = vld [vmem:[#allocation12 + $0xe0] sm:$0xff]
      %v1441 = vld [vmem:[#allocation12 + $0xe8] sm:$0xff]
      %v1442 = vld [vmem:[#allocation12 + $0xf0] sm:$0xff]
      %v1443 = vld [vmem:[#allocation12 + $0xf8] sm:$0xff]
      %v1444 = vld [vmem:[#allocation12 + $0x100] sm:$0xff]
      %v1445 = vld [vmem:[#allocation12 + $0x108] sm:$0xff]
      %v1446 = vld [vmem:[#allocation12 + $0x110] sm:$0xff]
      %v1447 = vld [vmem:[#allocation12 + $0x118] sm:$0xff]
      %v1448 = vld [vmem:[#allocation12 + $0x120] sm:$0xff]
      %v1449 = vld [vmem:[#allocation12 + $0x128] sm:$0xff]
      %v1450 = vld [vmem:[#allocation12 + $0x130] sm:$0xff]
      %v1451 = vld [vmem:[#allocation12 + $0x138] sm:$0xff]
      %v1452 = vld [vmem:[#allocation12 + $0x140] sm:$0xff]
      %v1453 = vld [vmem:[#allocation12 + $0x148] sm:$0xff]
      %v1454 = vld [vmem:[#allocation12 + $0x150] sm:$0xff]
      %v1455 = vld [vmem:[#allocation12 + $0x158] sm:$0xff]
      %v1456 = vld [vmem:[#allocation12 + $0x160] sm:$0xff]
      %v1457 = vld [vmem:[#allocation12 + $0x168] sm:$0xff]
      %v1458 = vld [vmem:[#allocation12 + $0x170] sm:$0xff]
      %v1459 = vld [vmem:[#allocation12 + $0x178] sm:$0xff]
      %v1460 = vld [vmem:[#allocation12 + $0x180] sm:$0xff]
      %v1461 = vld [vmem:[#allocation12 + $0x188] sm:$0xff]
      %v1462 = vld [vmem:[#allocation12 + $0x190] sm:$0xff]
      %v1463 = vld [vmem:[#allocation12 + $0x198] sm:$0xff]
      %v1464 = vld [vmem:[#allocation12 + $0x1a0] sm:$0xff]
      %v1465 = vld [vmem:[#allocation12 + $0x1a8] sm:$0xff]
      %v1466 = vld [vmem:[#allocation12 + $0x1b0] sm:$0xff]
      %v1467 = vld [vmem:[#allocation12 + $0x1b8] sm:$0xff]
      %v1468 = vld [vmem:[#allocation12 + $0x1c0] sm:$0xff]
      %v1469 = vld [vmem:[#allocation12 + $0x1c8] sm:$0xff]
      %v1470 = vld [vmem:[#allocation12 + $0x1d0] sm:$0xff]
      %v1471 = vld [vmem:[#allocation12 + $0x1d8] sm:$0xff]
      %v1472 = vld [vmem:[#allocation12 + $0x1e0] sm:$0xff]
      %v1473 = vld [vmem:[#allocation12 + $0x1e8] sm:$0xff]
      %v1474 = vld [vmem:[#allocation12 + $0x1f0] sm:$0xff]
      %v1475 = vld [vmem:[#allocation12 + $0x1f8] sm:$0xff]
      %1476 = vmatprep.subr.mxu0 %v1413
      %1477 = vmatpush1.msra.mxu0 %v1412
      %1478 = vmatprep.subr.mxu0 %v1417
      %1479 = vmatpush1.msra.mxu0 %v1416
      %1480 = vmatprep.subr.mxu0 %v1421
      %1481 = vmatpush1.msra.mxu0 %v1420
      %1482 = vmatprep.subr.mxu0 %v1425
      %1483 = vmatpush1.msra.mxu0 %v1424
      %1484 = vmatprep.subr.mxu0 %v1429
      %1485 = vmatpush1.msra.mxu0 %v1428
      %1486 = vmatprep.subr.mxu0 %v1433
      %1487 = vmatpush1.msra.mxu0 %v1432
      %1488 = vmatprep.subr.mxu0 %v1437
      %1489 = vmatpush1.msra.mxu0 %v1436
      %1490 = vmatprep.subr.mxu0 %v1441
      %1491 = vmatpush1.msra.mxu0 %v1440
      %1492 = vmatprep.subr.mxu0 %v1445
      %1493 = vmatpush1.msra.mxu0 %v1444
      %1494 = vmatprep.subr.mxu0 %v1449
      %1495 = vmatpush1.msra.mxu0 %v1448
      %1496 = vmatprep.subr.mxu0 %v1453
      %1497 = vmatpush1.msra.mxu0 %v1452
      %1498 = vmatprep.subr.mxu0 %v1457
      %1499 = vmatpush1.msra.mxu0 %v1456
      %1500 = vmatprep.subr.mxu0 %v1461
      %1501 = vmatpush1.msra.mxu0 %v1460
      %1502 = vmatprep.subr.mxu0 %v1465
      %1503 = vmatpush1.msra.mxu0 %v1464
      %1504 = vmatprep.subr.mxu0 %v1469
      %1505 = vmatpush1.msra.mxu0 %v1468
      %1506 = vmatprep.subr.mxu0 %v1473
      %1507 = vmatpush1.msra.mxu0 %v1472
      %1508 = vmatprep.subr.mxu0 0.0
      %1509 = vmatpush1.msra.mxu0 0.0
      %1510 = vmatprep.subr.mxu0 0.0
      %1511 = vmatpush1.msra.mxu0 0.0
      %1512 = vmatprep.subr.mxu0 0.0
      %1513 = vmatpush1.msra.mxu0 0.0
      %1514 = vmatprep.subr.mxu0 0.0
      %1515 = vmatpush1.msra.mxu0 0.0
      %1516 = vmatprep.subr.mxu0 0.0
      %1517 = vmatpush1.msra.mxu0 0.0
      %1518 = vmatprep.subr.mxu0 0.0
      %1519 = vmatpush1.msra.mxu0 0.0
      %1520 = vmatprep.subr.mxu0 0.0
      %1521 = vmatpush1.msra.mxu0 0.0
      %1522 = vmatprep.subr.mxu0 0.0
      %1523 = vmatpush1.msra.mxu0 0.0
      %1524 = vmatprep.subr.mxu0 0.0
      %1525 = vmatpush1.msra.mxu0 0.0
      %1526 = vmatprep.subr.mxu0 0.0
      %1527 = vmatpush1.msra.mxu0 0.0
      %1528 = vmatprep.subr.mxu0 0.0
      %1529 = vmatpush1.msra.mxu0 0.0
      %1530 = vmatprep.subr.mxu0 0.0
      %1531 = vmatpush1.msra.mxu0 0.0
      %1532 = vmatprep.subr.mxu0 0.0
      %1533 = vmatpush1.msra.mxu0 0.0
      %1534 = vmatprep.subr.mxu0 0.0
      %1535 = vmatpush1.msra.mxu0 0.0
      %1536 = vmatprep.subr.mxu0 0.0
      %1537 = vmatpush1.msra.mxu0 0.0
      %1538 = vmatprep.subr.mxu0 0.0
      %1539 = vmatpush1.msra.mxu0 0.0
      %1540 = vmatprep.mubr.f32.mxu0 0.0
      %1541 = vmatmul.mubr.f32.gmra.mrb[0].mxu0 %v1404
      %v1542 = vpop.f32.mrb[0].mxu0
      %v1543 = vadd.f32 0.0, %v1542
      %v1544 = vpop.f32.mrb[0].mxu0
      %v1545 = vadd.f32 0.0, %v1544
      %1546 = vdwg.mxu0
      %1547 = vmatprep.subr.mxu0 %v1415
      %1548 = vmatpush1.msra.mxu0 %v1414
      %1549 = vmatprep.subr.mxu0 %v1419
      %1550 = vmatpush1.msra.mxu0 %v1418
      %1551 = vmatprep.subr.mxu0 %v1423
      %1552 = vmatpush1.msra.mxu0 %v1422
      %1553 = vmatprep.subr.mxu0 %v1427
      %1554 = vmatpush1.msra.mxu0 %v1426
      %1555 = vmatprep.subr.mxu0 %v1431
      %1556 = vmatpush1.msra.mxu0 %v1430
      %1557 = vmatprep.subr.mxu0 %v1435
      %1558 = vmatpush1.msra.mxu0 %v1434
      %1559 = vmatprep.subr.mxu0 %v1439
      %1560 = vmatpush1.msra.mxu0 %v1438
      %1561 = vmatprep.subr.mxu0 %v1443
      %1562 = vmatpush1.msra.mxu0 %v1442
      %1563 = vmatprep.subr.mxu0 %v1447
      %1564 = vmatpush1.msra.mxu0 %v1446
      %1565 = vmatprep.subr.mxu0 %v1451
      %1566 = vmatpush1.msra.mxu0 %v1450
      %1567 = vmatprep.subr.mxu0 %v1455
      %1568 = vmatpush1.msra.mxu0 %v1454
      %1569 = vmatprep.subr.mxu0 %v1459
      %1570 = vmatpush1.msra.mxu0 %v1458
      %1571 = vmatprep.subr.mxu0 %v1463
      %1572 = vmatpush1.msra.mxu0 %v1462
      %1573 = vmatprep.subr.mxu0 %v1467
      %1574 = vmatpush1.msra.mxu0 %v1466
      %1575 = vmatprep.subr.mxu0 %v1471
      %1576 = vmatpush1.msra.mxu0 %v1470
      %1577 = vmatprep.subr.mxu0 %v1475
      %1578 = vmatpush1.msra.mxu0 %v1474
      %1579 = vmatprep.subr.mxu0 0.0
      %1580 = vmatpush1.msra.mxu0 0.0
      %1581 = vmatprep.subr.mxu0 0.0
      %1582 = vmatpush1.msra.mxu0 0.0
      %1583 = vmatprep.subr.mxu0 0.0
      %1584 = vmatpush1.msra.mxu0 0.0
      %1585 = vmatprep.subr.mxu0 0.0
      %1586 = vmatpush1.msra.mxu0 0.0
      %1587 = vmatprep.subr.mxu0 0.0
      %1588 = vmatpush1.msra.mxu0 0.0
      %1589 = vmatprep.subr.mxu0 0.0
      %1590 = vmatpush1.msra.mxu0 0.0
      %1591 = vmatprep.subr.mxu0 0.0
      %1592 = vmatpush1.msra.mxu0 0.0
      %1593 = vmatprep.subr.mxu0 0.0
      %1594 = vmatpush1.msra.mxu0 0.0
      %1595 = vmatprep.subr.mxu0 0.0
      %1596 = vmatpush1.msra.mxu0 0.0
      %1597 = vmatprep.subr.mxu0 0.0
      %1598 = vmatpush1.msra.mxu0 0.0
      %1599 = vmatprep.subr.mxu0 0.0
      %1600 = vmatpush1.msra.mxu0 0.0
      %1601 = vmatprep.subr.mxu0 0.0
      %1602 = vmatpush1.msra.mxu0 0.0
      %1603 = vmatprep.subr.mxu0 0.0
      %1604 = vmatpush1.msra.mxu0 0.0
      %1605 = vmatprep.subr.mxu0 0.0
      %1606 = vmatpush1.msra.mxu0 0.0
      %1607 = vmatprep.subr.mxu0 0.0
      %1608 = vmatpush1.msra.mxu0 0.0
      %1609 = vmatprep.subr.mxu0 0.0
      %1610 = vmatpush1.msra.mxu0 0.0
      %1611 = vmatprep.mubr.f32.mxu0 0.0
      %1612 = vmatmul.mubr.f32.gmra.mrb[0].mxu0 %v1404
      %v1613 = vpop.f32.mrb[0].mxu0
      %v1614 = vadd.f32 0.0, %v1613
      %v1615 = vpop.f32.mrb[0].mxu0
      %v1616 = vadd.f32 0.0, %v1615
      %1617 = vdwg.mxu0
      %v1618 = vadd.f32 %v1408, %v1543
      %v1619 = vadd.f32 %v1409, %v1545
      %v1620 = vadd.f32 %v1410, %v1614
      %v1621 = vadd.f32 %v1411, %v1616
      %v1622 = vxor.u32 %v1618, 2147483648
      %v1623 = vxor.u32 %v1619, 2147483648
      %v1624 = vxor.u32 %v1620, 2147483648
      %v1625 = vmul.f32 %v1622, 1.442695
      %v1626 = vpow.pop %v1625
      %v1627 = vmul.f32 %v1623, 1.442695
      %v1628 = vpow.pop %v1627
      %v1629 = vmul.f32 %v1624, 1.442695
      %v1630 = vpow.pop %v1629
      %v1631 = vadd.f32 %v1626, 1.0
      %v1632 = vadd.f32 %v1628, 1.0
      %v1633 = vadd.f32 %v1630, 1.0
      %v1634 = vrcp.pop %v1631
      %v1635 = vmul.f32 1.0, %v1634
      %v1636 = vrcp.pop %v1632
      %v1637 = vmul.f32 1.0, %v1636
      %v1638 = vrcp.pop %v1633
      %v1639 = vmul.f32 1.0, %v1638
      %v1640 = vtanh.pop %v1621
      %v1641 = vmul.f32 %v1637, %v1402
      %v1642 = vmul.f32 %v1635, %v1640
      %v1643 = vadd.f32 %v1641, %v1642
      %v1644 = vtanh.pop %v1643
      %v1645 = vmul.f32 %v1639, %v1644
      %s1646 = scalar_lea.vmem [#allocation5], 32
      %1647 = vst [vmem:[%s1646] sm:$0xff] %v1645
      %s1648 = scalar_lea.vmem [#allocation4], 160
      %v1649 = vld [vmem:[%s1648] sm:$0xff]
      %v1650 = vld [vmem:[%s1648 + $0x8] sm:$0xff]
      %v1651 = vld [vmem:[%s1648 + $0x10] sm:$0xff]
      %v1652 = vld [vmem:[%s1648 + $0x18] sm:$0xff]
      %v1653 = vld [vmem:[#allocation12] sm:$0xff]
      %v1654 = vld [vmem:[#allocation12 + $0x8] sm:$0xff]
      %v1655 = vld [vmem:[#allocation12 + $0x10] sm:$0xff]
      %v1656 = vld [vmem:[#allocation12 + $0x18] sm:$0xff]
      %v1657 = vld [vmem:[#allocation12 + $0x20] sm:$0xff]
      %v1658 = vld [vmem:[#allocation12 + $0x28] sm:$0xff]
      %v1659 = vld [vmem:[#allocation12 + $0x30] sm:$0xff]
      %v1660 = vld [vmem:[#allocation12 + $0x38] sm:$0xff]
      %v1661 = vld [vmem:[#allocation12 + $0x40] sm:$0xff]
      %v1662 = vld [vmem:[#allocation12 + $0x48] sm:$0xff]
      %v1663 = vld [vmem:[#allocation12 + $0x50] sm:$0xff]
      %v1664 = vld [vmem:[#allocation12 + $0x58] sm:$0xff]
      %v1665 = vld [vmem:[#allocation12 + $0x60] sm:$0xff]
      %v1666 = vld [vmem:[#allocation12 + $0x68] sm:$0xff]
      %v1667 = vld [vmem:[#allocation12 + $0x70] sm:$0xff]
      %v1668 = vld [vmem:[#allocation12 + $0x78] sm:$0xff]
      %v1669 = vld [vmem:[#allocation12 + $0x80] sm:$0xff]
      %v1670 = vld [vmem:[#allocation12 + $0x88] sm:$0xff]
      %v1671 = vld [vmem:[#allocation12 + $0x90] sm:$0xff]
      %v1672 = vld [vmem:[#allocation12 + $0x98] sm:$0xff]
      %v1673 = vld [vmem:[#allocation12 + $0xa0] sm:$0xff]
      %v1674 = vld [vmem:[#allocation12 + $0xa8] sm:$0xff]
      %v1675 = vld [vmem:[#allocation12 + $0xb0] sm:$0xff]
      %v1676 = vld [vmem:[#allocation12 + $0xb8] sm:$0xff]
      %v1677 = vld [vmem:[#allocation12 + $0xc0] sm:$0xff]
      %v1678 = vld [vmem:[#allocation12 + $0xc8] sm:$0xff]
      %v1679 = vld [vmem:[#allocation12 + $0xd0] sm:$0xff]
      %v1680 = vld [vmem:[#allocation12 + $0xd8] sm:$0xff]
      %v1681 = vld [vmem:[#allocation12 + $0xe0] sm:$0xff]
      %v1682 = vld [vmem:[#allocation12 + $0xe8] sm:$0xff]
      %v1683 = vld [vmem:[#allocation12 + $0xf0] sm:$0xff]
      %v1684 = vld [vmem:[#allocation12 + $0xf8] sm:$0xff]
      %v1685 = vld [vmem:[#allocation12 + $0x100] sm:$0xff]
      %v1686 = vld [vmem:[#allocation12 + $0x108] sm:$0xff]
      %v1687 = vld [vmem:[#allocation12 + $0x110] sm:$0xff]
      %v1688 = vld [vmem:[#allocation12 + $0x118] sm:$0xff]
      %v1689 = vld [vmem:[#allocation12 + $0x120] sm:$0xff]
      %v1690 = vld [vmem:[#allocation12 + $0x128] sm:$0xff]
      %v1691 = vld [vmem:[#allocation12 + $0x130] sm:$0xff]
      %v1692 = vld [vmem:[#allocation12 + $0x138] sm:$0xff]
      %v1693 = vld [vmem:[#allocation12 + $0x140] sm:$0xff]
      %v1694 = vld [vmem:[#allocation12 + $0x148] sm:$0xff]
      %v1695 = vld [vmem:[#allocation12 + $0x150] sm:$0xff]
      %v1696 = vld [vmem:[#allocation12 + $0x158] sm:$0xff]
      %v1697 = vld [vmem:[#allocation12 + $0x160] sm:$0xff]
      %v1698 = vld [vmem:[#allocation12 + $0x168] sm:$0xff]
      %v1699 = vld [vmem:[#allocation12 + $0x170] sm:$0xff]
      %v1700 = vld [vmem:[#allocation12 + $0x178] sm:$0xff]
      %v1701 = vld [vmem:[#allocation12 + $0x180] sm:$0xff]
      %v1702 = vld [vmem:[#allocation12 + $0x188] sm:$0xff]
      %v1703 = vld [vmem:[#allocation12 + $0x190] sm:$0xff]
      %v1704 = vld [vmem:[#allocation12 + $0x198] sm:$0xff]
      %v1705 = vld [vmem:[#allocation12 + $0x1a0] sm:$0xff]
      %v1706 = vld [vmem:[#allocation12 + $0x1a8] sm:$0xff]
      %v1707 = vld [vmem:[#allocation12 + $0x1b0] sm:$0xff]
      %v1708 = vld [vmem:[#allocation12 + $0x1b8] sm:$0xff]
      %v1709 = vld [vmem:[#allocation12 + $0x1c0] sm:$0xff]
      %v1710 = vld [vmem:[#allocation12 + $0x1c8] sm:$0xff]
      %v1711 = vld [vmem:[#allocation12 + $0x1d0] sm:$0xff]
      %v1712 = vld [vmem:[#allocation12 + $0x1d8] sm:$0xff]
      %v1713 = vld [vmem:[#allocation12 + $0x1e0] sm:$0xff]
      %v1714 = vld [vmem:[#allocation12 + $0x1e8] sm:$0xff]
      %v1715 = vld [vmem:[#allocation12 + $0x1f0] sm:$0xff]
      %v1716 = vld [vmem:[#allocation12 + $0x1f8] sm:$0xff]
      %1717 = vmatprep.subr.mxu0 %v1654
      %1718 = vmatpush1.msra.mxu0 %v1653
      %1719 = vmatprep.subr.mxu0 %v1658
      %1720 = vmatpush1.msra.mxu0 %v1657
      %1721 = vmatprep.subr.mxu0 %v1662
      %1722 = vmatpush1.msra.mxu0 %v1661
      %1723 = vmatprep.subr.mxu0 %v1666
      %1724 = vmatpush1.msra.mxu0 %v1665
      %1725 = vmatprep.subr.mxu0 %v1670
      %1726 = vmatpush1.msra.mxu0 %v1669
      %1727 = vmatprep.subr.mxu0 %v1674
      %1728 = vmatpush1.msra.mxu0 %v1673
      %1729 = vmatprep.subr.mxu0 %v1678
      %1730 = vmatpush1.msra.mxu0 %v1677
      %1731 = vmatprep.subr.mxu0 %v1682
      %1732 = vmatpush1.msra.mxu0 %v1681
      %1733 = vmatprep.subr.mxu0 %v1686
      %1734 = vmatpush1.msra.mxu0 %v1685
      %1735 = vmatprep.subr.mxu0 %v1690
      %1736 = vmatpush1.msra.mxu0 %v1689
      %1737 = vmatprep.subr.mxu0 %v1694
      %1738 = vmatpush1.msra.mxu0 %v1693
      %1739 = vmatprep.subr.mxu0 %v1698
      %1740 = vmatpush1.msra.mxu0 %v1697
      %1741 = vmatprep.subr.mxu0 %v1702
      %1742 = vmatpush1.msra.mxu0 %v1701
      %1743 = vmatprep.subr.mxu0 %v1706
      %1744 = vmatpush1.msra.mxu0 %v1705
      %1745 = vmatprep.subr.mxu0 %v1710
      %1746 = vmatpush1.msra.mxu0 %v1709
      %1747 = vmatprep.subr.mxu0 %v1714
      %1748 = vmatpush1.msra.mxu0 %v1713
      %1749 = vmatprep.subr.mxu0 0.0
      %1750 = vmatpush1.msra.mxu0 0.0
      %1751 = vmatprep.subr.mxu0 0.0
      %1752 = vmatpush1.msra.mxu0 0.0
      %1753 = vmatprep.subr.mxu0 0.0
      %1754 = vmatpush1.msra.mxu0 0.0
      %1755 = vmatprep.subr.mxu0 0.0
      %1756 = vmatpush1.msra.mxu0 0.0
      %1757 = vmatprep.subr.mxu0 0.0
      %1758 = vmatpush1.msra.mxu0 0.0
      %1759 = vmatprep.subr.mxu0 0.0
      %1760 = vmatpush1.msra.mxu0 0.0
      %1761 = vmatprep.subr.mxu0 0.0
      %1762 = vmatpush1.msra.mxu0 0.0
      %1763 = vmatprep.subr.mxu0 0.0
      %1764 = vmatpush1.msra.mxu0 0.0
      %1765 = vmatprep.subr.mxu0 0.0
      %1766 = vmatpush1.msra.mxu0 0.0
      %1767 = vmatprep.subr.mxu0 0.0
      %1768 = vmatpush1.msra.mxu0 0.0
      %1769 = vmatprep.subr.mxu0 0.0
      %1770 = vmatpush1.msra.mxu0 0.0
      %1771 = vmatprep.subr.mxu0 0.0
      %1772 = vmatpush1.msra.mxu0 0.0
      %1773 = vmatprep.subr.mxu0 0.0
      %1774 = vmatpush1.msra.mxu0 0.0
      %1775 = vmatprep.subr.mxu0 0.0
      %1776 = vmatpush1.msra.mxu0 0.0
      %1777 = vmatprep.subr.mxu0 0.0
      %1778 = vmatpush1.msra.mxu0 0.0
      %1779 = vmatprep.subr.mxu0 0.0
      %1780 = vmatpush1.msra.mxu0 0.0
      %1781 = vmatprep.mubr.f32.mxu0 0.0
      %1782 = vmatmul.mubr.f32.gmra.mrb[0].mxu0 %v1645
      %v1783 = vpop.f32.mrb[0].mxu0
      %v1784 = vadd.f32 0.0, %v1783
      %v1785 = vpop.f32.mrb[0].mxu0
      %v1786 = vadd.f32 0.0, %v1785
      %1787 = vdwg.mxu0
      %1788 = vmatprep.subr.mxu0 %v1656
      %1789 = vmatpush1.msra.mxu0 %v1655
      %1790 = vmatprep.subr.mxu0 %v1660
      %1791 = vmatpush1.msra.mxu0 %v1659
      %1792 = vmatprep.subr.mxu0 %v1664
      %1793 = vmatpush1.msra.mxu0 %v1663
      %1794 = vmatprep.subr.mxu0 %v1668
      %1795 = vmatpush1.msra.mxu0 %v1667
      %1796 = vmatprep.subr.mxu0 %v1672
      %1797 = vmatpush1.msra.mxu0 %v1671
      %1798 = vmatprep.subr.mxu0 %v1676
      %1799 = vmatpush1.msra.mxu0 %v1675
      %1800 = vmatprep.subr.mxu0 %v1680
      %1801 = vmatpush1.msra.mxu0 %v1679
      %1802 = vmatprep.subr.mxu0 %v1684
      %1803 = vmatpush1.msra.mxu0 %v1683
      %1804 = vmatprep.subr.mxu0 %v1688
      %1805 = vmatpush1.msra.mxu0 %v1687
      %1806 = vmatprep.subr.mxu0 %v1692
      %1807 = vmatpush1.msra.mxu0 %v1691
      %1808 = vmatprep.subr.mxu0 %v1696
      %1809 = vmatpush1.msra.mxu0 %v1695
      %1810 = vmatprep.subr.mxu0 %v1700
      %1811 = vmatpush1.msra.mxu0 %v1699
      %1812 = vmatprep.subr.mxu0 %v1704
      %1813 = vmatpush1.msra.mxu0 %v1703
      %1814 = vmatprep.subr.mxu0 %v1708
      %1815 = vmatpush1.msra.mxu0 %v1707
      %1816 = vmatprep.subr.mxu0 %v1712
      %1817 = vmatpush1.msra.mxu0 %v1711
      %1818 = vmatprep.subr.mxu0 %v1716
      %1819 = vmatpush1.msra.mxu0 %v1715
      %1820 = vmatprep.subr.mxu0 0.0
      %1821 = vmatpush1.msra.mxu0 0.0
      %1822 = vmatprep.subr.mxu0 0.0
      %1823 = vmatpush1.msra.mxu0 0.0
      %1824 = vmatprep.subr.mxu0 0.0
      %1825 = vmatpush1.msra.mxu0 0.0
      %1826 = vmatprep.subr.mxu0 0.0
      %1827 = vmatpush1.msra.mxu0 0.0
      %1828 = vmatprep.subr.mxu0 0.0
      %1829 = vmatpush1.msra.mxu0 0.0
      %1830 = vmatprep.subr.mxu0 0.0
      %1831 = vmatpush1.msra.mxu0 0.0
      %1832 = vmatprep.subr.mxu0 0.0
      %1833 = vmatpush1.msra.mxu0 0.0
      %1834 = vmatprep.subr.mxu0 0.0
      %1835 = vmatpush1.msra.mxu0 0.0
      %1836 = vmatprep.subr.mxu0 0.0
      %1837 = vmatpush1.msra.mxu0 0.0
      %1838 = vmatprep.subr.mxu0 0.0
      %1839 = vmatpush1.msra.mxu0 0.0
      %1840 = vmatprep.subr.mxu0 0.0
      %1841 = vmatpush1.msra.mxu0 0.0
      %1842 = vmatprep.subr.mxu0 0.0
      %1843 = vmatpush1.msra.mxu0 0.0
      %1844 = vmatprep.subr.mxu0 0.0
      %1845 = vmatpush1.msra.mxu0 0.0
      %1846 = vmatprep.subr.mxu0 0.0
      %1847 = vmatpush1.msra.mxu0 0.0
      %1848 = vmatprep.subr.mxu0 0.0
      %1849 = vmatpush1.msra.mxu0 0.0
      %1850 = vmatprep.subr.mxu0 0.0
      %1851 = vmatpush1.msra.mxu0 0.0
      %1852 = vmatprep.mubr.f32.mxu0 0.0
      %1853 = vmatmul.mubr.f32.gmra.mrb[0].mxu0 %v1645
      %v1854 = vpop.f32.mrb[0].mxu0
      %v1855 = vadd.f32 0.0, %v1854
      %v1856 = vpop.f32.mrb[0].mxu0
      %v1857 = vadd.f32 0.0, %v1856
      %1858 = vdwg.mxu0
      %v1859 = vadd.f32 %v1649, %v1784
      %v1860 = vadd.f32 %v1650, %v1786
      %v1861 = vadd.f32 %v1651, %v1855
      %v1862 = vadd.f32 %v1652, %v1857
      %v1863 = vxor.u32 %v1859, 2147483648
      %v1864 = vxor.u32 %v1860, 2147483648
      %v1865 = vxor.u32 %v1861, 2147483648
      %v1866 = vmul.f32 %v1863, 1.442695
      %v1867 = vpow.pop %v1866
      %v1868 = vmul.f32 %v1864, 1.442695
      %v1869 = vpow.pop %v1868
      %v1870 = vmul.f32 %v1865, 1.442695
      %v1871 = vpow.pop %v1870
      %v1872 = vadd.f32 %v1867, 1.0
      %v1873 = vadd.f32 %v1869, 1.0
      %v1874 = vadd.f32 %v1871, 1.0
      %v1875 = vrcp.pop %v1872
      %v1876 = vmul.f32 1.0, %v1875
      %v1877 = vrcp.pop %v1873
      %v1878 = vmul.f32 1.0, %v1877
      %v1879 = vrcp.pop %v1874
      %v1880 = vmul.f32 1.0, %v1879
      %v1881 = vtanh.pop %v1862
      %v1882 = vmul.f32 %v1878, %v1643
      %v1883 = vmul.f32 %v1876, %v1881
      %v1884 = vadd.f32 %v1882, %v1883
      %v1885 = vtanh.pop %v1884
      %v1886 = vmul.f32 %v1880, %v1885
      %s1887 = scalar_lea.vmem [#allocation5], 40
      %1888 = vst [vmem:[%s1887] sm:$0xff] %v1886
      %s1889 = scalar_lea.vmem [#allocation4], 192
      %v1890 = vld [vmem:[%s1889] sm:$0xff]
      %v1891 = vld [vmem:[%s1889 + $0x8] sm:$0xff]
      %v1892 = vld [vmem:[%s1889 + $0x10] sm:$0xff]
      %v1893 = vld [vmem:[%s1889 + $0x18] sm:$0xff]
      %v1894 = vld [vmem:[#allocation12] sm:$0xff]
      %v1895 = vld [vmem:[#allocation12 + $0x8] sm:$0xff]
      %v1896 = vld [vmem:[#allocation12 + $0x10] sm:$0xff]
      %v1897 = vld [vmem:[#allocation12 + $0x18] sm:$0xff]
      %v1898 = vld [vmem:[#allocation12 + $0x20] sm:$0xff]
      %v1899 = vld [vmem:[#allocation12 + $0x28] sm:$0xff]
      %v1900 = vld [vmem:[#allocation12 + $0x30] sm:$0xff]
      %v1901 = vld [vmem:[#allocation12 + $0x38] sm:$0xff]
      %v1902 = vld [vmem:[#allocation12 + $0x40] sm:$0xff]
      %v1903 = vld [vmem:[#allocation12 + $0x48] sm:$0xff]
      %v1904 = vld [vmem:[#allocation12 + $0x50] sm:$0xff]
      %v1905 = vld [vmem:[#allocation12 + $0x58] sm:$0xff]
      %v1906 = vld [vmem:[#allocation12 + $0x60] sm:$0xff]
      %v1907 = vld [vmem:[#allocation12 + $0x68] sm:$0xff]
      %v1908 = vld [vmem:[#allocation12 + $0x70] sm:$0xff]
      %v1909 = vld [vmem:[#allocation12 + $0x78] sm:$0xff]
      %v1910 = vld [vmem:[#allocation12 + $0x80] sm:$0xff]
      %v1911 = vld [vmem:[#allocation12 + $0x88] sm:$0xff]
      %v1912 = vld [vmem:[#allocation12 + $0x90] sm:$0xff]
      %v1913 = vld [vmem:[#allocation12 + $0x98] sm:$0xff]
      %v1914 = vld [vmem:[#allocation12 + $0xa0] sm:$0xff]
      %v1915 = vld [vmem:[#allocation12 + $0xa8] sm:$0xff]
      %v1916 = vld [vmem:[#allocation12 + $0xb0] sm:$0xff]
      %v1917 = vld [vmem:[#allocation12 + $0xb8] sm:$0xff]
      %v1918 = vld [vmem:[#allocation12 + $0xc0] sm:$0xff]
      %v1919 = vld [vmem:[#allocation12 + $0xc8] sm:$0xff]
      %v1920 = vld [vmem:[#allocation12 + $0xd0] sm:$0xff]
      %v1921 = vld [vmem:[#allocation12 + $0xd8] sm:$0xff]
      %v1922 = vld [vmem:[#allocation12 + $0xe0] sm:$0xff]
      %v1923 = vld [vmem:[#allocation12 + $0xe8] sm:$0xff]
      %v1924 = vld [vmem:[#allocation12 + $0xf0] sm:$0xff]
      %v1925 = vld [vmem:[#allocation12 + $0xf8] sm:$0xff]
      %v1926 = vld [vmem:[#allocation12 + $0x100] sm:$0xff]
      %v1927 = vld [vmem:[#allocation12 + $0x108] sm:$0xff]
      %v1928 = vld [vmem:[#allocation12 + $0x110] sm:$0xff]
      %v1929 = vld [vmem:[#allocation12 + $0x118] sm:$0xff]
      %v1930 = vld [vmem:[#allocation12 + $0x120] sm:$0xff]
      %v1931 = vld [vmem:[#allocation12 + $0x128] sm:$0xff]
      %v1932 = vld [vmem:[#allocation12 + $0x130] sm:$0xff]
      %v1933 = vld [vmem:[#allocation12 + $0x138] sm:$0xff]
      %v1934 = vld [vmem:[#allocation12 + $0x140] sm:$0xff]
      %v1935 = vld [vmem:[#allocation12 + $0x148] sm:$0xff]
      %v1936 = vld [vmem:[#allocation12 + $0x150] sm:$0xff]
      %v1937 = vld [vmem:[#allocation12 + $0x158] sm:$0xff]
      %v1938 = vld [vmem:[#allocation12 + $0x160] sm:$0xff]
      %v1939 = vld [vmem:[#allocation12 + $0x168] sm:$0xff]
      %v1940 = vld [vmem:[#allocation12 + $0x170] sm:$0xff]
      %v1941 = vld [vmem:[#allocation12 + $0x178] sm:$0xff]
      %v1942 = vld [vmem:[#allocation12 + $0x180] sm:$0xff]
      %v1943 = vld [vmem:[#allocation12 + $0x188] sm:$0xff]
      %v1944 = vld [vmem:[#allocation12 + $0x190] sm:$0xff]
      %v1945 = vld [vmem:[#allocation12 + $0x198] sm:$0xff]
      %v1946 = vld [vmem:[#allocation12 + $0x1a0] sm:$0xff]
      %v1947 = vld [vmem:[#allocation12 + $0x1a8] sm:$0xff]
      %v1948 = vld [vmem:[#allocation12 + $0x1b0] sm:$0xff]
      %v1949 = vld [vmem:[#allocation12 + $0x1b8] sm:$0xff]
      %v1950 = vld [vmem:[#allocation12 + $0x1c0] sm:$0xff]
      %v1951 = vld [vmem:[#allocation12 + $0x1c8] sm:$0xff]
      %v1952 = vld [vmem:[#allocation12 + $0x1d0] sm:$0xff]
      %v1953 = vld [vmem:[#allocation12 + $0x1d8] sm:$0xff]
      %v1954 = vld [vmem:[#allocation12 + $0x1e0] sm:$0xff]
      %v1955 = vld [vmem:[#allocation12 + $0x1e8] sm:$0xff]
      %v1956 = vld [vmem:[#allocation12 + $0x1f0] sm:$0xff]
      %v1957 = vld [vmem:[#allocation12 + $0x1f8] sm:$0xff]
      %1958 = vmatprep.subr.mxu0 %v1895
      %1959 = vmatpush1.msra.mxu0 %v1894
      %1960 = vmatprep.subr.mxu0 %v1899
      %1961 = vmatpush1.msra.mxu0 %v1898
      %1962 = vmatprep.subr.mxu0 %v1903
      %1963 = vmatpush1.msra.mxu0 %v1902
      %1964 = vmatprep.subr.mxu0 %v1907
      %1965 = vmatpush1.msra.mxu0 %v1906
      %1966 = vmatprep.subr.mxu0 %v1911
      %1967 = vmatpush1.msra.mxu0 %v1910
      %1968 = vmatprep.subr.mxu0 %v1915
      %1969 = vmatpush1.msra.mxu0 %v1914
      %1970 = vmatprep.subr.mxu0 %v1919
      %1971 = vmatpush1.msra.mxu0 %v1918
      %1972 = vmatprep.subr.mxu0 %v1923
      %1973 = vmatpush1.msra.mxu0 %v1922
      %1974 = vmatprep.subr.mxu0 %v1927
      %1975 = vmatpush1.msra.mxu0 %v1926
      %1976 = vmatprep.subr.mxu0 %v1931
      %1977 = vmatpush1.msra.mxu0 %v1930
      %1978 = vmatprep.subr.mxu0 %v1935
      %1979 = vmatpush1.msra.mxu0 %v1934
      %1980 = vmatprep.subr.mxu0 %v1939
      %1981 = vmatpush1.msra.mxu0 %v1938
      %1982 = vmatprep.subr.mxu0 %v1943
      %1983 = vmatpush1.msra.mxu0 %v1942
      %1984 = vmatprep.subr.mxu0 %v1947
      %1985 = vmatpush1.msra.mxu0 %v1946
      %1986 = vmatprep.subr.mxu0 %v1951
      %1987 = vmatpush1.msra.mxu0 %v1950
      %1988 = vmatprep.subr.mxu0 %v1955
      %1989 = vmatpush1.msra.mxu0 %v1954
      %1990 = vmatprep.subr.mxu0 0.0
      %1991 = vmatpush1.msra.mxu0 0.0
      %1992 = vmatprep.subr.mxu0 0.0
      %1993 = vmatpush1.msra.mxu0 0.0
      %1994 = vmatprep.subr.mxu0 0.0
      %1995 = vmatpush1.msra.mxu0 0.0
      %1996 = vmatprep.subr.mxu0 0.0
      %1997 = vmatpush1.msra.mxu0 0.0
      %1998 = vmatprep.subr.mxu0 0.0
      %1999 = vmatpush1.msra.mxu0 0.0
      %2000 = vmatprep.subr.mxu0 0.0
      %2001 = vmatpush1.msra.mxu0 0.0
      %2002 = vmatprep.subr.mxu0 0.0
      %2003 = vmatpush1.msra.mxu0 0.0
      %2004 = vmatprep.subr.mxu0 0.0
      %2005 = vmatpush1.msra.mxu0 0.0
      %2006 = vmatprep.subr.mxu0 0.0
      %2007 = vmatpush1.msra.mxu0 0.0
      %2008 = vmatprep.subr.mxu0 0.0
      %2009 = vmatpush1.msra.mxu0 0.0
      %2010 = vmatprep.subr.mxu0 0.0
      %2011 = vmatpush1.msra.mxu0 0.0
      %2012 = vmatprep.subr.mxu0 0.0
      %2013 = vmatpush1.msra.mxu0 0.0
      %2014 = vmatprep.subr.mxu0 0.0
      %2015 = vmatpush1.msra.mxu0 0.0
      %2016 = vmatprep.subr.mxu0 0.0
      %2017 = vmatpush1.msra.mxu0 0.0
      %2018 = vmatprep.subr.mxu0 0.0
      %2019 = vmatpush1.msra.mxu0 0.0
      %2020 = vmatprep.subr.mxu0 0.0
      %2021 = vmatpush1.msra.mxu0 0.0
      %2022 = vmatprep.mubr.f32.mxu0 0.0
      %2023 = vmatmul.mubr.f32.gmra.mrb[0].mxu0 %v1886
      %v2024 = vpop.f32.mrb[0].mxu0
      %v2025 = vadd.f32 0.0, %v2024
      %v2026 = vpop.f32.mrb[0].mxu0
      %v2027 = vadd.f32 0.0, %v2026
      %2028 = vdwg.mxu0
      %2029 = vmatprep.subr.mxu0 %v1897
      %2030 = vmatpush1.msra.mxu0 %v1896
      %2031 = vmatprep.subr.mxu0 %v1901
      %2032 = vmatpush1.msra.mxu0 %v1900
      %2033 = vmatprep.subr.mxu0 %v1905
      %2034 = vmatpush1.msra.mxu0 %v1904
      %2035 = vmatprep.subr.mxu0 %v1909
      %2036 = vmatpush1.msra.mxu0 %v1908
      %2037 = vmatprep.subr.mxu0 %v1913
      %2038 = vmatpush1.msra.mxu0 %v1912
      %2039 = vmatprep.subr.mxu0 %v1917
      %2040 = vmatpush1.msra.mxu0 %v1916
      %2041 = vmatprep.subr.mxu0 %v1921
      %2042 = vmatpush1.msra.mxu0 %v1920
      %2043 = vmatprep.subr.mxu0 %v1925
      %2044 = vmatpush1.msra.mxu0 %v1924
      %2045 = vmatprep.subr.mxu0 %v1929
      %2046 = vmatpush1.msra.mxu0 %v1928
      %2047 = vmatprep.subr.mxu0 %v1933
      %2048 = vmatpush1.msra.mxu0 %v1932
      %2049 = vmatprep.subr.mxu0 %v1937
      %2050 = vmatpush1.msra.mxu0 %v1936
      %2051 = vmatprep.subr.mxu0 %v1941
      %2052 = vmatpush1.msra.mxu0 %v1940
      %2053 = vmatprep.subr.mxu0 %v1945
      %2054 = vmatpush1.msra.mxu0 %v1944
      %2055 = vmatprep.subr.mxu0 %v1949
      %2056 = vmatpush1.msra.mxu0 %v1948
      %2057 = vmatprep.subr.mxu0 %v1953
      %2058 = vmatpush1.msra.mxu0 %v1952
      %2059 = vmatprep.subr.mxu0 %v1957
      %2060 = vmatpush1.msra.mxu0 %v1956
      %2061 = vmatprep.subr.mxu0 0.0
      %2062 = vmatpush1.msra.mxu0 0.0
      %2063 = vmatprep.subr.mxu0 0.0
      %2064 = vmatpush1.msra.mxu0 0.0
      %2065 = vmatprep.subr.mxu0 0.0
      %2066 = vmatpush1.msra.mxu0 0.0
      %2067 = vmatprep.subr.mxu0 0.0
      %2068 = vmatpush1.msra.mxu0 0.0
      %2069 = vmatprep.subr.mxu0 0.0
      %2070 = vmatpush1.msra.mxu0 0.0
      %2071 = vmatprep.subr.mxu0 0.0
      %2072 = vmatpush1.msra.mxu0 0.0
      %2073 = vmatprep.subr.mxu0 0.0
      %2074 = vmatpush1.msra.mxu0 0.0
      %2075 = vmatprep.subr.mxu0 0.0
      %2076 = vmatpush1.msra.mxu0 0.0
      %2077 = vmatprep.subr.mxu0 0.0
      %2078 = vmatpush1.msra.mxu0 0.0
      %2079 = vmatprep.subr.mxu0 0.0
      %2080 = vmatpush1.msra.mxu0 0.0
      %2081 = vmatprep.subr.mxu0 0.0
      %2082 = vmatpush1.msra.mxu0 0.0
      %2083 = vmatprep.subr.mxu0 0.0
      %2084 = vmatpush1.msra.mxu0 0.0
      %2085 = vmatprep.subr.mxu0 0.0
      %2086 = vmatpush1.msra.mxu0 0.0
      %2087 = vmatprep.subr.mxu0 0.0
      %2088 = vmatpush1.msra.mxu0 0.0
      %2089 = vmatprep.subr.mxu0 0.0
      %2090 = vmatpush1.msra.mxu0 0.0
      %2091 = vmatprep.subr.mxu0 0.0
      %2092 = vmatpush1.msra.mxu0 0.0
      %2093 = vmatprep.mubr.f32.mxu0 0.0
      %2094 = vmatmul.mubr.f32.gmra.mrb[0].mxu0 %v1886
      %v2095 = vpop.f32.mrb[0].mxu0
      %v2096 = vadd.f32 0.0, %v2095
      %v2097 = vpop.f32.mrb[0].mxu0
      %v2098 = vadd.f32 0.0, %v2097
      %2099 = vdwg.mxu0
      %v2100 = vadd.f32 %v1890, %v2025
      %v2101 = vadd.f32 %v1891, %v2027
      %v2102 = vadd.f32 %v1892, %v2096
      %v2103 = vadd.f32 %v1893, %v2098
      %v2104 = vxor.u32 %v2100, 2147483648
      %v2105 = vxor.u32 %v2101, 2147483648
      %v2106 = vxor.u32 %v2102, 2147483648
      %v2107 = vmul.f32 %v2104, 1.442695
      %v2108 = vpow.pop %v2107
      %v2109 = vmul.f32 %v2105, 1.442695
      %v2110 = vpow.pop %v2109
      %v2111 = vmul.f32 %v2106, 1.442695
      %v2112 = vpow.pop %v2111
      %v2113 = vadd.f32 %v2108, 1.0
      %v2114 = vadd.f32 %v2110, 1.0
      %v2115 = vadd.f32 %v2112, 1.0
      %v2116 = vrcp.pop %v2113
      %v2117 = vmul.f32 1.0, %v2116
      %v2118 = vrcp.pop %v2114
      %v2119 = vmul.f32 1.0, %v2118
      %v2120 = vrcp.pop %v2115
      %v2121 = vmul.f32 1.0, %v2120
      %v2122 = vtanh.pop %v2103
      %v2123 = vmul.f32 %v2119, %v1884
      %v2124 = vmul.f32 %v2117, %v2122
      %v2125 = vadd.f32 %v2123, %v2124
      %v2126 = vtanh.pop %v2125
      %v2127 = vmul.f32 %v2121, %v2126
      %s2128 = scalar_lea.vmem [#allocation5], 48
      %2129 = vst [vmem:[%s2128] sm:$0xff] %v2127
      %s2130 = scalar_lea.vmem [#allocation4], 224
      %v2131 = vld [vmem:[%s2130] sm:$0xff]
      %v2132 = vld [vmem:[%s2130 + $0x8] sm:$0xff]
      %v2133 = vld [vmem:[%s2130 + $0x10] sm:$0xff]
      %v2134 = vld [vmem:[%s2130 + $0x18] sm:$0xff]
      %v2135 = vld [vmem:[#allocation12] sm:$0xff]
      %v2136 = vld [vmem:[#allocation12 + $0x8] sm:$0xff]
      %v2137 = vld [vmem:[#allocation12 + $0x10] sm:$0xff]
      %v2138 = vld [vmem:[#allocation12 + $0x18] sm:$0xff]
      %v2139 = vld [vmem:[#allocation12 + $0x20] sm:$0xff]
      %v2140 = vld [vmem:[#allocation12 + $0x28] sm:$0xff]
      %v2141 = vld [vmem:[#allocation12 + $0x30] sm:$0xff]
      %v2142 = vld [vmem:[#allocation12 + $0x38] sm:$0xff]
      %v2143 = vld [vmem:[#allocation12 + $0x40] sm:$0xff]
      %v2144 = vld [vmem:[#allocation12 + $0x48] sm:$0xff]
      %v2145 = vld [vmem:[#allocation12 + $0x50] sm:$0xff]
      %v2146 = vld [vmem:[#allocation12 + $0x58] sm:$0xff]
      %v2147 = vld [vmem:[#allocation12 + $0x60] sm:$0xff]
      %v2148 = vld [vmem:[#allocation12 + $0x68] sm:$0xff]
      %v2149 = vld [vmem:[#allocation12 + $0x70] sm:$0xff]
      %v2150 = vld [vmem:[#allocation12 + $0x78] sm:$0xff]
      %v2151 = vld [vmem:[#allocation12 + $0x80] sm:$0xff]
      %v2152 = vld [vmem:[#allocation12 + $0x88] sm:$0xff]
      %v2153 = vld [vmem:[#allocation12 + $0x90] sm:$0xff]
      %v2154 = vld [vmem:[#allocation12 + $0x98] sm:$0xff]
      %v2155 = vld [vmem:[#allocation12 + $0xa0] sm:$0xff]
      %v2156 = vld [vmem:[#allocation12 + $0xa8] sm:$0xff]
      %v2157 = vld [vmem:[#allocation12 + $0xb0] sm:$0xff]
      %v2158 = vld [vmem:[#allocation12 + $0xb8] sm:$0xff]
      %v2159 = vld [vmem:[#allocation12 + $0xc0] sm:$0xff]
      %v2160 = vld [vmem:[#allocation12 + $0xc8] sm:$0xff]
      %v2161 = vld [vmem:[#allocation12 + $0xd0] sm:$0xff]
      %v2162 = vld [vmem:[#allocation12 + $0xd8] sm:$0xff]
      %v2163 = vld [vmem:[#allocation12 + $0xe0] sm:$0xff]
      %v2164 = vld [vmem:[#allocation12 + $0xe8] sm:$0xff]
      %v2165 = vld [vmem:[#allocation12 + $0xf0] sm:$0xff]
      %v2166 = vld [vmem:[#allocation12 + $0xf8] sm:$0xff]
      %v2167 = vld [vmem:[#allocation12 + $0x100] sm:$0xff]
      %v2168 = vld [vmem:[#allocation12 + $0x108] sm:$0xff]
      %v2169 = vld [vmem:[#allocation12 + $0x110] sm:$0xff]
      %v2170 = vld [vmem:[#allocation12 + $0x118] sm:$0xff]
      %v2171 = vld [vmem:[#allocation12 + $0x120] sm:$0xff]
      %v2172 = vld [vmem:[#allocation12 + $0x128] sm:$0xff]
      %v2173 = vld [vmem:[#allocation12 + $0x130] sm:$0xff]
      %v2174 = vld [vmem:[#allocation12 + $0x138] sm:$0xff]
      %v2175 = vld [vmem:[#allocation12 + $0x140] sm:$0xff]
      %v2176 = vld [vmem:[#allocation12 + $0x148] sm:$0xff]
      %v2177 = vld [vmem:[#allocation12 + $0x150] sm:$0xff]
      %v2178 = vld [vmem:[#allocation12 + $0x158] sm:$0xff]
      %v2179 = vld [vmem:[#allocation12 + $0x160] sm:$0xff]
      %v2180 = vld [vmem:[#allocation12 + $0x168] sm:$0xff]
      %v2181 = vld [vmem:[#allocation12 + $0x170] sm:$0xff]
      %v2182 = vld [vmem:[#allocation12 + $0x178] sm:$0xff]
      %v2183 = vld [vmem:[#allocation12 + $0x180] sm:$0xff]
      %v2184 = vld [vmem:[#allocation12 + $0x188] sm:$0xff]
      %v2185 = vld [vmem:[#allocation12 + $0x190] sm:$0xff]
      %v2186 = vld [vmem:[#allocation12 + $0x198] sm:$0xff]
      %v2187 = vld [vmem:[#allocation12 + $0x1a0] sm:$0xff]
      %v2188 = vld [vmem:[#allocation12 + $0x1a8] sm:$0xff]
      %v2189 = vld [vmem:[#allocation12 + $0x1b0] sm:$0xff]
      %v2190 = vld [vmem:[#allocation12 + $0x1b8] sm:$0xff]
      %v2191 = vld [vmem:[#allocation12 + $0x1c0] sm:$0xff]
      %v2192 = vld [vmem:[#allocation12 + $0x1c8] sm:$0xff]
      %v2193 = vld [vmem:[#allocation12 + $0x1d0] sm:$0xff]
      %v2194 = vld [vmem:[#allocation12 + $0x1d8] sm:$0xff]
      %v2195 = vld [vmem:[#allocation12 + $0x1e0] sm:$0xff]
      %v2196 = vld [vmem:[#allocation12 + $0x1e8] sm:$0xff]
      %v2197 = vld [vmem:[#allocation12 + $0x1f0] sm:$0xff]
      %v2198 = vld [vmem:[#allocation12 + $0x1f8] sm:$0xff]
      %2199 = vmatprep.subr.mxu0 %v2136
      %2200 = vmatpush1.msra.mxu0 %v2135
      %2201 = vmatprep.subr.mxu0 %v2140
      %2202 = vmatpush1.msra.mxu0 %v2139
      %2203 = vmatprep.subr.mxu0 %v2144
      %2204 = vmatpush1.msra.mxu0 %v2143
      %2205 = vmatprep.subr.mxu0 %v2148
      %2206 = vmatpush1.msra.mxu0 %v2147
      %2207 = vmatprep.subr.mxu0 %v2152
      %2208 = vmatpush1.msra.mxu0 %v2151
      %2209 = vmatprep.subr.mxu0 %v2156
      %2210 = vmatpush1.msra.mxu0 %v2155
      %2211 = vmatprep.subr.mxu0 %v2160
      %2212 = vmatpush1.msra.mxu0 %v2159
      %2213 = vmatprep.subr.mxu0 %v2164
      %2214 = vmatpush1.msra.mxu0 %v2163
      %2215 = vmatprep.subr.mxu0 %v2168
      %2216 = vmatpush1.msra.mxu0 %v2167
      %2217 = vmatprep.subr.mxu0 %v2172
      %2218 = vmatpush1.msra.mxu0 %v2171
      %2219 = vmatprep.subr.mxu0 %v2176
      %2220 = vmatpush1.msra.mxu0 %v2175
      %2221 = vmatprep.subr.mxu0 %v2180
      %2222 = vmatpush1.msra.mxu0 %v2179
      %2223 = vmatprep.subr.mxu0 %v2184
      %2224 = vmatpush1.msra.mxu0 %v2183
      %2225 = vmatprep.subr.mxu0 %v2188
      %2226 = vmatpush1.msra.mxu0 %v2187
      %2227 = vmatprep.subr.mxu0 %v2192
      %2228 = vmatpush1.msra.mxu0 %v2191
      %2229 = vmatprep.subr.mxu0 %v2196
      %2230 = vmatpush1.msra.mxu0 %v2195
      %2231 = vmatprep.subr.mxu0 0.0
      %2232 = vmatpush1.msra.mxu0 0.0
      %2233 = vmatprep.subr.mxu0 0.0
      %2234 = vmatpush1.msra.mxu0 0.0
      %2235 = vmatprep.subr.mxu0 0.0
      %2236 = vmatpush1.msra.mxu0 0.0
      %2237 = vmatprep.subr.mxu0 0.0
      %2238 = vmatpush1.msra.mxu0 0.0
      %2239 = vmatprep.subr.mxu0 0.0
      %2240 = vmatpush1.msra.mxu0 0.0
      %2241 = vmatprep.subr.mxu0 0.0
      %2242 = vmatpush1.msra.mxu0 0.0
      %2243 = vmatprep.subr.mxu0 0.0
      %2244 = vmatpush1.msra.mxu0 0.0
      %2245 = vmatprep.subr.mxu0 0.0
      %2246 = vmatpush1.msra.mxu0 0.0
      %2247 = vmatprep.subr.mxu0 0.0
      %2248 = vmatpush1.msra.mxu0 0.0
      %2249 = vmatprep.subr.mxu0 0.0
      %2250 = vmatpush1.msra.mxu0 0.0
      %2251 = vmatprep.subr.mxu0 0.0
      %2252 = vmatpush1.msra.mxu0 0.0
      %2253 = vmatprep.subr.mxu0 0.0
      %2254 = vmatpush1.msra.mxu0 0.0
      %2255 = vmatprep.subr.mxu0 0.0
      %2256 = vmatpush1.msra.mxu0 0.0
      %2257 = vmatprep.subr.mxu0 0.0
      %2258 = vmatpush1.msra.mxu0 0.0
      %2259 = vmatprep.subr.mxu0 0.0
      %2260 = vmatpush1.msra.mxu0 0.0
      %2261 = vmatprep.subr.mxu0 0.0
      %2262 = vmatpush1.msra.mxu0 0.0
      %2263 = vmatprep.mubr.f32.mxu0 0.0
      %2264 = vmatmul.mubr.f32.gmra.mrb[0].mxu0 %v2127
      %v2265 = vpop.f32.mrb[0].mxu0
      %v2266 = vadd.f32 0.0, %v2265
      %v2267 = vpop.f32.mrb[0].mxu0
      %v2268 = vadd.f32 0.0, %v2267
      %2269 = vdwg.mxu0
      %2270 = vmatprep.subr.mxu0 %v2138
      %2271 = vmatpush1.msra.mxu0 %v2137
      %2272 = vmatprep.subr.mxu0 %v2142
      %2273 = vmatpush1.msra.mxu0 %v2141
      %2274 = vmatprep.subr.mxu0 %v2146
      %2275 = vmatpush1.msra.mxu0 %v2145
      %2276 = vmatprep.subr.mxu0 %v2150
      %2277 = vmatpush1.msra.mxu0 %v2149
      %2278 = vmatprep.subr.mxu0 %v2154
      %2279 = vmatpush1.msra.mxu0 %v2153
      %2280 = vmatprep.subr.mxu0 %v2158
      %2281 = vmatpush1.msra.mxu0 %v2157
      %2282 = vmatprep.subr.mxu0 %v2162
      %2283 = vmatpush1.msra.mxu0 %v2161
      %2284 = vmatprep.subr.mxu0 %v2166
      %2285 = vmatpush1.msra.mxu0 %v2165
      %2286 = vmatprep.subr.mxu0 %v2170
      %2287 = vmatpush1.msra.mxu0 %v2169
      %2288 = vmatprep.subr.mxu0 %v2174
      %2289 = vmatpush1.msra.mxu0 %v2173
      %2290 = vmatprep.subr.mxu0 %v2178
      %2291 = vmatpush1.msra.mxu0 %v2177
      %2292 = vmatprep.subr.mxu0 %v2182
      %2293 = vmatpush1.msra.mxu0 %v2181
      %2294 = vmatprep.subr.mxu0 %v2186
      %2295 = vmatpush1.msra.mxu0 %v2185
      %2296 = vmatprep.subr.mxu0 %v2190
      %2297 = vmatpush1.msra.mxu0 %v2189
      %2298 = vmatprep.subr.mxu0 %v2194
      %2299 = vmatpush1.msra.mxu0 %v2193
      %2300 = vmatprep.subr.mxu0 %v2198
      %2301 = vmatpush1.msra.mxu0 %v2197
      %2302 = vmatprep.subr.mxu0 0.0
      %2303 = vmatpush1.msra.mxu0 0.0
      %2304 = vmatprep.subr.mxu0 0.0
      %2305 = vmatpush1.msra.mxu0 0.0
      %2306 = vmatprep.subr.mxu0 0.0
      %2307 = vmatpush1.msra.mxu0 0.0
      %2308 = vmatprep.subr.mxu0 0.0
      %2309 = vmatpush1.msra.mxu0 0.0
      %2310 = vmatprep.subr.mxu0 0.0
      %2311 = vmatpush1.msra.mxu0 0.0
      %2312 = vmatprep.subr.mxu0 0.0
      %2313 = vmatpush1.msra.mxu0 0.0
      %2314 = vmatprep.subr.mxu0 0.0
      %2315 = vmatpush1.msra.mxu0 0.0
      %2316 = vmatprep.subr.mxu0 0.0
      %2317 = vmatpush1.msra.mxu0 0.0
      %2318 = vmatprep.subr.mxu0 0.0
      %2319 = vmatpush1.msra.mxu0 0.0
      %2320 = vmatprep.subr.mxu0 0.0
      %2321 = vmatpush1.msra.mxu0 0.0
      %2322 = vmatprep.subr.mxu0 0.0
      %2323 = vmatpush1.msra.mxu0 0.0
      %2324 = vmatprep.subr.mxu0 0.0
      %2325 = vmatpush1.msra.mxu0 0.0
      %2326 = vmatprep.subr.mxu0 0.0
      %2327 = vmatpush1.msra.mxu0 0.0
      %2328 = vmatprep.subr.mxu0 0.0
      %2329 = vmatpush1.msra.mxu0 0.0
      %2330 = vmatprep.subr.mxu0 0.0
      %2331 = vmatpush1.msra.mxu0 0.0
      %2332 = vmatprep.subr.mxu0 0.0
      %2333 = vmatpush1.msra.mxu0 0.0
      %2334 = vmatprep.mubr.f32.mxu0 0.0
      %2335 = vmatmul.mubr.f32.gmra.mrb[0].mxu0 %v2127
      %v2336 = vpop.f32.mrb[0].mxu0
      %v2337 = vadd.f32 0.0, %v2336
      %v2338 = vpop.f32.mrb[0].mxu0
      %v2339 = vadd.f32 0.0, %v2338
      %2340 = vdwg.mxu0
      %v2341 = vadd.f32 %v2131, %v2266
      %v2342 = vadd.f32 %v2132, %v2268
      %v2343 = vadd.f32 %v2133, %v2337
      %v2344 = vadd.f32 %v2134, %v2339
      %v2345 = vxor.u32 %v2341, 2147483648
      %v2346 = vxor.u32 %v2342, 2147483648
      %v2347 = vxor.u32 %v2343, 2147483648
      %v2348 = vmul.f32 %v2345, 1.442695
      %v2349 = vpow.pop %v2348
      %v2350 = vmul.f32 %v2346, 1.442695
      %v2351 = vpow.pop %v2350
      %v2352 = vmul.f32 %v2347, 1.442695
      %v2353 = vpow.pop %v2352
      %v2354 = vadd.f32 %v2349, 1.0
      %v2355 = vadd.f32 %v2351, 1.0
      %v2356 = vadd.f32 %v2353, 1.0
      %v2357 = vrcp.pop %v2354
      %v2358 = vmul.f32 1.0, %v2357
      %v2359 = vrcp.pop %v2355
      %v2360 = vmul.f32 1.0, %v2359
      %v2361 = vrcp.pop %v2356
      %v2362 = vmul.f32 1.0, %v2361
      %v2363 = vtanh.pop %v2344
      %v2364 = vmul.f32 %v2360, %v2125
      %v2365 = vmul.f32 %v2358, %v2363
      %v2366 = vadd.f32 %v2364, %v2365
      %v2367 = vtanh.pop %v2366
      %v2368 = vmul.f32 %v2362, %v2367
      %s2369 = scalar_lea.vmem [#allocation5], 56
      %2370 = vst [vmem:[%s2369] sm:$0xff] %v2368
      %2371 = vst [vmem:[#allocation2] sm:$0xff] %v2368
      %2372 = vst [vmem:[#allocation3] sm:$0xff] %v2366
    $region49: #{tpu_custom_call.1} parent=1 // pred_fallthru
      _
    %v2373 = vld [vmem:[#allocation5] sm:$0xff]
    %v2374 = vld [vmem:[#allocation5 + $0x8] sm:$0xff]
    %v2375 = vld [vmem:[#allocation5 + $0x10] sm:$0xff]
    %v2376 = vld [vmem:[#allocation5 + $0x18] sm:$0xff]
    %v2377 = vld [vmem:[#allocation5 + $0x20] sm:$0xff]
    %v2378 = vld [vmem:[#allocation5 + $0x28] sm:$0xff]
    %v2379 = vld [vmem:[#allocation5 + $0x30] sm:$0xff]
    %v2380 = vld [vmem:[#allocation5 + $0x38] sm:$0xff]
    %v2381 = vld [vmem:[#allocation14] sm:$0xff]
    %v2382 = vld [vmem:[#allocation14 + $0x8] sm:$0xff]
    %v2383 = vld [vmem:[#allocation14 + $0x10] sm:$0xff]
    %v2384 = vld [vmem:[#allocation14 + $0x18] sm:$0xff]
    %v2385 = vld [vmem:[#allocation14 + $0x20] sm:$0xff]
    %v2386 = vld [vmem:[#allocation14 + $0x28] sm:$0xff]
    %v2387 = vld [vmem:[#allocation14 + $0x30] sm:$0xff]
    %v2388 = vld [vmem:[#allocation14 + $0x38] sm:$0xff]
    %v2389 = vld [vmem:[#allocation14 + $0x40] sm:$0xff]
    %v2390 = vld [vmem:[#allocation14 + $0x48] sm:$0xff]
    %v2391 = vld [vmem:[#allocation14 + $0x50] sm:$0xff]
    %v2392 = vld [vmem:[#allocation14 + $0x58] sm:$0xff]
    %v2393 = vld [vmem:[#allocation14 + $0x60] sm:$0xff]
    %v2394 = vld [vmem:[#allocation14 + $0x68] sm:$0xff]
    %v2395 = vld [vmem:[#allocation14 + $0x70] sm:$0xff]
    %v2396 = vld [vmem:[#allocation14 + $0x78] sm:$0xff]
    %v2397 = vld [vmem:[%s5] sm:$0x1]
    %v2399 = vlaneseq
    %v2400 = vshrl.u32 %v2399, 7
    %v2401 = vsub.s32 0, %v2400
    %v2402 = vrot.slane %v2397, %v2401
    %2404 = vmatprep.subr.mxu0 0.0
    %2405 = vmatpush1.msra.mxu0 %v2381
    %2406 = vmatprep.subr.mxu0 0.0
    %2407 = vmatpush1.msra.mxu0 %v2382
    %2408 = vmatprep.subr.mxu0 0.0
    %2409 = vmatpush1.msra.mxu0 %v2383
    %2410 = vmatprep.subr.mxu0 0.0
    %2411 = vmatpush1.msra.mxu0 %v2384
    %2412 = vmatprep.subr.mxu0 0.0
    %2413 = vmatpush1.msra.mxu0 %v2385
    %2414 = vmatprep.subr.mxu0 0.0
    %2415 = vmatpush1.msra.mxu0 %v2386
    %2416 = vmatprep.subr.mxu0 0.0
    %2417 = vmatpush1.msra.mxu0 %v2387
    %2418 = vmatprep.subr.mxu0 0.0
    %2419 = vmatpush1.msra.mxu0 %v2388
    %2420 = vmatprep.subr.mxu0 0.0
    %2421 = vmatpush1.msra.mxu0 %v2389
    %2422 = vmatprep.subr.mxu0 0.0
    %2423 = vmatpush1.msra.mxu0 %v2390
    %2424 = vmatprep.subr.mxu0 0.0
    %2425 = vmatpush1.msra.mxu0 %v2391
    %2426 = vmatprep.subr.mxu0 0.0
    %2427 = vmatpush1.msra.mxu0 %v2392
    %2428 = vmatprep.subr.mxu0 0.0
    %2429 = vmatpush1.msra.mxu0 %v2393
    %2430 = vmatprep.subr.mxu0 0.0
    %2431 = vmatpush1.msra.mxu0 %v2394
    %2432 = vmatprep.subr.mxu0 0.0
    %2433 = vmatpush1.msra.mxu0 %v2395
    %2434 = vmatprep.subr.mxu0 0.0
    %2435 = vmatpush1.msra.mxu0 %v2396
    %2436 = vmatprep.subr.mxu0 0.0
    %2437 = vmatpush1.msra.mxu0 0.0
    %2438 = vmatprep.subr.mxu0 0.0
    %2439 = vmatpush1.msra.mxu0 0.0
    %2440 = vmatprep.subr.mxu0 0.0
    %2441 = vmatpush1.msra.mxu0 0.0
    %2442 = vmatprep.subr.mxu0 0.0
    %2443 = vmatpush1.msra.mxu0 0.0
    %2444 = vmatprep.subr.mxu0 0.0
    %2445 = vmatpush1.msra.mxu0 0.0
    %2446 = vmatprep.subr.mxu0 0.0
    %2447 = vmatpush1.msra.mxu0 0.0
    %2448 = vmatprep.subr.mxu0 0.0
    %2449 = vmatpush1.msra.mxu0 0.0
    %2450 = vmatprep.subr.mxu0 0.0
    %2451 = vmatpush1.msra.mxu0 0.0
    %2452 = vmatprep.subr.mxu0 0.0
    %2453 = vmatpush1.msra.mxu0 0.0
    %2454 = vmatprep.subr.mxu0 0.0
    %2455 = vmatpush1.msra.mxu0 0.0
    %2456 = vmatprep.subr.mxu0 0.0
    %2457 = vmatpush1.msra.mxu0 0.0
    %2458 = vmatprep.subr.mxu0 0.0
    %2459 = vmatpush1.msra.mxu0 0.0
    %2460 = vmatprep.subr.mxu0 0.0
    %2461 = vmatpush1.msra.mxu0 0.0
    %2462 = vmatprep.subr.mxu0 0.0
    %2463 = vmatpush1.msra.mxu0 0.0
    %2464 = vmatprep.subr.mxu0 0.0
    %2465 = vmatpush1.msra.mxu0 0.0
    %2466 = vmatprep.subr.mxu0 0.0
    %2467 = vmatpush1.msra.mxu0 0.0
    %2468 = vmatprep.mubr.f32.mxu0 0.0
    %2469 = vmatmul.mubr.f32.gmra.mrb[0].mxu0 %v2373
    %v2470 = vpop.f32.mrb[0].mxu0
    %v2471 = vadd.f32 %v2402, %v2470
    %v2472 = vpop.f32.mrb[0].mxu0
    %2473 = vmatprep.mubr.f32.mxu0 0.0
    %2474 = vmatmul.mubr.f32.gmra.mrb[0].mxu0 %v2374
    %v2475 = vpop.f32.mrb[0].mxu0
    %v2476 = vadd.f32 %v2402, %v2475
    %v2477 = vpop.f32.mrb[0].mxu0
    %2478 = vmatprep.mubr.f32.mxu0 0.0
    %2479 = vmatmul.mubr.f32.gmra.mrb[0].mxu0 %v2375
    %v2480 = vpop.f32.mrb[0].mxu0
    %v2481 = vadd.f32 %v2402, %v2480
    %v2482 = vpop.f32.mrb[0].mxu0
    %2483 = vmatprep.mubr.f32.mxu0 0.0
    %2484 = vmatmul.mubr.f32.gmra.mrb[0].mxu0 %v2376
    %v2485 = vpop.f32.mrb[0].mxu0
    %v2486 = vadd.f32 %v2402, %v2485
    %v2487 = vpop.f32.mrb[0].mxu0
    %2488 = vmatprep.mubr.f32.mxu0 0.0
    %2489 = vmatmul.mubr.f32.gmra.mrb[0].mxu0 %v2377
    %v2490 = vpop.f32.mrb[0].mxu0
    %v2491 = vadd.f32 %v2402, %v2490
    %v2492 = vpop.f32.mrb[0].mxu0
    %2493 = vmatprep.mubr.f32.mxu0 0.0
    %2494 = vmatmul.mubr.f32.gmra.mrb[0].mxu0 %v2378
    %v2495 = vpop.f32.mrb[0].mxu0
    %v2496 = vadd.f32 %v2402, %v2495
    %v2497 = vpop.f32.mrb[0].mxu0
    %2498 = vmatprep.mubr.f32.mxu0 0.0
    %2499 = vmatmul.mubr.f32.gmra.mrb[0].mxu0 %v2379
    %v2500 = vpop.f32.mrb[0].mxu0
    %v2501 = vadd.f32 %v2402, %v2500
    %v2502 = vpop.f32.mrb[0].mxu0
    %2503 = vmatprep.mubr.f32.mxu0 0.0
    %2504 = vmatmul.mubr.f32.gmra.mrb[0].mxu0 %v2380
    %v2505 = vpop.f32.mrb[0].mxu0
    %v2506 = vadd.f32 %v2402, %v2505
    %v2507 = vpop.f32.mrb[0].mxu0
    %2508 = vdwg.mxu0
    %2509 = vst [vmem:[#allocation15] sm:$0xff] %v2471
    %2510 = vst [vmem:[#allocation15 + $0x8] sm:$0xff] %v2476
    %2511 = vst [vmem:[#allocation15 + $0x10] sm:$0xff] %v2481
    %2512 = vst [vmem:[#allocation15 + $0x18] sm:$0xff] %v2486
    %2513 = vst [vmem:[#allocation15 + $0x20] sm:$0xff] %v2491
    %2514 = vst [vmem:[#allocation15 + $0x28] sm:$0xff] %v2496
    %2515 = vst [vmem:[#allocation15 + $0x30] sm:$0xff] %v2501
    %2516 = vst [vmem:[#allocation15 + $0x38] sm:$0xff] %v2506
    // Predicated region
    $region54: #{tpu_custom_call.1} parent=1 // pred_check
      _
    $region55: #{tpu_custom_call.1} parent=1 // pred_check_branch
      %2518 = sbr.rel (0) target = $region57
    $region56: #{tpu_custom_call.1} parent=1 // pred_region
      %s2520 = ssub.s32 1024, 1024
      %2521 = vsyncadd [#allocation8], %s2520
      %s2522 = sshll.u32 [#allocation15], 4
      %s2523 = int_to_ptr.vmem [resolvable:$true] %s2522
      %2528 = dma.vmem_to_hbm [thread:$0]  %s2523, 1024, %s6, [#allocation8], 128, 128, 8
    $region57: #{tpu_custom_call.1} parent=1 // pred_fallthru
      _
    // Predicated region
    $region58: #{tpu_custom_call.1} parent=1 // pred_check
      _
    $region59: #{tpu_custom_call.1} parent=1 // pred_check_branch
      %2530 = sbr.rel (0) target = $region61
    $region60: #{tpu_custom_call.1} parent=1 // pred_region
      %2531 = dma.done [#allocation8], 1024
    $region61: #{tpu_custom_call.1} parent=1 // pred_fallthru
      _
    %2532 = vsyncpa [#allocation7], 1
    %2533 = vsyncpa [#allocation10], 1
    %2534 = vsyncpa [#allocation13], 1
    %2535 = vsyncpa [#allocation8], 1

</llo_original>
